<compile_context>
chip_gen: v7x
topology: tpu7x:2x2x1
jax: 0.10.0
libtpu: 0.0.40
codegen_flags: <defaults>
</compile_context>

<pallas_src>
import functools
import math

import jax
import jax.numpy as jnp
from jax import lax
from jax.experimental import pallas as pl
from jax.experimental.pallas import tpu as pltpu


def _gelu(x):
    # TODO(synk): PyTorch nn.GELU defaults to the exact erf form; the tanh
    # approximation (max err ~1e-3) is used because erf lowering in Mosaic is
    # not guaranteed across jax versions.
    c = math.sqrt(2.0 / math.pi)
    return 0.5 * x * (1.0 + jnp.tanh(c * (x + 0.044715 * x * x * x)))


def _layernorm(x, g, b, eps=1e-5):
    mu = jnp.mean(x, axis=-1, keepdims=True)
    var = jnp.mean(jnp.square(x - mu), axis=-1, keepdims=True)
    return (x - mu) * lax.rsqrt(var + eps) * g + b


def vit_block_kernel(num_heads,
                     x_ref, vec_ref, wqkv_ref, bqkv_ref, wo_ref,
                     w1_ref, b1_ref, w2_ref, out_ref):
    f32 = jnp.float32
    bf16 = jnp.bfloat16

    x_in = x_ref[0]                                   # (S, D) f32
    S, D = x_in.shape
    H = num_heads
    Dh = D // H

    ln1_g, ln1_b = vec_ref[0], vec_ref[1]
    ln2_g, ln2_b = vec_ref[2], vec_ref[3]
    b_out, b_mlp2 = vec_ref[4], vec_ref[5]

    # ---- LN1 + fused QKV projection (single full-width MXU matmul) ----
    xn = _layernorm(x_in, ln1_g, ln1_b)
    # (S, D) @ (D, 3D), bf16 operands, f32 accumulation.  The 1/sqrt(Dh)
    # softmax scale is already folded into the Q columns host-side.
    qkv = jnp.dot(xn.astype(bf16), wqkv_ref[...],
                  preferred_element_type=f32) + bqkv_ref[0]        # (S, 3D)

    # Single relayout to head-major only where the score matmul needs it.
    qkv_hm = jnp.transpose(qkv.reshape(S, 3 * H, Dh), (1, 0, 2))    # (3H, S, Dh)
    q = qkv_hm[:H].astype(bf16)
    k = qkv_hm[H:2 * H].astype(bf16)
    v = qkv_hm[2 * H:].astype(bf16)

    # ---- attention scores / softmax (f32) ----
    s = jnp.einsum("hqe,hke->hqk", q, k, preferred_element_type=f32)
    s = s - jnp.max(s, axis=-1, keepdims=True)
    p = jnp.exp(s)
    p = p * pl.reciprocal(jnp.sum(p, axis=-1, keepdims=True), approx=True)

    o = jnp.einsum("hqk,hke->hqe", p.astype(bf16), v,
                   preferred_element_type=f32)                      # (H, S, Dh)

    # ---- output projection: one transpose back to lane-dense (S, D), then a
    # single full-depth (S, D) @ (D, D) matmul with wout in native layout ----
    o_sd = jnp.transpose(o, (1, 0, 2)).reshape(S, D)
    attn = jnp.dot(o_sd.astype(bf16), wo_ref[...],
                   preferred_element_type=f32) + b_out

    x_res = attn + x_in                 # dropout = identity at inference

    # ---- LN2 + MLP ----
    # TODO(synk): introduce an mlp_dim tile loop (live-range boundary) here for
    # production shapes; at demo sizes the whole hidden layer fits in VMEM.
    y = _layernorm(x_res, ln2_g, ln2_b)
    h1 = _gelu(jnp.dot(y.astype(bf16), w1_ref[...],
                       preferred_element_type=f32) + b1_ref[0])
    y2 = jnp.dot(h1.astype(bf16), w2_ref[...],
                 preferred_element_type=f32) + b_mlp2

    out_ref[0] = (x_res + y2).astype(out_ref.dtype)


def _prepare_weights(params, num_heads):
    """Host-side prep: fold softmax scale into the Q columns of the fused QKV
    weight, cast matmul weights to bf16, concatenate the small (1, D) vectors
    into one lane-dense array."""
    D = params["ln1_g"].shape[-1]
    H = num_heads
    Dh = D // H
    bf16 = jnp.bfloat16
    f32 = jnp.float32

    col_scale = jnp.concatenate([
        jnp.full((D,), 1.0 / math.sqrt(Dh), f32),
        jnp.ones((2 * D,), f32)])
    wqkv = (params["wqkv"] * col_scale[None, :]).astype(bf16)     # (D, 3D)
    bqkv = (params["bqkv"] * col_scale[None, :]).astype(f32)      # (1, 3D)

    # [ln1_g, ln1_b, ln2_g, ln2_b, bout, b2] -> one (6, D) f32 array.
    vecs = jnp.concatenate([
        params["ln1_g"], params["ln1_b"],
        params["ln2_g"], params["ln2_b"],
        params["bout"], params["b2"]], axis=0).astype(f32)

    return [
        vecs,                                   # (6, D)   f32
        wqkv,                                   # (D, 3D)  bf16 (scale folded)
        bqkv,                                   # (1, 3D)  f32  (scale folded)
        params["wout"].astype(bf16),            # (D, D)   bf16, native layout
        params["w1"].astype(bf16),              # (D, M)   bf16
        params["b1"].astype(f32),               # (1, M)   f32
        params["w2"].astype(bf16),              # (M, D)   bf16
    ]


def _vmem_cap_bytes():
    """Generation-aware usable-VMEM ceiling (~115 MiB on v5e/v6e, ~57 MiB on
    v7x) instead of a hard-coded 64 MiB clamp."""
    try:
        cap = int(pltpu.get_tpu_info().vmem_capacity_bytes)
    except Exception:
        cap = 64 << 20
    return int(cap * 0.9)


def _vit_block_call(x, weights, num_heads, *, single_buffer_weights):
    B, S, D = x.shape
    H = num_heads
    Dh = D // H
    M = weights[5].shape[-1]                    # b1 is (1, M)

    def weight_spec(a):
        kwargs = {}
        if single_buffer_weights:
            # Constant index map -> fetched once; single buffer avoids the
            # default double-buffered VMEM copy of every weight.
            kwargs["pipeline_mode"] = pl.Buffered(1)
        return pl.BlockSpec(a.shape, lambda b, n=a.ndim: (0,) * n, **kwargs)

    in_specs = [pl.BlockSpec((1, S, D), lambda b: (b, 0, 0))]
    in_specs += [weight_spec(a) for a in weights]

    # Explicit VMEM budget: weights (x2 to also cover the double-buffered
    # fallback) + activation temporaries + headroom, capped by what the chip
    # actually has.
    w_bytes = sum(a.size * a.dtype.itemsize for a in weights)
    act_bytes = 4 * (4 * S * D            # x in / out blocks (double-buffered)
                     + 8 * S * D          # LN / residual / attn / y2 temps
                     + 6 * S * D          # fused qkv (f32 + bf16 copy)
                     + 3 * H * S * Dh     # q, k, v head-major (slack)
                     + 3 * H * S * S      # scores + probs (+ bf16 copy)
                     + 2 * H * S * Dh     # o (+ bf16 copy)
                     + 2 * S * D          # o transposed back to (S, D)
                     + 2 * S * M)         # MLP hidden (f32 + bf16 copy)
    need = 2 * w_bytes + 2 * act_bytes + (8 << 20)
    vmem_limit = int(max(32 << 20, min(need, _vmem_cap_bytes())))

    return pl.pallas_call(
        functools.partial(vit_block_kernel, num_heads),
        out_shape=jax.ShapeDtypeStruct((B, S, D), x.dtype),
        grid=(B,),
        in_specs=in_specs,
        out_specs=pl.BlockSpec((1, S, D), lambda b: (b, 0, 0)),
        compiler_params=pltpu.CompilerParams(
            dimension_semantics=("parallel",),
            vmem_limit_bytes=vmem_limit),
    )(x, *weights)


def vit_block(x, params, num_heads):
    weights = _prepare_weights(params, num_heads)
    try:
        # The pallas_call is compiled and executed inside this call, so an
        # unsupported pipeline_mode=pl.Buffered(1) surfaces here.
        return jax.block_until_ready(
            _vit_block_call(x, weights, num_heads, single_buffer_weights=True))
    except Exception:
        # Fall back to default (double-buffered) weight specs.
        return _vit_block_call(x, weights, num_heads, single_buffer_weights=False)


def vit_block_ref(x, params, num_heads):
    """Pure-JAX f32 reference matching the ViTBlock forward semantics."""
    B, S, D = x.shape
    H = num_heads
    Dh = D // H
    hp = lax.Precision.HIGHEST

    def ln(v, g, b):
        mu = jnp.mean(v, axis=-1, keepdims=True)
        var = jnp.mean(jnp.square(v - mu), axis=-1, keepdims=True)
        return (v - mu) * lax.rsqrt(var + 1e-5) * g[0] + b[0]

    xn = ln(x, params["ln1_g"], params["ln1_b"])
    qkv = jnp.einsum("bsd,de->bse", xn, params["wqkv"], precision=hp) + params["bqkv"][0]
    q, k, v = jnp.split(qkv, 3, axis=-1)
    q = q.reshape(B, S, H, Dh).transpose(0, 2, 1, 3)
    k = k.reshape(B, S, H, Dh).transpose(0, 2, 1, 3)
    v = v.reshape(B, S, H, Dh).transpose(0, 2, 1, 3)
    s = jnp.einsum("bhqd,bhkd->bhqk", q, k, precision=hp) / math.sqrt(Dh)
    p = jax.nn.softmax(s, axis=-1)
    o = jnp.einsum("bhqk,bhkd->bhqd", p, v, precision=hp)
    o = o.transpose(0, 2, 1, 3).reshape(B, S, D)
    attn = jnp.einsum("bsd,de->bse", o, params["wout"], precision=hp) + params["bout"][0]
    xres = attn + x

    y = ln(xres, params["ln2_g"], params["ln2_b"])
    h1 = _gelu(jnp.einsum("bsd,dm->bsm", y, params["w1"], precision=hp) + params["b1"][0])
    y2 = jnp.einsum("bsm,md->bsd", h1, params["w2"], precision=hp) + params["b2"][0]
    return xres + y2


def make_params(key, hidden_dim, mlp_dim):
    D, M = hidden_dim, mlp_dim
    ks = jax.random.split(key, 8)
    sd = 0.02
    return {
        "ln1_g": jnp.ones((1, D), jnp.float32),
        "ln1_b": jnp.zeros((1, D), jnp.float32),
        "wqkv": sd * jax.random.normal(ks[0], (D, 3 * D), jnp.float32),
        "bqkv": sd * jax.random.normal(ks[1], (1, 3 * D), jnp.float32),
        "wout": sd * jax.random.normal(ks[2], (D, D), jnp.float32),
        "bout": sd * jax.random.normal(ks[3], (1, D), jnp.float32),
        "ln2_g": jnp.ones((1, D), jnp.float32),
        "ln2_b": jnp.zeros((1, D), jnp.float32),
        "w1": sd * jax.random.normal(ks[4], (D, M), jnp.float32),
        "b1": sd * jax.random.normal(ks[5], (1, M), jnp.float32),
        "w2": sd * jax.random.normal(ks[6], (M, D), jnp.float32),
        "b2": sd * jax.random.normal(ks[7], (1, D), jnp.float32),
    }


if __name__ == "__main__":
    B, S, D, H, M = 2, 8, 32, 4, 64   # batch, seq, hidden, heads, mlp_dim

    key = jax.random.PRNGKey(0)
    kx, kp = jax.random.split(key)
    x = jax.random.normal(kx, (B, S, D), jnp.float32)
    params = make_params(kp, D, M)

    out = jax.block_until_ready(vit_block(x, params, num_heads=H))
    ref = vit_block_ref(x, params, num_heads=H)

    assert out.shape == (B, S, D)
    err = float(jnp.max(jnp.abs(out - ref)))
    # bf16 MXU operands + approx softmax reciprocal + tanh GELU vs. the f32
    # reference -> compare with a correspondingly loose tolerance.
    assert err < 2e-2, f"max abs err {err}"

    print("KERNEL_OK")
</pallas_src>

<mosaic_0001>
module attributes {stable_mosaic.version = 11 : i64} {
  func.func @vit_block_kernel(%arg0: i32, %arg1: memref<1x8x32xf32, #tpu.memory_space<vmem>>, %arg2: memref<6x32xf32, #tpu.memory_space<vmem>>, %arg3: memref<32x96xbf16, #tpu.memory_space<vmem>>, %arg4: memref<1x96xf32, #tpu.memory_space<vmem>>, %arg5: memref<32x32xbf16, #tpu.memory_space<vmem>>, %arg6: memref<32x64xbf16, #tpu.memory_space<vmem>>, %arg7: memref<1x64xf32, #tpu.memory_space<vmem>>, %arg8: memref<64x32xbf16, #tpu.memory_space<vmem>>, %arg9: memref<1x8x32xf32, #tpu.memory_space<vmem>>) attributes {dimension_semantics = [#tpu.dimension_semantics<parallel>], iteration_bounds = array<i64: 2>, scalar_prefetch = 0 : i64, scratch_operands = 0 : i64, tpu.core_type = #tpu.core_type<tc>, window_params = [{transform_indices = @transform_0, window_bounds = array<i64: 1, 8, 32>}, {pipeline_mode = #tpu.pipeline_mode<synchronous>, transform_indices = @transform_1, window_bounds = array<i64: 6, 32>}, {pipeline_mode = #tpu.pipeline_mode<synchronous>, transform_indices = @transform_2, window_bounds = array<i64: 32, 96>}, {pipeline_mode = #tpu.pipeline_mode<synchronous>, transform_indices = @transform_3, window_bounds = array<i64: 1, 96>}, {pipeline_mode = #tpu.pipeline_mode<synchronous>, transform_indices = @transform_4, window_bounds = array<i64: 32, 32>}, {pipeline_mode = #tpu.pipeline_mode<synchronous>, transform_indices = @transform_5, window_bounds = array<i64: 32, 64>}, {pipeline_mode = #tpu.pipeline_mode<synchronous>, transform_indices = @transform_6, window_bounds = array<i64: 1, 64>}, {pipeline_mode = #tpu.pipeline_mode<synchronous>, transform_indices = @transform_7, window_bounds = array<i64: 64, 32>}, {transform_indices = @transform_8, window_bounds = array<i64: 1, 8, 32>}]} {
    %c0 = arith.constant 0 : index
    %c0_0 = arith.constant 0 : index
    %c0_1 = arith.constant 0 : index
    %0 = vector.load %arg1[%c0, %c0_0, %c0_1] : memref<1x8x32xf32, #tpu.memory_space<vmem>>, vector<1x8x32xf32>
    %1 = vector.shape_cast %0 : vector<1x8x32xf32> to vector<8x32xf32>
    %c0_2 = arith.constant 0 : index
    %c0_3 = arith.constant 0 : index
    %2 = vector.load %arg2[%c0_2, %c0_3] : memref<6x32xf32, #tpu.memory_space<vmem>>, vector<1x32xf32>
    %3 = vector.shape_cast %2 : vector<1x32xf32> to vector<32xf32>
    %c1 = arith.constant 1 : index
    %c0_4 = arith.constant 0 : index
    %4 = vector.load %arg2[%c1, %c0_4] : memref<6x32xf32, #tpu.memory_space<vmem>>, vector<1x32xf32>
    %5 = vector.shape_cast %4 : vector<1x32xf32> to vector<32xf32>
    %c2 = arith.constant 2 : index
    %c0_5 = arith.constant 0 : index
    %6 = vector.load %arg2[%c2, %c0_5] : memref<6x32xf32, #tpu.memory_space<vmem>>, vector<1x32xf32>
    %7 = vector.shape_cast %6 : vector<1x32xf32> to vector<32xf32>
    %c3 = arith.constant 3 : index
    %c0_6 = arith.constant 0 : index
    %8 = vector.load %arg2[%c3, %c0_6] : memref<6x32xf32, #tpu.memory_space<vmem>>, vector<1x32xf32>
    %9 = vector.shape_cast %8 : vector<1x32xf32> to vector<32xf32>
    %c4 = arith.constant 4 : index
    %c0_7 = arith.constant 0 : index
    %10 = vector.load %arg2[%c4, %c0_7] : memref<6x32xf32, #tpu.memory_space<vmem>>, vector<1x32xf32>
    %11 = vector.shape_cast %10 : vector<1x32xf32> to vector<32xf32>
    %c5 = arith.constant 5 : index
    %c0_8 = arith.constant 0 : index
    %12 = vector.load %arg2[%c5, %c0_8] : memref<6x32xf32, #tpu.memory_space<vmem>>, vector<1x32xf32>
    %13 = vector.shape_cast %12 : vector<1x32xf32> to vector<32xf32>
    %cst = arith.constant dense<0.000000e+00> : vector<8xf32>
    %14 = vector.multi_reduction <add>, %1, %cst [1] : vector<8x32xf32> to vector<8xf32>
    %15 = vector.shape_cast %14 : vector<8xf32> to vector<8x1xf32>
    %cst_9 = arith.constant 3.200000e+01 : f32
    %16 = vector.broadcast %cst_9 : f32 to vector<8x1xf32>
    %17 = arith.divf %15, %16 : vector<8x1xf32>
    %18 = vector.broadcast %17 : vector<8x1xf32> to vector<8x32xf32>
    %19 = arith.subf %1, %18 : vector<8x32xf32>
    %20 = arith.mulf %19, %19 : vector<8x32xf32>
    %cst_10 = arith.constant dense<0.000000e+00> : vector<8xf32>
    %21 = vector.multi_reduction <add>, %20, %cst_10 [1] : vector<8x32xf32> to vector<8xf32>
    %22 = vector.shape_cast %21 : vector<8xf32> to vector<8x1xf32>
    %cst_11 = arith.constant 3.200000e+01 : f32
    %23 = vector.broadcast %cst_11 : f32 to vector<8x1xf32>
    %24 = arith.divf %22, %23 : vector<8x1xf32>
    %25 = vector.broadcast %17 : vector<8x1xf32> to vector<8x32xf32>
    %26 = arith.subf %1, %25 : vector<8x32xf32>
    %cst_12 = arith.constant 9.99999974E-6 : f32
    %27 = vector.broadcast %cst_12 : f32 to vector<8x1xf32>
    %28 = arith.addf %24, %27 : vector<8x1xf32>
    %29 = math.rsqrt %28 : vector<8x1xf32>
    %30 = vector.broadcast %29 : vector<8x1xf32> to vector<8x32xf32>
    %31 = arith.mulf %26, %30 : vector<8x32xf32>
    %32 = vector.shape_cast %3 : vector<32xf32> to vector<1x32xf32>
    %33 = vector.broadcast %32 : vector<1x32xf32> to vector<8x32xf32>
    %34 = arith.mulf %31, %33 : vector<8x32xf32>
    %35 = vector.shape_cast %5 : vector<32xf32> to vector<1x32xf32>
    %36 = vector.broadcast %35 : vector<1x32xf32> to vector<8x32xf32>
    %37 = arith.addf %34, %36 : vector<8x32xf32>
    %38 = arith.truncf %37 : vector<8x32xf32> to vector<8x32xbf16>
    %c0_13 = arith.constant 0 : index
    %c0_14 = arith.constant 0 : index
    %39 = vector.load %arg3[%c0_13, %c0_14] : memref<32x96xbf16, #tpu.memory_space<vmem>>, vector<32x96xbf16>
    %cst_15 = arith.constant dense<0.000000e+00> : vector<8x96xf32>
    %40 = tpu.matmul %38, %39, %cst_15 {dimension_numbers = #tpu.dot_dimension_numbers<[1], [0], [0], [1], [0, 0, 1, 1], [], []>} : vector<8x32xbf16>, vector<32x96xbf16>, vector<8x96xf32> -> vector<8x96xf32>
    %c0_16 = arith.constant 0 : index
    %c0_17 = arith.constant 0 : index
    %41 = vector.load %arg4[%c0_16, %c0_17] : memref<1x96xf32, #tpu.memory_space<vmem>>, vector<1x96xf32>
    %42 = vector.shape_cast %41 : vector<1x96xf32> to vector<96xf32>
    %43 = vector.shape_cast %42 : vector<96xf32> to vector<1x96xf32>
    %44 = vector.broadcast %43 : vector<1x96xf32> to vector<8x96xf32>
    %45 = arith.addf %40, %44 : vector<8x96xf32>
    %46 = vector.shape_cast %45 : vector<8x96xf32> to vector<8x12x8xf32>
    %47 = tpu.transpose %46, [1, 0, 2] : vector<8x12x8xf32> -> vector<12x8x8xf32>
    %48 = vector.extract_strided_slice %47 {offsets = [0, 0, 0], sizes = [4, 8, 8], strides = [1, 1, 1]} : vector<12x8x8xf32> to vector<4x8x8xf32>
    %49 = arith.truncf %48 : vector<4x8x8xf32> to vector<4x8x8xbf16>
    %50 = vector.extract_strided_slice %47 {offsets = [4, 0, 0], sizes = [4, 8, 8], strides = [1, 1, 1]} : vector<12x8x8xf32> to vector<4x8x8xf32>
    %51 = arith.truncf %50 : vector<4x8x8xf32> to vector<4x8x8xbf16>
    %52 = vector.extract_strided_slice %47 {offsets = [8, 0, 0], sizes = [4, 8, 8], strides = [1, 1, 1]} : vector<12x8x8xf32> to vector<4x8x8xf32>
    %53 = arith.truncf %52 : vector<4x8x8xf32> to vector<4x8x8xbf16>
    "tpu.trace_start"() <{level = 10 : i32, message = "hqe,hke->hqk"}> : () -> ()
    %cst_18 = arith.constant dense<0.000000e+00> : vector<4x8x8xf32>
    %54 = tpu.matmul %49, %51, %cst_18 {dimension_numbers = #tpu.dot_dimension_numbers<[2], [2], [1], [1], [0, 0, 0, 1, 1, 1], [0], [0]>} : vector<4x8x8xbf16>, vector<4x8x8xbf16>, vector<4x8x8xf32> -> vector<4x8x8xf32>
    "tpu.trace_stop"() : () -> ()
    %cst_19 = arith.constant dense<0xFF800000> : vector<4x8xf32>
    %55 = vector.multi_reduction <maximumf>, %54, %cst_19 [2] : vector<4x8x8xf32> to vector<4x8xf32>
    %56 = vector.shape_cast %55 : vector<4x8xf32> to vector<4x8x1xf32>
    %57 = vector.broadcast %56 : vector<4x8x1xf32> to vector<4x8x8xf32>
    %58 = arith.subf %54, %57 : vector<4x8x8xf32>
    %59 = math.exp %58 : vector<4x8x8xf32>
    %cst_20 = arith.constant dense<0.000000e+00> : vector<4x8xf32>
    %60 = vector.multi_reduction <add>, %59, %cst_20 [2] : vector<4x8x8xf32> to vector<4x8xf32>
    %61 = vector.shape_cast %60 : vector<4x8xf32> to vector<4x8x1xf32>
    %62 = tpu.reciprocal %61 {approx = true} : vector<4x8x1xf32> -> vector<4x8x1xf32>
    %63 = vector.broadcast %62 : vector<4x8x1xf32> to vector<4x8x8xf32>
    %64 = arith.mulf %59, %63 : vector<4x8x8xf32>
    %65 = arith.truncf %64 : vector<4x8x8xf32> to vector<4x8x8xbf16>
    "tpu.trace_start"() <{level = 10 : i32, message = "hqk,hke->hqe"}> : () -> ()
    %cst_21 = arith.constant dense<0.000000e+00> : vector<4x8x8xf32>
    %66 = tpu.matmul %65, %53, %cst_21 {dimension_numbers = #tpu.dot_dimension_numbers<[2], [1], [1], [2], [0, 0, 0, 1, 1, 2], [0], [0]>} : vector<4x8x8xbf16>, vector<4x8x8xbf16>, vector<4x8x8xf32> -> vector<4x8x8xf32>
    "tpu.trace_stop"() : () -> ()
    %67 = tpu.transpose %66, [1, 0, 2] : vector<4x8x8xf32> -> vector<8x4x8xf32>
    %68 = vector.shape_cast %67 : vector<8x4x8xf32> to vector<8x32xf32>
    %69 = arith.truncf %68 : vector<8x32xf32> to vector<8x32xbf16>
    %c0_22 = arith.constant 0 : index
    %c0_23 = arith.constant 0 : index
    %70 = vector.load %arg5[%c0_22, %c0_23] : memref<32x32xbf16, #tpu.memory_space<vmem>>, vector<32x32xbf16>
    %cst_24 = arith.constant dense<0.000000e+00> : vector<8x32xf32>
    %71 = tpu.matmul %69, %70, %cst_24 {dimension_numbers = #tpu.dot_dimension_numbers<[1], [0], [0], [1], [0, 0, 1, 1], [], []>} : vector<8x32xbf16>, vector<32x32xbf16>, vector<8x32xf32> -> vector<8x32xf32>
    %72 = vector.shape_cast %11 : vector<32xf32> to vector<1x32xf32>
    %73 = vector.broadcast %72 : vector<1x32xf32> to vector<8x32xf32>
    %74 = arith.addf %71, %73 : vector<8x32xf32>
    %75 = arith.addf %74, %1 : vector<8x32xf32>
    %cst_25 = arith.constant dense<0.000000e+00> : vector<8xf32>
    %76 = vector.multi_reduction <add>, %75, %cst_25 [1] : vector<8x32xf32> to vector<8xf32>
    %77 = vector.shape_cast %76 : vector<8xf32> to vector<8x1xf32>
    %cst_26 = arith.constant 3.200000e+01 : f32
    %78 = vector.broadcast %cst_26 : f32 to vector<8x1xf32>
    %79 = arith.divf %77, %78 : vector<8x1xf32>
    %80 = vector.broadcast %79 : vector<8x1xf32> to vector<8x32xf32>
    %81 = arith.subf %75, %80 : vector<8x32xf32>
    %82 = arith.mulf %81, %81 : vector<8x32xf32>
    %cst_27 = arith.constant dense<0.000000e+00> : vector<8xf32>
    %83 = vector.multi_reduction <add>, %82, %cst_27 [1] : vector<8x32xf32> to vector<8xf32>
    %84 = vector.shape_cast %83 : vector<8xf32> to vector<8x1xf32>
    %cst_28 = arith.constant 3.200000e+01 : f32
    %85 = vector.broadcast %cst_28 : f32 to vector<8x1xf32>
    %86 = arith.divf %84, %85 : vector<8x1xf32>
    %87 = vector.broadcast %79 : vector<8x1xf32> to vector<8x32xf32>
    %88 = arith.subf %75, %87 : vector<8x32xf32>
    %cst_29 = arith.constant 9.99999974E-6 : f32
    %89 = vector.broadcast %cst_29 : f32 to vector<8x1xf32>
    %90 = arith.addf %86, %89 : vector<8x1xf32>
    %91 = math.rsqrt %90 : vector<8x1xf32>
    %92 = vector.broadcast %91 : vector<8x1xf32> to vector<8x32xf32>
    %93 = arith.mulf %88, %92 : vector<8x32xf32>
    %94 = vector.shape_cast %7 : vector<32xf32> to vector<1x32xf32>
    %95 = vector.broadcast %94 : vector<1x32xf32> to vector<8x32xf32>
    %96 = arith.mulf %93, %95 : vector<8x32xf32>
    %97 = vector.shape_cast %9 : vector<32xf32> to vector<1x32xf32>
    %98 = vector.broadcast %97 : vector<1x32xf32> to vector<8x32xf32>
    %99 = arith.addf %96, %98 : vector<8x32xf32>
    %100 = arith.truncf %99 : vector<8x32xf32> to vector<8x32xbf16>
    %c0_30 = arith.constant 0 : index
    %c0_31 = arith.constant 0 : index
    %101 = vector.load %arg6[%c0_30, %c0_31] : memref<32x64xbf16, #tpu.memory_space<vmem>>, vector<32x64xbf16>
    %cst_32 = arith.constant dense<0.000000e+00> : vector<8x64xf32>
    %102 = tpu.matmul %100, %101, %cst_32 {dimension_numbers = #tpu.dot_dimension_numbers<[1], [0], [0], [1], [0, 0, 1, 1], [], []>} : vector<8x32xbf16>, vector<32x64xbf16>, vector<8x64xf32> -> vector<8x64xf32>
    %c0_33 = arith.constant 0 : index
    %c0_34 = arith.constant 0 : index
    %103 = vector.load %arg7[%c0_33, %c0_34] : memref<1x64xf32, #tpu.memory_space<vmem>>, vector<1x64xf32>
    %104 = vector.shape_cast %103 : vector<1x64xf32> to vector<64xf32>
    %105 = vector.shape_cast %104 : vector<64xf32> to vector<1x64xf32>
    %106 = vector.broadcast %105 : vector<1x64xf32> to vector<8x64xf32>
    %107 = arith.addf %102, %106 : vector<8x64xf32>
    %cst_35 = arith.constant 5.000000e-01 : f32
    %108 = vector.broadcast %cst_35 : f32 to vector<8x64xf32>
    %109 = arith.mulf %108, %107 : vector<8x64xf32>
    %cst_36 = arith.constant 4.471500e-02 : f32
    %110 = vector.broadcast %cst_36 : f32 to vector<8x64xf32>
    %111 = arith.mulf %110, %107 : vector<8x64xf32>
    %112 = arith.mulf %111, %107 : vector<8x64xf32>
    %113 = arith.mulf %112, %107 : vector<8x64xf32>
    %114 = arith.addf %107, %113 : vector<8x64xf32>
    %cst_37 = arith.constant 0.797884583 : f32
    %115 = vector.broadcast %cst_37 : f32 to vector<8x64xf32>
    %116 = arith.mulf %115, %114 : vector<8x64xf32>
    %117 = math.tanh %116 : vector<8x64xf32>
    %cst_38 = arith.constant 1.000000e+00 : f32
    %118 = vector.broadcast %cst_38 : f32 to vector<8x64xf32>
    %119 = arith.addf %118, %117 : vector<8x64xf32>
    %120 = arith.mulf %109, %119 : vector<8x64xf32>
    %121 = arith.truncf %120 : vector<8x64xf32> to vector<8x64xbf16>
    %c0_39 = arith.constant 0 : index
    %c0_40 = arith.constant 0 : index
    %122 = vector.load %arg8[%c0_39, %c0_40] : memref<64x32xbf16, #tpu.memory_space<vmem>>, vector<64x32xbf16>
    %cst_41 = arith.constant dense<0.000000e+00> : vector<8x32xf32>
    %123 = tpu.matmul %121, %122, %cst_41 {dimension_numbers = #tpu.dot_dimension_numbers<[1], [0], [0], [1], [0, 0, 1, 1], [], []>} : vector<8x64xbf16>, vector<64x32xbf16>, vector<8x32xf32> -> vector<8x32xf32>
    %124 = vector.shape_cast %13 : vector<32xf32> to vector<1x32xf32>
    %125 = vector.broadcast %124 : vector<1x32xf32> to vector<8x32xf32>
    %126 = arith.addf %123, %125 : vector<8x32xf32>
    %127 = arith.addf %75, %126 : vector<8x32xf32>
    %c0_42 = arith.constant 0 : index
    %c0_43 = arith.constant 0 : index
    %c0_44 = arith.constant 0 : index
    %128 = vector.load %arg9[%c0_42, %c0_43, %c0_44] : memref<1x8x32xf32, #tpu.memory_space<vmem>>, vector<1x8x32xf32>
    %129 = vector.shape_cast %128 : vector<1x8x32xf32> to vector<8x32xf32>
    %130 = vector.shape_cast %127 : vector<8x32xf32> to vector<1x8x32xf32>
    tpu.vector_store %arg9[%c0_42, %c0_43, %c0_44], %130 {strides = array<i32>} : memref<1x8x32xf32, #tpu.memory_space<vmem>>, vector<1x8x32xf32>,
    return
  }
  func.func @transform_0(%arg0: i32) -> (i32, i32, i32) {
    %c0_i32 = arith.constant 0 : i32
    %c0_i32_0 = arith.constant 0 : i32
    %c0_i32_1 = arith.constant 0 : i32
    return %arg0, %c0_i32, %c0_i32_0 : i32, i32, i32
  }
  func.func @transform_1(%arg0: i32) -> (i32, i32) {
    %c0_i32 = arith.constant 0 : i32
    %c0_i32_0 = arith.constant 0 : i32
    %c0_i32_1 = arith.constant 0 : i32
    return %c0_i32, %c0_i32_0 : i32, i32
  }
  func.func @transform_2(%arg0: i32) -> (i32, i32) {
    %c0_i32 = arith.constant 0 : i32
    %c0_i32_0 = arith.constant 0 : i32
    %c0_i32_1 = arith.constant 0 : i32
    return %c0_i32, %c0_i32_0 : i32, i32
  }
  func.func @transform_3(%arg0: i32) -> (i32, i32) {
    %c0_i32 = arith.constant 0 : i32
    %c0_i32_0 = arith.constant 0 : i32
    %c0_i32_1 = arith.constant 0 : i32
    return %c0_i32, %c0_i32_0 : i32, i32
  }
  func.func @transform_4(%arg0: i32) -> (i32, i32) {
    %c0_i32 = arith.constant 0 : i32
    %c0_i32_0 = arith.constant 0 : i32
    %c0_i32_1 = arith.constant 0 : i32
    return %c0_i32, %c0_i32_0 : i32, i32
  }
  func.func @transform_5(%arg0: i32) -> (i32, i32) {
    %c0_i32 = arith.constant 0 : i32
    %c0_i32_0 = arith.constant 0 : i32
    %c0_i32_1 = arith.constant 0 : i32
    return %c0_i32, %c0_i32_0 : i32, i32
  }
  func.func @transform_6(%arg0: i32) -> (i32, i32) {
    %c0_i32 = arith.constant 0 : i32
    %c0_i32_0 = arith.constant 0 : i32
    %c0_i32_1 = arith.constant 0 : i32
    return %c0_i32, %c0_i32_0 : i32, i32
  }
  func.func @transform_7(%arg0: i32) -> (i32, i32) {
    %c0_i32 = arith.constant 0 : i32
    %c0_i32_0 = arith.constant 0 : i32
    %c0_i32_1 = arith.constant 0 : i32
    return %c0_i32, %c0_i32_0 : i32, i32
  }
  func.func @transform_8(%arg0: i32) -> (i32, i32, i32) {
    %c0_i32 = arith.constant 0 : i32
    %c0_i32_0 = arith.constant 0 : i32
    %c0_i32_1 = arith.constant 0 : i32
    return %arg0, %c0_i32, %c0_i32_0 : i32, i32, i32
  }
}

module attributes {stable_mosaic.version = 11 : i64} {
  func.func @vit_block_kernel(%arg0: i32, %arg1: memref<1x8x32xf32, #tpu.memory_space<vmem>>, %arg2: memref<6x32xf32, #tpu.memory_space<vmem>>, %arg3: memref<32x96xbf16, #tpu.memory_space<vmem>>, %arg4: memref<1x96xf32, #tpu.memory_space<vmem>>, %arg5: memref<32x32xbf16, #tpu.memory_space<vmem>>, %arg6: memref<32x64xbf16, #tpu.memory_space<vmem>>, %arg7: memref<1x64xf32, #tpu.memory_space<vmem>>, %arg8: memref<64x32xbf16, #tpu.memory_space<vmem>>, %arg9: memref<1x8x32xf32, #tpu.memory_space<vmem>>) attributes {dimension_semantics = [#tpu.dimension_semantics<parallel>], iteration_bounds = array<i64: 2>, scalar_prefetch = 0 : i64, scratch_operands = 0 : i64, tpu.core_type = #tpu.core_type<tc>, window_params = [{transform_indices = @transform_0, window_bounds = array<i64: 1, 8, 32>}, {pipeline_mode = #tpu.pipeline_mode<synchronous>, transform_indices = @transform_1, window_bounds = array<i64: 6, 32>}, {pipeline_mode = #tpu.pipeline_mode<synchronous>, transform_indices = @transform_2, window_bounds = array<i64: 32, 96>}, {pipeline_mode = #tpu.pipeline_mode<synchronous>, transform_indices = @transform_3, window_bounds = array<i64: 1, 96>}, {pipeline_mode = #tpu.pipeline_mode<synchronous>, transform_indices = @transform_4, window_bounds = array<i64: 32, 32>}, {pipeline_mode = #tpu.pipeline_mode<synchronous>, transform_indices = @transform_5, window_bounds = array<i64: 32, 64>}, {pipeline_mode = #tpu.pipeline_mode<synchronous>, transform_indices = @transform_6, window_bounds = array<i64: 1, 64>}, {pipeline_mode = #tpu.pipeline_mode<synchronous>, transform_indices = @transform_7, window_bounds = array<i64: 64, 32>}, {transform_indices = @transform_8, window_bounds = array<i64: 1, 8, 32>}]} {
    %c0 = arith.constant 0 : index
    %c0_0 = arith.constant 0 : index
    %c0_1 = arith.constant 0 : index
    %0 = vector.load %arg1[%c0, %c0_0, %c0_1] : memref<1x8x32xf32, #tpu.memory_space<vmem>>, vector<1x8x32xf32>
    %1 = vector.shape_cast %0 : vector<1x8x32xf32> to vector<8x32xf32>
    %c0_2 = arith.constant 0 : index
    %c0_3 = arith.constant 0 : index
    %2 = vector.load %arg2[%c0_2, %c0_3] : memref<6x32xf32, #tpu.memory_space<vmem>>, vector<1x32xf32>
    %3 = vector.shape_cast %2 : vector<1x32xf32> to vector<32xf32>
    %c1 = arith.constant 1 : index
    %c0_4 = arith.constant 0 : index
    %4 = vector.load %arg2[%c1, %c0_4] : memref<6x32xf32, #tpu.memory_space<vmem>>, vector<1x32xf32>
    %5 = vector.shape_cast %4 : vector<1x32xf32> to vector<32xf32>
    %c2 = arith.constant 2 : index
    %c0_5 = arith.constant 0 : index
    %6 = vector.load %arg2[%c2, %c0_5] : memref<6x32xf32, #tpu.memory_space<vmem>>, vector<1x32xf32>
    %7 = vector.shape_cast %6 : vector<1x32xf32> to vector<32xf32>
    %c3 = arith.constant 3 : index
    %c0_6 = arith.constant 0 : index
    %8 = vector.load %arg2[%c3, %c0_6] : memref<6x32xf32, #tpu.memory_space<vmem>>, vector<1x32xf32>
    %9 = vector.shape_cast %8 : vector<1x32xf32> to vector<32xf32>
    %c4 = arith.constant 4 : index
    %c0_7 = arith.constant 0 : index
    %10 = vector.load %arg2[%c4, %c0_7] : memref<6x32xf32, #tpu.memory_space<vmem>>, vector<1x32xf32>
    %11 = vector.shape_cast %10 : vector<1x32xf32> to vector<32xf32>
    %c5 = arith.constant 5 : index
    %c0_8 = arith.constant 0 : index
    %12 = vector.load %arg2[%c5, %c0_8] : memref<6x32xf32, #tpu.memory_space<vmem>>, vector<1x32xf32>
    %13 = vector.shape_cast %12 : vector<1x32xf32> to vector<32xf32>
    %cst = arith.constant dense<0.000000e+00> : vector<8xf32>
    %14 = vector.multi_reduction <add>, %1, %cst [1] : vector<8x32xf32> to vector<8xf32>
    %15 = vector.shape_cast %14 : vector<8xf32> to vector<8x1xf32>
    %cst_9 = arith.constant 3.200000e+01 : f32
    %16 = vector.broadcast %cst_9 : f32 to vector<8x1xf32>
    %17 = arith.divf %15, %16 : vector<8x1xf32>
    %18 = vector.broadcast %17 : vector<8x1xf32> to vector<8x32xf32>
    %19 = arith.subf %1, %18 : vector<8x32xf32>
    %20 = arith.mulf %19, %19 : vector<8x32xf32>
    %cst_10 = arith.constant dense<0.000000e+00> : vector<8xf32>
    %21 = vector.multi_reduction <add>, %20, %cst_10 [1] : vector<8x32xf32> to vector<8xf32>
    %22 = vector.shape_cast %21 : vector<8xf32> to vector<8x1xf32>
    %cst_11 = arith.constant 3.200000e+01 : f32
    %23 = vector.broadcast %cst_11 : f32 to vector<8x1xf32>
    %24 = arith.divf %22, %23 : vector<8x1xf32>
    %25 = vector.broadcast %17 : vector<8x1xf32> to vector<8x32xf32>
    %26 = arith.subf %1, %25 : vector<8x32xf32>
    %cst_12 = arith.constant 9.99999974E-6 : f32
    %27 = vector.broadcast %cst_12 : f32 to vector<8x1xf32>
    %28 = arith.addf %24, %27 : vector<8x1xf32>
    %29 = math.rsqrt %28 : vector<8x1xf32>
    %30 = vector.broadcast %29 : vector<8x1xf32> to vector<8x32xf32>
    %31 = arith.mulf %26, %30 : vector<8x32xf32>
    %32 = vector.shape_cast %3 : vector<32xf32> to vector<1x32xf32>
    %33 = vector.broadcast %32 : vector<1x32xf32> to vector<8x32xf32>
    %34 = arith.mulf %31, %33 : vector<8x32xf32>
    %35 = vector.shape_cast %5 : vector<32xf32> to vector<1x32xf32>
    %36 = vector.broadcast %35 : vector<1x32xf32> to vector<8x32xf32>
    %37 = arith.addf %34, %36 : vector<8x32xf32>
    %38 = arith.truncf %37 : vector<8x32xf32> to vector<8x32xbf16>
    %c0_13 = arith.constant 0 : index
    %c0_14 = arith.constant 0 : index
    %39 = vector.load %arg3[%c0_13, %c0_14] : memref<32x96xbf16, #tpu.memory_space<vmem>>, vector<32x96xbf16>
    %cst_15 = arith.constant dense<0.000000e+00> : vector<8x96xf32>
    %40 = tpu.matmul %38, %39, %cst_15 {dimension_numbers = #tpu.dot_dimension_numbers<[1], [0], [0], [1], [0, 0, 1, 1], [], []>} : vector<8x32xbf16>, vector<32x96xbf16>, vector<8x96xf32> -> vector<8x96xf32>
    %c0_16 = arith.constant 0 : index
    %c0_17 = arith.constant 0 : index
    %41 = vector.load %arg4[%c0_16, %c0_17] : memref<1x96xf32, #tpu.memory_space<vmem>>, vector<1x96xf32>
    %42 = vector.shape_cast %41 : vector<1x96xf32> to vector<96xf32>
    %43 = vector.shape_cast %42 : vector<96xf32> to vector<1x96xf32>
    %44 = vector.broadcast %43 : vector<1x96xf32> to vector<8x96xf32>
    %45 = arith.addf %40, %44 : vector<8x96xf32>
    %46 = vector.shape_cast %45 : vector<8x96xf32> to vector<8x12x8xf32>
    %47 = tpu.transpose %46, [1, 0, 2] : vector<8x12x8xf32> -> vector<12x8x8xf32>
    %48 = vector.extract_strided_slice %47 {offsets = [0, 0, 0], sizes = [4, 8, 8], strides = [1, 1, 1]} : vector<12x8x8xf32> to vector<4x8x8xf32>
    %49 = arith.truncf %48 : vector<4x8x8xf32> to vector<4x8x8xbf16>
    %50 = vector.extract_strided_slice %47 {offsets = [4, 0, 0], sizes = [4, 8, 8], strides = [1, 1, 1]} : vector<12x8x8xf32> to vector<4x8x8xf32>
    %51 = arith.truncf %50 : vector<4x8x8xf32> to vector<4x8x8xbf16>
    %52 = vector.extract_strided_slice %47 {offsets = [8, 0, 0], sizes = [4, 8, 8], strides = [1, 1, 1]} : vector<12x8x8xf32> to vector<4x8x8xf32>
    %53 = arith.truncf %52 : vector<4x8x8xf32> to vector<4x8x8xbf16>
    "tpu.trace_start"() <{level = 10 : i32, message = "hqe,hke->hqk"}> : () -> ()
    %cst_18 = arith.constant dense<0.000000e+00> : vector<4x8x8xf32>
    %54 = tpu.matmul %49, %51, %cst_18 {dimension_numbers = #tpu.dot_dimension_numbers<[2], [2], [1], [1], [0, 0, 0, 1, 1, 1], [0], [0]>} : vector<4x8x8xbf16>, vector<4x8x8xbf16>, vector<4x8x8xf32> -> vector<4x8x8xf32>
    "tpu.trace_stop"() : () -> ()
    %cst_19 = arith.constant dense<0xFF800000> : vector<4x8xf32>
    %55 = vector.multi_reduction <maximumf>, %54, %cst_19 [2] : vector<4x8x8xf32> to vector<4x8xf32>
    %56 = vector.shape_cast %55 : vector<4x8xf32> to vector<4x8x1xf32>
    %57 = vector.broadcast %56 : vector<4x8x1xf32> to vector<4x8x8xf32>
    %58 = arith.subf %54, %57 : vector<4x8x8xf32>
    %59 = math.exp %58 : vector<4x8x8xf32>
    %cst_20 = arith.constant dense<0.000000e+00> : vector<4x8xf32>
    %60 = vector.multi_reduction <add>, %59, %cst_20 [2] : vector<4x8x8xf32> to vector<4x8xf32>
    %61 = vector.shape_cast %60 : vector<4x8xf32> to vector<4x8x1xf32>
    %62 = tpu.reciprocal %61 {approx = true} : vector<4x8x1xf32> -> vector<4x8x1xf32>
    %63 = vector.broadcast %62 : vector<4x8x1xf32> to vector<4x8x8xf32>
    %64 = arith.mulf %59, %63 : vector<4x8x8xf32>
    %65 = arith.truncf %64 : vector<4x8x8xf32> to vector<4x8x8xbf16>
    "tpu.trace_start"() <{level = 10 : i32, message = "hqk,hke->hqe"}> : () -> ()
    %cst_21 = arith.constant dense<0.000000e+00> : vector<4x8x8xf32>
    %66 = tpu.matmul %65, %53, %cst_21 {dimension_numbers = #tpu.dot_dimension_numbers<[2], [1], [1], [2], [0, 0, 0, 1, 1, 2], [0], [0]>} : vector<4x8x8xbf16>, vector<4x8x8xbf16>, vector<4x8x8xf32> -> vector<4x8x8xf32>
    "tpu.trace_stop"() : () -> ()
    %67 = tpu.transpose %66, [1, 0, 2] : vector<4x8x8xf32> -> vector<8x4x8xf32>
    %68 = vector.shape_cast %67 : vector<8x4x8xf32> to vector<8x32xf32>
    %69 = arith.truncf %68 : vector<8x32xf32> to vector<8x32xbf16>
    %c0_22 = arith.constant 0 : index
    %c0_23 = arith.constant 0 : index
    %70 = vector.load %arg5[%c0_22, %c0_23] : memref<32x32xbf16, #tpu.memory_space<vmem>>, vector<32x32xbf16>
    %cst_24 = arith.constant dense<0.000000e+00> : vector<8x32xf32>
    %71 = tpu.matmul %69, %70, %cst_24 {dimension_numbers = #tpu.dot_dimension_numbers<[1], [0], [0], [1], [0, 0, 1, 1], [], []>} : vector<8x32xbf16>, vector<32x32xbf16>, vector<8x32xf32> -> vector<8x32xf32>
    %72 = vector.shape_cast %11 : vector<32xf32> to vector<1x32xf32>
    %73 = vector.broadcast %72 : vector<1x32xf32> to vector<8x32xf32>
    %74 = arith.addf %71, %73 : vector<8x32xf32>
    %75 = arith.addf %74, %1 : vector<8x32xf32>
    %cst_25 = arith.constant dense<0.000000e+00> : vector<8xf32>
    %76 = vector.multi_reduction <add>, %75, %cst_25 [1] : vector<8x32xf32> to vector<8xf32>
    %77 = vector.shape_cast %76 : vector<8xf32> to vector<8x1xf32>
    %cst_26 = arith.constant 3.200000e+01 : f32
    %78 = vector.broadcast %cst_26 : f32 to vector<8x1xf32>
    %79 = arith.divf %77, %78 : vector<8x1xf32>
    %80 = vector.broadcast %79 : vector<8x1xf32> to vector<8x32xf32>
    %81 = arith.subf %75, %80 : vector<8x32xf32>
    %82 = arith.mulf %81, %81 : vector<8x32xf32>
    %cst_27 = arith.constant dense<0.000000e+00> : vector<8xf32>
    %83 = vector.multi_reduction <add>, %82, %cst_27 [1] : vector<8x32xf32> to vector<8xf32>
    %84 = vector.shape_cast %83 : vector<8xf32> to vector<8x1xf32>
    %cst_28 = arith.constant 3.200000e+01 : f32
    %85 = vector.broadcast %cst_28 : f32 to vector<8x1xf32>
    %86 = arith.divf %84, %85 : vector<8x1xf32>
    %87 = vector.broadcast %79 : vector<8x1xf32> to vector<8x32xf32>
    %88 = arith.subf %75, %87 : vector<8x32xf32>
    %cst_29 = arith.constant 9.99999974E-6 : f32
    %89 = vector.broadcast %cst_29 : f32 to vector<8x1xf32>
    %90 = arith.addf %86, %89 : vector<8x1xf32>
    %91 = math.rsqrt %90 : vector<8x1xf32>
    %92 = vector.broadcast %91 : vector<8x1xf32> to vector<8x32xf32>
    %93 = arith.mulf %88, %92 : vector<8x32xf32>
    %94 = vector.shape_cast %7 : vector<32xf32> to vector<1x32xf32>
    %95 = vector.broadcast %94 : vector<1x32xf32> to vector<8x32xf32>
    %96 = arith.mulf %93, %95 : vector<8x32xf32>
    %97 = vector.shape_cast %9 : vector<32xf32> to vector<1x32xf32>
    %98 = vector.broadcast %97 : vector<1x32xf32> to vector<8x32xf32>
    %99 = arith.addf %96, %98 : vector<8x32xf32>
    %100 = arith.truncf %99 : vector<8x32xf32> to vector<8x32xbf16>
    %c0_30 = arith.constant 0 : index
    %c0_31 = arith.constant 0 : index
    %101 = vector.load %arg6[%c0_30, %c0_31] : memref<32x64xbf16, #tpu.memory_space<vmem>>, vector<32x64xbf16>
    %cst_32 = arith.constant dense<0.000000e+00> : vector<8x64xf32>
    %102 = tpu.matmul %100, %101, %cst_32 {dimension_numbers = #tpu.dot_dimension_numbers<[1], [0], [0], [1], [0, 0, 1, 1], [], []>} : vector<8x32xbf16>, vector<32x64xbf16>, vector<8x64xf32> -> vector<8x64xf32>
    %c0_33 = arith.constant 0 : index
    %c0_34 = arith.constant 0 : index
    %103 = vector.load %arg7[%c0_33, %c0_34] : memref<1x64xf32, #tpu.memory_space<vmem>>, vector<1x64xf32>
    %104 = vector.shape_cast %103 : vector<1x64xf32> to vector<64xf32>
    %105 = vector.shape_cast %104 : vector<64xf32> to vector<1x64xf32>
    %106 = vector.broadcast %105 : vector<1x64xf32> to vector<8x64xf32>
    %107 = arith.addf %102, %106 : vector<8x64xf32>
    %cst_35 = arith.constant 5.000000e-01 : f32
    %108 = vector.broadcast %cst_35 : f32 to vector<8x64xf32>
    %109 = arith.mulf %108, %107 : vector<8x64xf32>
    %cst_36 = arith.constant 4.471500e-02 : f32
    %110 = vector.broadcast %cst_36 : f32 to vector<8x64xf32>
    %111 = arith.mulf %110, %107 : vector<8x64xf32>
    %112 = arith.mulf %111, %107 : vector<8x64xf32>
    %113 = arith.mulf %112, %107 : vector<8x64xf32>
    %114 = arith.addf %107, %113 : vector<8x64xf32>
    %cst_37 = arith.constant 0.797884583 : f32
    %115 = vector.broadcast %cst_37 : f32 to vector<8x64xf32>
    %116 = arith.mulf %115, %114 : vector<8x64xf32>
    %117 = math.tanh %116 : vector<8x64xf32>
    %cst_38 = arith.constant 1.000000e+00 : f32
    %118 = vector.broadcast %cst_38 : f32 to vector<8x64xf32>
    %119 = arith.addf %118, %117 : vector<8x64xf32>
    %120 = arith.mulf %109, %119 : vector<8x64xf32>
    %121 = arith.truncf %120 : vector<8x64xf32> to vector<8x64xbf16>
    %c0_39 = arith.constant 0 : index
    %c0_40 = arith.constant 0 : index
    %122 = vector.load %arg8[%c0_39, %c0_40] : memref<64x32xbf16, #tpu.memory_space<vmem>>, vector<64x32xbf16>
    %cst_41 = arith.constant dense<0.000000e+00> : vector<8x32xf32>
    %123 = tpu.matmul %121, %122, %cst_41 {dimension_numbers = #tpu.dot_dimension_numbers<[1], [0], [0], [1], [0, 0, 1, 1], [], []>} : vector<8x64xbf16>, vector<64x32xbf16>, vector<8x32xf32> -> vector<8x32xf32>
    %124 = vector.shape_cast %13 : vector<32xf32> to vector<1x32xf32>
    %125 = vector.broadcast %124 : vector<1x32xf32> to vector<8x32xf32>
    %126 = arith.addf %123, %125 : vector<8x32xf32>
    %127 = arith.addf %75, %126 : vector<8x32xf32>
    %c0_42 = arith.constant 0 : index
    %c0_43 = arith.constant 0 : index
    %c0_44 = arith.constant 0 : index
    %128 = vector.load %arg9[%c0_42, %c0_43, %c0_44] : memref<1x8x32xf32, #tpu.memory_space<vmem>>, vector<1x8x32xf32>
    %129 = vector.shape_cast %128 : vector<1x8x32xf32> to vector<8x32xf32>
    %130 = vector.shape_cast %127 : vector<8x32xf32> to vector<1x8x32xf32>
    tpu.vector_store %arg9[%c0_42, %c0_43, %c0_44], %130 {strides = array<i32>} : memref<1x8x32xf32, #tpu.memory_space<vmem>>, vector<1x8x32xf32>,
    return
  }
  func.func @transform_0(%arg0: i32) -> (i32, i32, i32) {
    %c0_i32 = arith.constant 0 : i32
    %c0_i32_0 = arith.constant 0 : i32
    %c0_i32_1 = arith.constant 0 : i32
    return %arg0, %c0_i32, %c0_i32_0 : i32, i32, i32
  }
  func.func @transform_1(%arg0: i32) -> (i32, i32) {
    %c0_i32 = arith.constant 0 : i32
    %c0_i32_0 = arith.constant 0 : i32
    %c0_i32_1 = arith.constant 0 : i32
    return %c0_i32, %c0_i32_0 : i32, i32
  }
  func.func @transform_2(%arg0: i32) -> (i32, i32) {
    %c0_i32 = arith.constant 0 : i32
    %c0_i32_0 = arith.constant 0 : i32
    %c0_i32_1 = arith.constant 0 : i32
    return %c0_i32, %c0_i32_0 : i32, i32
  }
  func.func @transform_3(%arg0: i32) -> (i32, i32) {
    %c0_i32 = arith.constant 0 : i32
    %c0_i32_0 = arith.constant 0 : i32
    %c0_i32_1 = arith.constant 0 : i32
    return %c0_i32, %c0_i32_0 : i32, i32
  }
  func.func @transform_4(%arg0: i32) -> (i32, i32) {
    %c0_i32 = arith.constant 0 : i32
    %c0_i32_0 = arith.constant 0 : i32
    %c0_i32_1 = arith.constant 0 : i32
    return %c0_i32, %c0_i32_0 : i32, i32
  }
  func.func @transform_5(%arg0: i32) -> (i32, i32) {
    %c0_i32 = arith.constant 0 : i32
    %c0_i32_0 = arith.constant 0 : i32
    %c0_i32_1 = arith.constant 0 : i32
    return %c0_i32, %c0_i32_0 : i32, i32
  }
  func.func @transform_6(%arg0: i32) -> (i32, i32) {
    %c0_i32 = arith.constant 0 : i32
    %c0_i32_0 = arith.constant 0 : i32
    %c0_i32_1 = arith.constant 0 : i32
    return %c0_i32, %c0_i32_0 : i32, i32
  }
  func.func @transform_7(%arg0: i32) -> (i32, i32) {
    %c0_i32 = arith.constant 0 : i32
    %c0_i32_0 = arith.constant 0 : i32
    %c0_i32_1 = arith.constant 0 : i32
    return %c0_i32, %c0_i32_0 : i32, i32
  }
  func.func @transform_8(%arg0: i32) -> (i32, i32, i32) {
    %c0_i32 = arith.constant 0 : i32
    %c0_i32_0 = arith.constant 0 : i32
    %c0_i32_1 = arith.constant 0 : i32
    return %arg0, %c0_i32, %c0_i32_0 : i32, i32, i32
  }
}

</mosaic_0001>

<llo_original>
// kernel: tpu_custom_call.1
$region0: #{tpu_custom_call.1}
  #allocation0 [shape = 'u32[]', space=smem, size = 0x4, offset = 0x4, fixed_abs, tag = 'smem constant byte address 0x4 - core index']
  #allocation1 [shape = 'u32[144,128]{1,0:T(1,128)}', space=vmem, size = 0x12000, scoped, tag = 'internal scratch']
  %s0 = inlined_call_operand.vmem [shape: f32[2,8,32], index: 0, kind: input, shape index: {}]
  %s1 = inlined_call_operand.hbm [shape: f32[6,32], index: 1, kind: input, shape index: {}]
  %s2 = inlined_call_operand.vmem [shape: bf16[32,96], index: 2, kind: input, shape index: {}]
  %s3 = inlined_call_operand.vmem [shape: f32[1,96], index: 3, kind: input, shape index: {}]
  %s4 = inlined_call_operand.vmem [shape: bf16[32,32], index: 4, kind: input, shape index: {}]
  %s5 = inlined_call_operand.hbm [shape: bf16[32,64], index: 5, kind: input, shape index: {}]
  %s6 = inlined_call_operand.vmem [shape: f32[1,64], index: 6, kind: input, shape index: {}]
  %s7 = inlined_call_operand.vmem [shape: bf16[64,32], index: 7, kind: input, shape index: {}]
  %s8 = inlined_call_operand.hbm [shape: f32[2,8,32], index: 8, kind: output, shape index: {}]
  %s9 = sld [smem:[#allocation0]]
  $region73: #{tpu_custom_call.1} parent=0
    _
  %s11 = ssub.s32 1, %s9
  %s12 = scalar_select 0, %s11, %s9
  $region1: #{tpu_custom_call.1} parent=0
    #allocation2 [shape = 'u8[4096]{0}', space=vmem, size = 0x1000, scoped, tag = 'input window, operand 1, single buffered']
    #allocation3 [shape = 's32[2]{0}', space=sflag, size = 0x8, scoped, tag = 'scoped memory for tpu_custom_call.1']
    #allocation4 [shape = 's32[2]{0}', space=sflag, size = 0x8, scoped, tag = 'scoped memory for tpu_custom_call.1']
    #allocation5 [shape = 'u8[8192]{0}', space=vmem, size = 0x2000, scoped, tag = 'input window, operand 5, single buffered']
    #allocation6 [shape = 's32[1]{0}', space=sflag, size = 0x4, scoped, tag = 'scoped memory for tpu_custom_call.1']
    #allocation7 [shape = 'u8[8192]{0}', space=vmem, size = 0x2000, scoped, tag = 'output window, operand 0']
    %13 = vsyncpa [#allocation3], 0
    %14 = vsyncpa [#allocation6], 0
    %15 = vsyncpa [#allocation4], 0
    %s16 = scalar_lea.sflag [#allocation4], 1
    %17 = vsyncpa %s16, 0
    loop: start=0, step=1, limit=4
    $region2: #{tpu_custom_call.1} parent=1 // loop_pre_header
      _
    $region3: #{tpu_custom_call.1} parent=1 // loop_header
      %s19 = sphi 0, %s23
      %p20 = scmp.ge.s32.totalorder %s19, 4
      %s29 = sphi 0, %s31
      %s32 = sphi 0, %s29
      %s33 = sphi 0, %s32
      %s49 = sphi 0, %s33
      %s53 = sphi 0, %s53
      %s55 = sphi 0, %s53
      %s56 = sphi 0, %s55
      %s70 = sphi 0, %s56
      %s74 = sphi 0, %s74
      %s76 = sphi 0, %s74
      %s77 = sphi 0, %s76
      %s91 = sphi 0, %s77
      %s95 = sphi 0, %s95
      %s97 = sphi 0, %s95
      %s98 = sphi 0, %s97
      %s112 = sphi 0, %s98
      %s116 = sphi 0, %s116
      %s118 = sphi 0, %s116
      %s119 = sphi 0, %s118
      %s133 = sphi 0, %s119
      %s137 = sphi 0, %s137
      %s139 = sphi 0, %s137
      %s140 = sphi 0, %s139
      %s154 = sphi 0, %s140
      %s158 = sphi 0, %s158
      %s160 = sphi 0, %s158
      %s161 = sphi 0, %s160
      %s175 = sphi 0, %s161
      %s179 = sphi 0, %s179
      %s181 = sphi 0, %s179
      %s182 = sphi 0, %s181
      %s196 = sphi 0, %s182
      %s202 = sphi 0, %s204
      %s205 = sphi 0, %s202
      %s206 = sphi 0, %s205
      %s222 = sphi 0, %s206
    $region4: #{tpu_custom_call.1} parent=1 // loop_header_branch
      %22 = sbr.rel (%p20) target = $region8
    $region5: #{tpu_custom_call.1} parent=1 // loop_body
      %s24 = ssub.s32 %s19, 1
      %s25 = ssub.s32 %s19, 2
      %s26 = sadd.s32 %s19, 1
      %s27 = ssub.s32 %s19, %s26
      %p28 = scmp.eq.s32.totalorder %s27, 0
      %s30 = sadd.s32 %s29, 1
      %s31 = scalar_select %p28, %s29, %s30
      %p34 = pneg %p28
      %p35 = scmp.eq.s32.totalorder %s19, 1
      %p36 = por %p34, %p35
      %p37 = scmp.ne.s32.totalorder %s29, %s32
      %p38 = scmp.eq.s32.totalorder %s19, 0
      %p39 = por %p37, %p38
      %p40 = scmp.ne.s32.totalorder %s29, %s32
      %p41 = scmp.eq.s32.totalorder %s24, 1
      %p42 = por %p40, %p41
      %p43 = scmp.ne.s32.totalorder %s32, %s33
      %p44 = scmp.eq.s32.totalorder %s24, 0
      %p45 = por %p43, %p44
      %p46 = scmp.ne.s32.totalorder %s32, %s33
      %p47 = scmp.eq.s32.totalorder %s25, 1
      %p48 = por %p46, %p47
      %p50 = scmp.ne.s32.totalorder %s33, %s49
      %p51 = scmp.eq.s32.totalorder %s25, 0
      %p52 = por %p50, %p51
      %s54 = sadd.s32 %s53, 1
      %p57 = scmp.eq.s32.totalorder %s19, 1
      %p58 = scmp.ne.s32.totalorder %s53, %s55
      %p59 = scmp.eq.s32.totalorder %s19, 0
      %p60 = por %p58, %p59
      %p61 = scmp.ne.s32.totalorder %s53, %s55
      %p62 = scmp.eq.s32.totalorder %s24, 1
      %p63 = por %p61, %p62
      %p64 = scmp.ne.s32.totalorder %s55, %s56
      %p65 = scmp.eq.s32.totalorder %s24, 0
      %p66 = por %p64, %p65
      %p67 = scmp.ne.s32.totalorder %s55, %s56
      %p68 = scmp.eq.s32.totalorder %s25, 1
      %p69 = por %p67, %p68
      %p71 = scmp.ne.s32.totalorder %s56, %s70
      %p72 = scmp.eq.s32.totalorder %s25, 0
      %p73 = por %p71, %p72
      %s75 = sadd.s32 %s74, 1
      %p78 = scmp.eq.s32.totalorder %s19, 1
      %p79 = scmp.ne.s32.totalorder %s74, %s76
      %p80 = scmp.eq.s32.totalorder %s19, 0
      %p81 = por %p79, %p80
      %p82 = scmp.ne.s32.totalorder %s74, %s76
      %p83 = scmp.eq.s32.totalorder %s24, 1
      %p84 = por %p82, %p83
      %p85 = scmp.ne.s32.totalorder %s76, %s77
      %p86 = scmp.eq.s32.totalorder %s24, 0
      %p87 = por %p85, %p86
      %p88 = scmp.ne.s32.totalorder %s76, %s77
      %p89 = scmp.eq.s32.totalorder %s25, 1
      %p90 = por %p88, %p89
      %p92 = scmp.ne.s32.totalorder %s77, %s91
      %p93 = scmp.eq.s32.totalorder %s25, 0
      %p94 = por %p92, %p93
      %s96 = sadd.s32 %s95, 1
      %p99 = scmp.eq.s32.totalorder %s19, 1
      %p100 = scmp.ne.s32.totalorder %s95, %s97
      %p101 = scmp.eq.s32.totalorder %s19, 0
      %p102 = por %p100, %p101
      %p103 = scmp.ne.s32.totalorder %s95, %s97
      %p104 = scmp.eq.s32.totalorder %s24, 1
      %p105 = por %p103, %p104
      %p106 = scmp.ne.s32.totalorder %s97, %s98
      %p107 = scmp.eq.s32.totalorder %s24, 0
      %p108 = por %p106, %p107
      %p109 = scmp.ne.s32.totalorder %s97, %s98
      %p110 = scmp.eq.s32.totalorder %s25, 1
      %p111 = por %p109, %p110
      %p113 = scmp.ne.s32.totalorder %s98, %s112
      %p114 = scmp.eq.s32.totalorder %s25, 0
      %p115 = por %p113, %p114
      %s117 = sadd.s32 %s116, 1
      %p120 = scmp.eq.s32.totalorder %s19, 1
      %p121 = scmp.ne.s32.totalorder %s116, %s118
      %p122 = scmp.eq.s32.totalorder %s19, 0
      %p123 = por %p121, %p122
      %p124 = scmp.ne.s32.totalorder %s116, %s118
      %p125 = scmp.eq.s32.totalorder %s24, 1
      %p126 = por %p124, %p125
      %p127 = scmp.ne.s32.totalorder %s118, %s119
      %p128 = scmp.eq.s32.totalorder %s24, 0
      %p129 = por %p127, %p128
      %p130 = scmp.ne.s32.totalorder %s118, %s119
      %p131 = scmp.eq.s32.totalorder %s25, 1
      %p132 = por %p130, %p131
      %p134 = scmp.ne.s32.totalorder %s119, %s133
      %p135 = scmp.eq.s32.totalorder %s25, 0
      %p136 = por %p134, %p135
      %s138 = sadd.s32 %s137, 1
      %p141 = scmp.eq.s32.totalorder %s19, 1
      %p142 = scmp.ne.s32.totalorder %s137, %s139
      %p143 = scmp.eq.s32.totalorder %s19, 0
      %p144 = por %p142, %p143
      %p145 = scmp.ne.s32.totalorder %s137, %s139
      %p146 = scmp.eq.s32.totalorder %s24, 1
      %p147 = por %p145, %p146
      %p148 = scmp.ne.s32.totalorder %s139, %s140
      %p149 = scmp.eq.s32.totalorder %s24, 0
      %p150 = por %p148, %p149
      %p151 = scmp.ne.s32.totalorder %s139, %s140
      %p152 = scmp.eq.s32.totalorder %s25, 1
      %p153 = por %p151, %p152
      %p155 = scmp.ne.s32.totalorder %s140, %s154
      %p156 = scmp.eq.s32.totalorder %s25, 0
      %p157 = por %p155, %p156
      %s159 = sadd.s32 %s158, 1
      %p162 = scmp.eq.s32.totalorder %s19, 1
      %p163 = scmp.ne.s32.totalorder %s158, %s160
      %p164 = scmp.eq.s32.totalorder %s19, 0
      %p165 = por %p163, %p164
      %p166 = scmp.ne.s32.totalorder %s158, %s160
      %p167 = scmp.eq.s32.totalorder %s24, 1
      %p168 = por %p166, %p167
      %p169 = scmp.ne.s32.totalorder %s160, %s161
      %p170 = scmp.eq.s32.totalorder %s24, 0
      %p171 = por %p169, %p170
      %p172 = scmp.ne.s32.totalorder %s160, %s161
      %p173 = scmp.eq.s32.totalorder %s25, 1
      %p174 = por %p172, %p173
      %p176 = scmp.ne.s32.totalorder %s161, %s175
      %p177 = scmp.eq.s32.totalorder %s25, 0
      %p178 = por %p176, %p177
      %s180 = sadd.s32 %s179, 1
      %p183 = scmp.eq.s32.totalorder %s19, 1
      %p184 = scmp.ne.s32.totalorder %s179, %s181
      %p185 = scmp.eq.s32.totalorder %s19, 0
      %p186 = por %p184, %p185
      %p187 = scmp.ne.s32.totalorder %s179, %s181
      %p188 = scmp.eq.s32.totalorder %s24, 1
      %p189 = por %p187, %p188
      %p190 = scmp.ne.s32.totalorder %s181, %s182
      %p191 = scmp.eq.s32.totalorder %s24, 0
      %p192 = por %p190, %p191
      %p193 = scmp.ne.s32.totalorder %s181, %s182
      %p194 = scmp.eq.s32.totalorder %s25, 1
      %p195 = por %p193, %p194
      %p197 = scmp.ne.s32.totalorder %s182, %s196
      %p198 = scmp.eq.s32.totalorder %s25, 0
      %p199 = por %p197, %p198
      %s200 = ssub.s32 %s19, %s26
      %p201 = scmp.eq.s32.totalorder %s200, 0
      %s203 = sadd.s32 %s202, 1
      %s204 = scalar_select %p201, %s202, %s203
      %p207 = pneg %p201
      %p208 = scmp.eq.s32.totalorder %s19, 1
      %p209 = por %p207, %p208
      %p210 = scmp.ne.s32.totalorder %s202, %s205
      %p211 = scmp.eq.s32.totalorder %s19, 0
      %p212 = por %p210, %p211
      %p213 = scmp.ne.s32.totalorder %s202, %s205
      %p214 = scmp.eq.s32.totalorder %s24, 1
      %p215 = por %p213, %p214
      %p216 = scmp.ne.s32.totalorder %s205, %s206
      %p217 = scmp.eq.s32.totalorder %s24, 0
      %p218 = por %p216, %p217
      %p219 = scmp.ne.s32.totalorder %s205, %s206
      %p220 = scmp.eq.s32.totalorder %s25, 1
      %p221 = por %p219, %p220
      %p223 = scmp.ne.s32.totalorder %s206, %s222
      %p224 = scmp.eq.s32.totalorder %s25, 0
      %p225 = por %p223, %p224
      %p226 = scmp.le.s32.totalorder 1, %s19
      %p227 = scmp.lt.s32.totalorder %s19, 3
      %p228 = pnand %p226, %p227
      %p229 = pneg %p228
      // Predicated region
      $region9: #{tpu_custom_call.1} parent=5 // pred_check
        _
      $region10: #{tpu_custom_call.1} parent=5 // pred_check_branch
        %231 = sbr.rel (%p228) target = $region12
      $region11: #{tpu_custom_call.1} parent=5 // pred_region
        %s232 = ssub.s32 %s19, 1
        // Predicated region
        $region13: #{tpu_custom_call.1} parent=11 // pred_check
          %p233 = pneg %p66
        $region14: #{tpu_custom_call.1} parent=11 // pred_check_branch
          %235 = sbr.rel (%p233) target = $region16
        $region15: #{tpu_custom_call.1} parent=11 // pred_region
          %s237 = ssub.s32 128, 128
          %238 = vsyncadd [#allocation3], %s237
          %s240 = sshll.u32 [#allocation2], 4
          %s241 = int_to_ptr.vmem [resolvable:$true] %s240
          %243 = dma.hbm_to_vmem [thread:$0]  %s1, 128, %s241, [#allocation3]
        $region16: #{tpu_custom_call.1} parent=11 // pred_fallthru
          _
        // Predicated region
        $region17: #{tpu_custom_call.1} parent=11 // pred_check
          %p244 = pneg %p87
        $region18: #{tpu_custom_call.1} parent=11 // pred_check_branch
          %246 = sbr.rel (%p244) target = $region20
        $region19: #{tpu_custom_call.1} parent=11 // pred_region
          _
        $region20: #{tpu_custom_call.1} parent=11 // pred_fallthru
          _
        // Predicated region
        $region21: #{tpu_custom_call.1} parent=11 // pred_check
          %p247 = pneg %p108
        $region22: #{tpu_custom_call.1} parent=11 // pred_check_branch
          %249 = sbr.rel (%p247) target = $region24
        $region23: #{tpu_custom_call.1} parent=11 // pred_region
          _
        $region24: #{tpu_custom_call.1} parent=11 // pred_fallthru
          _
        // Predicated region
        $region25: #{tpu_custom_call.1} parent=11 // pred_check
          %p250 = pneg %p129
        $region26: #{tpu_custom_call.1} parent=11 // pred_check_branch
          %252 = sbr.rel (%p250) target = $region28
        $region27: #{tpu_custom_call.1} parent=11 // pred_region
          _
        $region28: #{tpu_custom_call.1} parent=11 // pred_fallthru
          _
        // Predicated region
        $region29: #{tpu_custom_call.1} parent=11 // pred_check
          %p253 = pneg %p150
        $region30: #{tpu_custom_call.1} parent=11 // pred_check_branch
          %255 = sbr.rel (%p253) target = $region32
        $region31: #{tpu_custom_call.1} parent=11 // pred_region
          %s257 = ssub.s32 256, 256
          %258 = vsyncadd [#allocation6], %s257
          %s259 = sshll.u32 [#allocation5], 4
          %s260 = int_to_ptr.vmem [resolvable:$true] %s259
          %265 = dma.hbm_to_vmem [thread:$0]  %s5, 256, %s260, [#allocation6], 64, 64, 4
        $region32: #{tpu_custom_call.1} parent=11 // pred_fallthru
          _
        // Predicated region
        $region33: #{tpu_custom_call.1} parent=11 // pred_check
          %p266 = pneg %p171
        $region34: #{tpu_custom_call.1} parent=11 // pred_check_branch
          %268 = sbr.rel (%p266) target = $region36
        $region35: #{tpu_custom_call.1} parent=11 // pred_region
          _
        $region36: #{tpu_custom_call.1} parent=11 // pred_fallthru
          _
        // Predicated region
        $region37: #{tpu_custom_call.1} parent=11 // pred_check
          %p269 = pneg %p192
        $region38: #{tpu_custom_call.1} parent=11 // pred_check_branch
          %271 = sbr.rel (%p269) target = $region40
        $region39: #{tpu_custom_call.1} parent=11 // pred_region
          _
        $region40: #{tpu_custom_call.1} parent=11 // pred_fallthru
          _
      $region12: #{tpu_custom_call.1} parent=5 // pred_fallthru
        _
      %p272 = scmp.lt.s32.totalorder %s19, 2
      // Predicated region
      $region41: #{tpu_custom_call.1} parent=5 // pred_check
        %p273 = pneg %p272
      $region42: #{tpu_custom_call.1} parent=5 // pred_check_branch
        %275 = sbr.rel (%p273) target = $region44
      $region43: #{tpu_custom_call.1} parent=5 // pred_region
        // Predicated region
        $region45: #{tpu_custom_call.1} parent=43 // pred_check
          %p276 = pneg %p39
        $region46: #{tpu_custom_call.1} parent=43 // pred_check_branch
          %278 = sbr.rel (%p276) target = $region48
        $region47: #{tpu_custom_call.1} parent=43 // pred_region
          %p279 = scmp.lt.s32.totalorder %s19, 1
          %s280 = scalar_select %p279, %s19, 1
          %s281 = smul.addr %s280, 8
          %s282 = scalar_lea.vmem %s0, %s281
        $region48: #{tpu_custom_call.1} parent=43 // pred_fallthru
          _
      $region44: #{tpu_custom_call.1} parent=5 // pred_fallthru
        _
      %p283 = scmp.le.s32.totalorder 1, %s19
      %p284 = scmp.lt.s32.totalorder %s19, 3
      %p285 = pnand %p283, %p284
      %p286 = pneg %p285
      // Predicated region
      $region49: #{tpu_custom_call.1} parent=5 // pred_check
        _
      $region50: #{tpu_custom_call.1} parent=5 // pred_check_branch
        %288 = sbr.rel (%p285) target = $region52
      $region51: #{tpu_custom_call.1} parent=5 // pred_region
        %s289 = ssub.s32 %s19, 1
        // Predicated region
        $region53: #{tpu_custom_call.1} parent=51 // pred_check
          %p290 = pneg %p66
        $region54: #{tpu_custom_call.1} parent=51 // pred_check_branch
          %292 = sbr.rel (%p290) target = $region56
        $region55: #{tpu_custom_call.1} parent=51 // pred_region
          %293 = dma.done [#allocation3], 128
        $region56: #{tpu_custom_call.1} parent=51 // pred_fallthru
          _
        // Predicated region
        $region57: #{tpu_custom_call.1} parent=51 // pred_check
          %p294 = pneg %p150
        $region58: #{tpu_custom_call.1} parent=51 // pred_check_branch
          %296 = sbr.rel (%p294) target = $region60
        $region59: #{tpu_custom_call.1} parent=51 // pred_region
          %297 = dma.done [#allocation6], 256
        $region60: #{tpu_custom_call.1} parent=51 // pred_fallthru
          _
        %p298 = scmp.lt.s32.totalorder %s24, 1
        %s299 = scalar_select %p298, %s24, 1
        %s300 = smul.addr %s299, 8
        %s301 = scalar_lea.vmem %s0, %s300
        %p302 = pneg %p45
        %p303 = pneg %p42
        %p304 = pneg %p66
        %p305 = pneg %p63
        %p306 = pneg %p87
        %p307 = pneg %p84
        %p308 = pneg %p108
        %p309 = pneg %p105
        %p310 = pneg %p129
        %p311 = pneg %p126
        %p312 = pneg %p150
        %p313 = pneg %p147
        %p314 = pneg %p171
        %p315 = pneg %p168
        %p316 = pneg %p192
        %p317 = pneg %p189
        %p318 = pneg %p218
        %p319 = pneg %p215
        %s320 = sand.u32 %s205, 1
        %s321 = scalar_lea.sflag [#allocation4], %s320
        %s322 = sand.u32 %s205, 1
        %s323 = smul.addr %s322, 8
        %s324 = scalar_lea.vmem [#allocation7], %s323
        %p325 = scmp.lt.s32.totalorder %s24, 1
        %s326 = scalar_select %p325, %s24, 1
        %s327 = smul.addr %s326, 8
        %s328 = scalar_lea.vmem %s0, %s327
        %v330 = vld [vmem:[%s328] sm:$0xff]
        %v331 = vld [vmem:[#allocation2] sm:$0x1]
        %v332 = vld [vmem:[#allocation2 + $0x1] sm:$0x1]
        %v333 = vld [vmem:[#allocation2 + $0x2] sm:$0x1]
        %v334 = vld [vmem:[#allocation2 + $0x3] sm:$0x1]
        %v335 = vld [vmem:[#allocation2 + $0x4] sm:$0x1]
        %v336 = vld [vmem:[#allocation2 + $0x5] sm:$0x1]
        %vm337 = vcmask 261120
        %v338 = vsel %vm337, %v330, 0.0
        %339 = vadd.xlane.f32.xlu0 %v338
        %v340 = vpop.xlane.xlu0 %339
        %v341 = vrcp.pop 32.0
        %v342 = vmul.f32 %v340, %v341
        %v343 = vsub.f32 %v330, %v342
        %v344 = vmul.f32 %v343, %v343
        %v345 = vsel %vm337, %v344, 0.0
        %346 = vadd.xlane.f32.xlu0 %v345
        %v347 = vpop.xlane.xlu0 %346
        %v348 = vmul.f32 %v347, %v341
        %v349 = vadd.f32 %v348, 1e-05
        %v350 = vrsqrt.pop %v349
        %v351 = vmul.f32 %v343, %v350
        %v352 = vlaneseq
        %v353 = vshrl.u32 %v352, 7
        %v354 = vsub.s32 0, %v353
        %v355 = vrot.slane %v331, %v354
        %v356 = vmul.f32 %v351, %v355
        %v357 = vlaneseq
        %v358 = vshrl.u32 %v357, 7
        %v359 = vsub.s32 0, %v358
        %v360 = vrot.slane %v332, %v359
        %v361 = vadd.f32 %v356, %v360
        %v362 = vpack.c.bf16 %v361, %v361
        %v363 = vld [vmem:[%s2] sm:$0xf]
        %v364 = vld [vmem:[%s2 + $0x4] sm:$0xf]
        %v365 = vld [vmem:[%s2 + $0x8] sm:$0xf]
        %v366 = vld [vmem:[%s2 + $0xc] sm:$0xf]
        %v367 = vld [vmem:[%s3] sm:$0x1]
        %v369 = vlaneseq
        %v370 = vshrl.u32 %v369, 7
        %v371 = vsub.s32 0, %v370
        %v372 = vrot.slane %v367, %v371
        %v378 = vunpack.c.l.b16 %v363
        %v379 = vunpack.c.l.b16 %v364
        %v380 = vunpack.c.l.b16 %v365
        %v381 = vunpack.c.l.b16 %v366
        %v382 = vpack.c.b16 %v379, %v378
        %v383 = vpack.c.b16 %v381, %v380
        %v387 = vsel %vm337, %v362, 0
        %389 = vmatprep.subr.bf16.mxu0 0
        %390 = vmatpush1.bf16.msra.mxu0 %v382
        %391 = vmatprep.subr.bf16.mxu0 0
        %392 = vmatpush1.bf16.msra.mxu0 %v383
        %393 = vmatprep.subr.bf16.mxu0 0
        %394 = vmatpush1.bf16.msra.mxu0 0
        %395 = vmatprep.subr.bf16.mxu0 0
        %396 = vmatpush1.bf16.msra.mxu0 0
        %397 = vmatprep.subr.bf16.mxu0 0
        %398 = vmatpush1.bf16.msra.mxu0 0
        %399 = vmatprep.subr.bf16.mxu0 0
        %400 = vmatpush1.bf16.msra.mxu0 0
        %401 = vmatprep.subr.bf16.mxu0 0
        %402 = vmatpush1.bf16.msra.mxu0 0
        %403 = vmatprep.subr.bf16.mxu0 0
        %404 = vmatpush1.bf16.msra.mxu0 0
        %405 = vmatprep.subr.bf16.mxu0 0
        %406 = vmatpush1.bf16.msra.mxu0 0
        %407 = vmatprep.subr.bf16.mxu0 0
        %408 = vmatpush1.bf16.msra.mxu0 0
        %409 = vmatprep.subr.bf16.mxu0 0
        %410 = vmatpush1.bf16.msra.mxu0 0
        %411 = vmatprep.subr.bf16.mxu0 0
        %412 = vmatpush1.bf16.msra.mxu0 0
        %413 = vmatprep.subr.bf16.mxu0 0
        %414 = vmatpush1.bf16.msra.mxu0 0
        %415 = vmatprep.subr.bf16.mxu0 0
        %416 = vmatpush1.bf16.msra.mxu0 0
        %417 = vmatprep.subr.bf16.mxu0 0
        %418 = vmatpush1.bf16.msra.mxu0 0
        %419 = vmatprep.subr.bf16.mxu0 0
        %420 = vmatpush1.bf16.msra.mxu0 0
        %421 = vmatprep.mubr.bf16.mxu0 0
        %422 = vmatmul.mubr.bf16.gmra.mrb[0].mxu0 %v387
        %v423 = vpop.f32.mrb[0].mxu0
        %v424 = vadd.f32 %v372, %v423
        %v425 = vpop.f32.mrb[0].mxu0
        %v426 = vpop.f32.mrb[0].mxu0
        %v427 = vpop.f32.mrb[0].mxu0
        %428 = vdwg.mxu0
        %430 = vrot.lane.b32.xlu0 %v424, 120
        %v431 = vpop.permute.xlu0 %430
        %433 = vrot.lane.b32.xlu0 %v424, 112
        %v434 = vpop.permute.xlu0 %433
        %436 = vrot.lane.b32.xlu0 %v424, 104
        %v437 = vpop.permute.xlu0 %436
        %439 = vrot.lane.b32.xlu0 %v424, 96
        %v440 = vpop.permute.xlu0 %439
        %442 = vrot.lane.b32.xlu0 %v424, 88
        %v443 = vpop.permute.xlu0 %442
        %445 = vrot.lane.b32.xlu0 %v424, 80
        %v446 = vpop.permute.xlu0 %445
        %448 = vrot.lane.b32.xlu0 %v424, 72
        %v449 = vpop.permute.xlu0 %448
        %451 = vrot.lane.b32.xlu0 %v424, 64
        %v452 = vpop.permute.xlu0 %451
        %454 = vrot.lane.b32.xlu0 %v424, 56
        %v455 = vpop.permute.xlu0 %454
        %457 = vrot.lane.b32.xlu0 %v424, 48
        %v458 = vpop.permute.xlu0 %457
        %460 = vrot.lane.b32.xlu0 %v424, 40
        %v461 = vpop.permute.xlu0 %460
        %v463 = vcombine.low %v424, %v434
        %v464 = vcombine.high %v424, %v434
        %v466 = vunpack.c.l.s4 1983009808
        %v467 = vunpack.c.0.s8 %v466
        %v468 = vlaneseq
        %v469 = vshrl.u32 %v468, 7
        %v470 = vsub.s32 %v467, %v469
        %v471 = vrot.slane %v463, %v470
        %v473 = vunpack.c.l.s4 1983009808
        %v474 = vunpack.c.0.s8 %v473
        %v475 = vlaneseq
        %v476 = vshrl.u32 %v475, 7
        %v477 = vsub.s32 %v474, %v476
        %v478 = vrot.slane %v464, %v477
        %v479 = vcombine.low %v431, %v437
        %v480 = vcombine.high %v431, %v437
        %v482 = vunpack.c.l.s4 1983009808
        %v483 = vunpack.c.0.s8 %v482
        %v484 = vlaneseq
        %v485 = vshrl.u32 %v484, 7
        %v486 = vsub.s32 %v483, %v485
        %v487 = vrot.slane %v479, %v486
        %v489 = vunpack.c.l.s4 1983009808
        %v490 = vunpack.c.0.s8 %v489
        %v491 = vlaneseq
        %v492 = vshrl.u32 %v491, 7
        %v493 = vsub.s32 %v490, %v492
        %v494 = vrot.slane %v480, %v493
        %v495 = vcombine.low %v440, %v446
        %v496 = vcombine.high %v440, %v446
        %v498 = vunpack.c.l.s4 1983009808
        %v499 = vunpack.c.0.s8 %v498
        %v500 = vlaneseq
        %v501 = vshrl.u32 %v500, 7
        %v502 = vsub.s32 %v499, %v501
        %v503 = vrot.slane %v495, %v502
        %v505 = vunpack.c.l.s4 1983009808
        %v506 = vunpack.c.0.s8 %v505
        %v507 = vlaneseq
        %v508 = vshrl.u32 %v507, 7
        %v509 = vsub.s32 %v506, %v508
        %v510 = vrot.slane %v496, %v509
        %v511 = vcombine.low %v443, %v449
        %v512 = vcombine.high %v443, %v449
        %v514 = vunpack.c.l.s4 1983009808
        %v515 = vunpack.c.0.s8 %v514
        %v516 = vlaneseq
        %v517 = vshrl.u32 %v516, 7
        %v518 = vsub.s32 %v515, %v517
        %v519 = vrot.slane %v511, %v518
        %v521 = vunpack.c.l.s4 1983009808
        %v522 = vunpack.c.0.s8 %v521
        %v523 = vlaneseq
        %v524 = vshrl.u32 %v523, 7
        %v525 = vsub.s32 %v522, %v524
        %v526 = vrot.slane %v512, %v525
        %v527 = vcombine.low %v471, %v487
        %v528 = vcombine.high %v471, %v487
        %v530 = vunpack.c.l.s4 1934713408
        %v531 = vunpack.c.0.s8 %v530
        %v532 = vlaneseq
        %v533 = vshrl.u32 %v532, 7
        %v534 = vsub.s32 %v531, %v533
        %v535 = vrot.slane %v527, %v534
        %v537 = vunpack.c.l.s4 1934713408
        %v538 = vunpack.c.0.s8 %v537
        %v539 = vlaneseq
        %v540 = vshrl.u32 %v539, 7
        %v541 = vsub.s32 %v538, %v540
        %v542 = vrot.slane %v528, %v541
        %v543 = vcombine.low %v478, %v494
        %v544 = vcombine.high %v478, %v494
        %v546 = vunpack.c.l.s4 1934713408
        %v547 = vunpack.c.0.s8 %v546
        %v548 = vlaneseq
        %v549 = vshrl.u32 %v548, 7
        %v550 = vsub.s32 %v547, %v549
        %v551 = vrot.slane %v543, %v550
        %v553 = vunpack.c.l.s4 1934713408
        %v554 = vunpack.c.0.s8 %v553
        %v555 = vlaneseq
        %v556 = vshrl.u32 %v555, 7
        %v557 = vsub.s32 %v554, %v556
        %v558 = vrot.slane %v544, %v557
        %v559 = vcombine.low %v503, %v519
        %v560 = vcombine.high %v503, %v519
        %v562 = vunpack.c.l.s4 1934713408
        %v563 = vunpack.c.0.s8 %v562
        %v564 = vlaneseq
        %v565 = vshrl.u32 %v564, 7
        %v566 = vsub.s32 %v563, %v565
        %v567 = vrot.slane %v559, %v566
        %v569 = vunpack.c.l.s4 1934713408
        %v570 = vunpack.c.0.s8 %v569
        %v571 = vlaneseq
        %v572 = vshrl.u32 %v571, 7
        %v573 = vsub.s32 %v570, %v572
        %v574 = vrot.slane %v560, %v573
        %v575 = vcombine.low %v510, %v526
        %v576 = vcombine.high %v510, %v526
        %v578 = vunpack.c.l.s4 1934713408
        %v579 = vunpack.c.0.s8 %v578
        %v580 = vlaneseq
        %v581 = vshrl.u32 %v580, 7
        %v582 = vsub.s32 %v579, %v581
        %v583 = vrot.slane %v575, %v582
        %v585 = vunpack.c.l.s4 1934713408
        %v586 = vunpack.c.0.s8 %v585
        %v587 = vlaneseq
        %v588 = vshrl.u32 %v587, 7
        %v589 = vsub.s32 %v586, %v588
        %v590 = vrot.slane %v576, %v589
        %v591 = vcombine.low %v535, %v567
        %v592 = vcombine.high %v535, %v567
        %v593 = vcombine.low %v542, %v574
        %v594 = vcombine.high %v542, %v574
        %v595 = vcombine.low %v551, %v583
        %v596 = vcombine.high %v551, %v583
        %v597 = vcombine.low %v558, %v590
        %v598 = vcombine.high %v558, %v590
        %v599 = vcombine.low %v452, %v458
        %v600 = vcombine.high %v452, %v458
        %v602 = vunpack.c.l.s4 1983009808
        %v603 = vunpack.c.0.s8 %v602
        %v604 = vlaneseq
        %v605 = vshrl.u32 %v604, 7
        %v606 = vsub.s32 %v603, %v605
        %v607 = vrot.slane %v599, %v606
        %v609 = vunpack.c.l.s4 1983009808
        %v610 = vunpack.c.0.s8 %v609
        %v611 = vlaneseq
        %v612 = vshrl.u32 %v611, 7
        %v613 = vsub.s32 %v610, %v612
        %v614 = vrot.slane %v600, %v613
        %v615 = vcombine.low %v455, %v461
        %v616 = vcombine.high %v455, %v461
        %v618 = vunpack.c.l.s4 1983009808
        %v619 = vunpack.c.0.s8 %v618
        %v620 = vlaneseq
        %v621 = vshrl.u32 %v620, 7
        %v622 = vsub.s32 %v619, %v621
        %v623 = vrot.slane %v615, %v622
        %v625 = vunpack.c.l.s4 1983009808
        %v626 = vunpack.c.0.s8 %v625
        %v627 = vlaneseq
        %v628 = vshrl.u32 %v627, 7
        %v629 = vsub.s32 %v626, %v628
        %v630 = vrot.slane %v616, %v629
        %v631 = vcombine.low %v607, %v623
        %v632 = vcombine.high %v607, %v623
        %v634 = vunpack.c.l.s4 1934713408
        %v635 = vunpack.c.0.s8 %v634
        %v636 = vlaneseq
        %v637 = vshrl.u32 %v636, 7
        %v638 = vsub.s32 %v635, %v637
        %v639 = vrot.slane %v631, %v638
        %v641 = vunpack.c.l.s4 1934713408
        %v642 = vunpack.c.0.s8 %v641
        %v643 = vlaneseq
        %v644 = vshrl.u32 %v643, 7
        %v645 = vsub.s32 %v642, %v644
        %v646 = vrot.slane %v632, %v645
        %v647 = vcombine.low %v614, %v630
        %v648 = vcombine.high %v614, %v630
        %v650 = vunpack.c.l.s4 1934713408
        %v651 = vunpack.c.0.s8 %v650
        %v652 = vlaneseq
        %v653 = vshrl.u32 %v652, 7
        %v654 = vsub.s32 %v651, %v653
        %v655 = vrot.slane %v647, %v654
        %v657 = vunpack.c.l.s4 1934713408
        %v658 = vunpack.c.0.s8 %v657
        %v659 = vlaneseq
        %v660 = vshrl.u32 %v659, 7
        %v661 = vsub.s32 %v658, %v660
        %v662 = vrot.slane %v648, %v661
        %v663 = vcombine.high %v639, 0.0
        %v664 = vcombine.high %v646, 0.0
        %v665 = vcombine.high %v655, 0.0
        %v666 = vcombine.high %v662, 0.0
        %v667 = vcombine.low %v591, %v593
        %v668 = vcombine.high %v591, %v593
        %v670 = vunpack.c.l.s4 1983009808
        %v671 = vunpack.c.0.s8 %v670
        %v672 = vlaneseq
        %v673 = vshrl.u32 %v672, 7
        %v674 = vsub.s32 %v671, %v673
        %v675 = vrot.slane %v667, %v674
        %v677 = vunpack.c.l.s4 1983009808
        %v678 = vunpack.c.0.s8 %v677
        %v679 = vlaneseq
        %v680 = vshrl.u32 %v679, 7
        %v681 = vsub.s32 %v678, %v680
        %v682 = vrot.slane %v668, %v681
        %v683 = vcombine.low %v592, %v594
        %v684 = vcombine.high %v592, %v594
        %v686 = vunpack.c.l.s4 1983009808
        %v687 = vunpack.c.0.s8 %v686
        %v688 = vlaneseq
        %v689 = vshrl.u32 %v688, 7
        %v690 = vsub.s32 %v687, %v689
        %v691 = vrot.slane %v683, %v690
        %v693 = vunpack.c.l.s4 1983009808
        %v694 = vunpack.c.0.s8 %v693
        %v695 = vlaneseq
        %v696 = vshrl.u32 %v695, 7
        %v697 = vsub.s32 %v694, %v696
        %v698 = vrot.slane %v684, %v697
        %v699 = vcombine.low %v595, %v597
        %v700 = vcombine.high %v595, %v597
        %v702 = vunpack.c.l.s4 1983009808
        %v703 = vunpack.c.0.s8 %v702
        %v704 = vlaneseq
        %v705 = vshrl.u32 %v704, 7
        %v706 = vsub.s32 %v703, %v705
        %v707 = vrot.slane %v699, %v706
        %v709 = vunpack.c.l.s4 1983009808
        %v710 = vunpack.c.0.s8 %v709
        %v711 = vlaneseq
        %v712 = vshrl.u32 %v711, 7
        %v713 = vsub.s32 %v710, %v712
        %v714 = vrot.slane %v700, %v713
        %v715 = vcombine.low %v596, %v598
        %v716 = vcombine.high %v596, %v598
        %v718 = vunpack.c.l.s4 1983009808
        %v719 = vunpack.c.0.s8 %v718
        %v720 = vlaneseq
        %v721 = vshrl.u32 %v720, 7
        %v722 = vsub.s32 %v719, %v721
        %v723 = vrot.slane %v715, %v722
        %v725 = vunpack.c.l.s4 1983009808
        %v726 = vunpack.c.0.s8 %v725
        %v727 = vlaneseq
        %v728 = vshrl.u32 %v727, 7
        %v729 = vsub.s32 %v726, %v728
        %v730 = vrot.slane %v716, %v729
        %v731 = vcombine.low %v675, %v691
        %v732 = vcombine.high %v675, %v691
        %v734 = vunpack.c.l.s4 1934713408
        %v735 = vunpack.c.0.s8 %v734
        %v736 = vlaneseq
        %v737 = vshrl.u32 %v736, 7
        %v738 = vsub.s32 %v735, %v737
        %v739 = vrot.slane %v731, %v738
        %v741 = vunpack.c.l.s4 1934713408
        %v742 = vunpack.c.0.s8 %v741
        %v743 = vlaneseq
        %v744 = vshrl.u32 %v743, 7
        %v745 = vsub.s32 %v742, %v744
        %v746 = vrot.slane %v732, %v745
        %v747 = vcombine.low %v682, %v698
        %v748 = vcombine.high %v682, %v698
        %v750 = vunpack.c.l.s4 1934713408
        %v751 = vunpack.c.0.s8 %v750
        %v752 = vlaneseq
        %v753 = vshrl.u32 %v752, 7
        %v754 = vsub.s32 %v751, %v753
        %v755 = vrot.slane %v747, %v754
        %v757 = vunpack.c.l.s4 1934713408
        %v758 = vunpack.c.0.s8 %v757
        %v759 = vlaneseq
        %v760 = vshrl.u32 %v759, 7
        %v761 = vsub.s32 %v758, %v760
        %v762 = vrot.slane %v748, %v761
        %v763 = vcombine.low %v707, %v723
        %v764 = vcombine.high %v707, %v723
        %v766 = vunpack.c.l.s4 1934713408
        %v767 = vunpack.c.0.s8 %v766
        %v768 = vlaneseq
        %v769 = vshrl.u32 %v768, 7
        %v770 = vsub.s32 %v767, %v769
        %v771 = vrot.slane %v763, %v770
        %v773 = vunpack.c.l.s4 1934713408
        %v774 = vunpack.c.0.s8 %v773
        %v775 = vlaneseq
        %v776 = vshrl.u32 %v775, 7
        %v777 = vsub.s32 %v774, %v776
        %v778 = vrot.slane %v764, %v777
        %v779 = vcombine.low %v714, %v730
        %v780 = vcombine.high %v714, %v730
        %v782 = vunpack.c.l.s4 1934713408
        %v783 = vunpack.c.0.s8 %v782
        %v784 = vlaneseq
        %v785 = vshrl.u32 %v784, 7
        %v786 = vsub.s32 %v783, %v785
        %v787 = vrot.slane %v779, %v786
        %v789 = vunpack.c.l.s4 1934713408
        %v790 = vunpack.c.0.s8 %v789
        %v791 = vlaneseq
        %v792 = vshrl.u32 %v791, 7
        %v793 = vsub.s32 %v790, %v792
        %v794 = vrot.slane %v780, %v793
        %v795 = vcombine.low %v739, %v771
        %v796 = vcombine.high %v739, %v771
        %v797 = vcombine.low %v746, %v778
        %v798 = vcombine.high %v746, %v778
        %v799 = vcombine.low %v755, %v787
        %v800 = vcombine.high %v755, %v787
        %v801 = vcombine.low %v762, %v794
        %v802 = vcombine.high %v762, %v794
        %v803 = vcombine.low %v639, %v646
        %v805 = vunpack.c.l.s4 1983009808
        %v806 = vunpack.c.0.s8 %v805
        %v807 = vlaneseq
        %v808 = vshrl.u32 %v807, 7
        %v809 = vsub.s32 %v806, %v808
        %v810 = vrot.slane %v803, %v809
        %v811 = vcombine.low %v663, %v664
        %v813 = vunpack.c.l.s4 1983009808
        %v814 = vunpack.c.0.s8 %v813
        %v815 = vlaneseq
        %v816 = vshrl.u32 %v815, 7
        %v817 = vsub.s32 %v814, %v816
        %v818 = vrot.slane %v811, %v817
        %v819 = vcombine.low %v655, %v662
        %v821 = vunpack.c.l.s4 1983009808
        %v822 = vunpack.c.0.s8 %v821
        %v823 = vlaneseq
        %v824 = vshrl.u32 %v823, 7
        %v825 = vsub.s32 %v822, %v824
        %v826 = vrot.slane %v819, %v825
        %v827 = vcombine.low %v665, %v666
        %v829 = vunpack.c.l.s4 1983009808
        %v830 = vunpack.c.0.s8 %v829
        %v831 = vlaneseq
        %v832 = vshrl.u32 %v831, 7
        %v833 = vsub.s32 %v830, %v832
        %v834 = vrot.slane %v827, %v833
        %v835 = vcombine.low %v810, %v818
        %v836 = vcombine.high %v810, %v818
        %v838 = vunpack.c.l.s4 1934713408
        %v839 = vunpack.c.0.s8 %v838
        %v840 = vlaneseq
        %v841 = vshrl.u32 %v840, 7
        %v842 = vsub.s32 %v839, %v841
        %v843 = vrot.slane %v835, %v842
        %v845 = vunpack.c.l.s4 1934713408
        %v846 = vunpack.c.0.s8 %v845
        %v847 = vlaneseq
        %v848 = vshrl.u32 %v847, 7
        %v849 = vsub.s32 %v846, %v848
        %v850 = vrot.slane %v836, %v849
        %v851 = vcombine.low %v826, %v834
        %v852 = vcombine.high %v826, %v834
        %v854 = vunpack.c.l.s4 1934713408
        %v855 = vunpack.c.0.s8 %v854
        %v856 = vlaneseq
        %v857 = vshrl.u32 %v856, 7
        %v858 = vsub.s32 %v855, %v857
        %v859 = vrot.slane %v851, %v858
        %v861 = vunpack.c.l.s4 1934713408
        %v862 = vunpack.c.0.s8 %v861
        %v863 = vlaneseq
        %v864 = vshrl.u32 %v863, 7
        %v865 = vsub.s32 %v862, %v864
        %v866 = vrot.slane %v852, %v865
        %v867 = vcombine.low %v843, %v859
        %v868 = vcombine.high %v843, %v859
        %v869 = vcombine.low %v850, %v866
        %v870 = vcombine.high %v850, %v866
        %v871 = vpack.c.bf16 %v795, %v795
        %v872 = vpack.c.bf16 %v796, %v796
        %v873 = vpack.c.bf16 %v797, %v797
        %v874 = vpack.c.bf16 %v798, %v798
        %v875 = vpack.c.bf16 %v799, %v799
        %v876 = vpack.c.bf16 %v800, %v800
        %v877 = vpack.c.bf16 %v801, %v801
        %v878 = vpack.c.bf16 %v802, %v802
        %v879 = vpack.c.bf16 %v867, %v867
        %v880 = vpack.c.bf16 %v868, %v868
        %v881 = vpack.c.bf16 %v869, %v869
        %v882 = vpack.c.bf16 %v870, %v870
        %vm883 = vcmask 64512
        %v885 = vsel %vm883, %v871, 0
        %v888 = vsel %vm883, %v875, 0
        %890 = vmatprep.subr.bf16.mxu0 0
        %891 = vmatpush1.bf16.xpose.msra.mxu0 %v888
        %892 = vmatprep.subr.bf16.mxu0 0
        %893 = vmatpush1.bf16.xpose.msra.mxu0 0
        %894 = vmatprep.subr.bf16.mxu0 0
        %895 = vmatpush1.bf16.xpose.msra.mxu0 0
        %896 = vmatprep.subr.bf16.mxu0 0
        %897 = vmatpush1.bf16.xpose.msra.mxu0 0
        %898 = vmatprep.subr.bf16.mxu0 0
        %899 = vmatpush1.bf16.xpose.msra.mxu0 0
        %900 = vmatprep.subr.bf16.mxu0 0
        %901 = vmatpush1.bf16.xpose.msra.mxu0 0
        %902 = vmatprep.subr.bf16.mxu0 0
        %903 = vmatpush1.bf16.xpose.msra.mxu0 0
        %904 = vmatprep.subr.bf16.mxu0 0
        %905 = vmatpush1.bf16.xpose.msra.mxu0 0
        %906 = vmatprep.subr.bf16.mxu0 0
        %907 = vmatpush1.bf16.xpose.msra.mxu0 0
        %908 = vmatprep.subr.bf16.mxu0 0
        %909 = vmatpush1.bf16.xpose.msra.mxu0 0
        %910 = vmatprep.subr.bf16.mxu0 0
        %911 = vmatpush1.bf16.xpose.msra.mxu0 0
        %912 = vmatprep.subr.bf16.mxu0 0
        %913 = vmatpush1.bf16.xpose.msra.mxu0 0
        %914 = vmatprep.subr.bf16.mxu0 0
        %915 = vmatpush1.bf16.xpose.msra.mxu0 0
        %916 = vmatprep.subr.bf16.mxu0 0
        %917 = vmatpush1.bf16.xpose.msra.mxu0 0
        %918 = vmatprep.subr.bf16.mxu0 0
        %919 = vmatpush1.bf16.xpose.msra.mxu0 0
        %920 = vmatprep.subr.bf16.mxu0 0
        %921 = vmatpush1.bf16.xpose.msra.mxu0 0
        %922 = vmatprep.mubr.bf16.mxu0 0
        %923 = vmatmul.mubr.bf16.gmra.mrb[0].mxu0 %v885
        %v924 = vpop.f32.mrb[0].mxu0
        %v925 = vadd.f32 0.0, %v924
        %v926 = vpop.f32.mrb[0].mxu0
        %v927 = vpop.f32.mrb[0].mxu0
        %v928 = vpop.f32.mrb[0].mxu0
        %929 = vdwg.mxu0
        %v931 = vsel %vm883, %v872, 0
        %v934 = vsel %vm883, %v876, 0
        %936 = vmatprep.subr.bf16.mxu0 0
        %937 = vmatpush1.bf16.xpose.msra.mxu0 %v934
        %938 = vmatprep.subr.bf16.mxu0 0
        %939 = vmatpush1.bf16.xpose.msra.mxu0 0
        %940 = vmatprep.subr.bf16.mxu0 0
        %941 = vmatpush1.bf16.xpose.msra.mxu0 0
        %942 = vmatprep.subr.bf16.mxu0 0
        %943 = vmatpush1.bf16.xpose.msra.mxu0 0
        %944 = vmatprep.subr.bf16.mxu0 0
        %945 = vmatpush1.bf16.xpose.msra.mxu0 0
        %946 = vmatprep.subr.bf16.mxu0 0
        %947 = vmatpush1.bf16.xpose.msra.mxu0 0
        %948 = vmatprep.subr.bf16.mxu0 0
        %949 = vmatpush1.bf16.xpose.msra.mxu0 0
        %950 = vmatprep.subr.bf16.mxu0 0
        %951 = vmatpush1.bf16.xpose.msra.mxu0 0
        %952 = vmatprep.subr.bf16.mxu0 0
        %953 = vmatpush1.bf16.xpose.msra.mxu0 0
        %954 = vmatprep.subr.bf16.mxu0 0
        %955 = vmatpush1.bf16.xpose.msra.mxu0 0
        %956 = vmatprep.subr.bf16.mxu0 0
        %957 = vmatpush1.bf16.xpose.msra.mxu0 0
        %958 = vmatprep.subr.bf16.mxu0 0
        %959 = vmatpush1.bf16.xpose.msra.mxu0 0
        %960 = vmatprep.subr.bf16.mxu0 0
        %961 = vmatpush1.bf16.xpose.msra.mxu0 0
        %962 = vmatprep.subr.bf16.mxu0 0
        %963 = vmatpush1.bf16.xpose.msra.mxu0 0
        %964 = vmatprep.subr.bf16.mxu0 0
        %965 = vmatpush1.bf16.xpose.msra.mxu0 0
        %966 = vmatprep.subr.bf16.mxu0 0
        %967 = vmatpush1.bf16.xpose.msra.mxu0 0
        %968 = vmatprep.mubr.bf16.mxu0 0
        %969 = vmatmul.mubr.bf16.gmra.mrb[0].mxu0 %v931
        %v970 = vpop.f32.mrb[0].mxu0
        %v971 = vadd.f32 0.0, %v970
        %v972 = vpop.f32.mrb[0].mxu0
        %v973 = vpop.f32.mrb[0].mxu0
        %v974 = vpop.f32.mrb[0].mxu0
        %975 = vdwg.mxu0
        %v977 = vsel %vm883, %v873, 0
        %v980 = vsel %vm883, %v877, 0
        %982 = vmatprep.subr.bf16.mxu0 0
        %983 = vmatpush1.bf16.xpose.msra.mxu0 %v980
        %984 = vmatprep.subr.bf16.mxu0 0
        %985 = vmatpush1.bf16.xpose.msra.mxu0 0
        %986 = vmatprep.subr.bf16.mxu0 0
        %987 = vmatpush1.bf16.xpose.msra.mxu0 0
        %988 = vmatprep.subr.bf16.mxu0 0
        %989 = vmatpush1.bf16.xpose.msra.mxu0 0
        %990 = vmatprep.subr.bf16.mxu0 0
        %991 = vmatpush1.bf16.xpose.msra.mxu0 0
        %992 = vmatprep.subr.bf16.mxu0 0
        %993 = vmatpush1.bf16.xpose.msra.mxu0 0
        %994 = vmatprep.subr.bf16.mxu0 0
        %995 = vmatpush1.bf16.xpose.msra.mxu0 0
        %996 = vmatprep.subr.bf16.mxu0 0
        %997 = vmatpush1.bf16.xpose.msra.mxu0 0
        %998 = vmatprep.subr.bf16.mxu0 0
        %999 = vmatpush1.bf16.xpose.msra.mxu0 0
        %1000 = vmatprep.subr.bf16.mxu0 0
        %1001 = vmatpush1.bf16.xpose.msra.mxu0 0
        %1002 = vmatprep.subr.bf16.mxu0 0
        %1003 = vmatpush1.bf16.xpose.msra.mxu0 0
        %1004 = vmatprep.subr.bf16.mxu0 0
        %1005 = vmatpush1.bf16.xpose.msra.mxu0 0
        %1006 = vmatprep.subr.bf16.mxu0 0
        %1007 = vmatpush1.bf16.xpose.msra.mxu0 0
        %1008 = vmatprep.subr.bf16.mxu0 0
        %1009 = vmatpush1.bf16.xpose.msra.mxu0 0
        %1010 = vmatprep.subr.bf16.mxu0 0
        %1011 = vmatpush1.bf16.xpose.msra.mxu0 0
        %1012 = vmatprep.subr.bf16.mxu0 0
        %1013 = vmatpush1.bf16.xpose.msra.mxu0 0
        %1014 = vmatprep.mubr.bf16.mxu0 0
        %1015 = vmatmul.mubr.bf16.gmra.mrb[0].mxu0 %v977
        %v1016 = vpop.f32.mrb[0].mxu0
        %v1017 = vadd.f32 0.0, %v1016
        %v1018 = vpop.f32.mrb[0].mxu0
        %v1019 = vpop.f32.mrb[0].mxu0
        %v1020 = vpop.f32.mrb[0].mxu0
        %1021 = vdwg.mxu0
        %v1023 = vsel %vm883, %v874, 0
        %v1026 = vsel %vm883, %v878, 0
        %1028 = vmatprep.subr.bf16.mxu0 0
        %1029 = vmatpush1.bf16.xpose.msra.mxu0 %v1026
        %1030 = vmatprep.subr.bf16.mxu0 0
        %1031 = vmatpush1.bf16.xpose.msra.mxu0 0
        %1032 = vmatprep.subr.bf16.mxu0 0
        %1033 = vmatpush1.bf16.xpose.msra.mxu0 0
        %1034 = vmatprep.subr.bf16.mxu0 0
        %1035 = vmatpush1.bf16.xpose.msra.mxu0 0
        %1036 = vmatprep.subr.bf16.mxu0 0
        %1037 = vmatpush1.bf16.xpose.msra.mxu0 0
        %1038 = vmatprep.subr.bf16.mxu0 0
        %1039 = vmatpush1.bf16.xpose.msra.mxu0 0
        %1040 = vmatprep.subr.bf16.mxu0 0
        %1041 = vmatpush1.bf16.xpose.msra.mxu0 0
        %1042 = vmatprep.subr.bf16.mxu0 0
        %1043 = vmatpush1.bf16.xpose.msra.mxu0 0
        %1044 = vmatprep.subr.bf16.mxu0 0
        %1045 = vmatpush1.bf16.xpose.msra.mxu0 0
        %1046 = vmatprep.subr.bf16.mxu0 0
        %1047 = vmatpush1.bf16.xpose.msra.mxu0 0
        %1048 = vmatprep.subr.bf16.mxu0 0
        %1049 = vmatpush1.bf16.xpose.msra.mxu0 0
        %1050 = vmatprep.subr.bf16.mxu0 0
        %1051 = vmatpush1.bf16.xpose.msra.mxu0 0
        %1052 = vmatprep.subr.bf16.mxu0 0
        %1053 = vmatpush1.bf16.xpose.msra.mxu0 0
        %1054 = vmatprep.subr.bf16.mxu0 0
        %1055 = vmatpush1.bf16.xpose.msra.mxu0 0
        %1056 = vmatprep.subr.bf16.mxu0 0
        %1057 = vmatpush1.bf16.xpose.msra.mxu0 0
        %1058 = vmatprep.subr.bf16.mxu0 0
        %1059 = vmatpush1.bf16.xpose.msra.mxu0 0
        %1060 = vmatprep.mubr.bf16.mxu0 0
        %1061 = vmatmul.mubr.bf16.gmra.mrb[0].mxu0 %v1023
        %v1062 = vpop.f32.mrb[0].mxu0
        %v1063 = vadd.f32 0.0, %v1062
        %v1064 = vpop.f32.mrb[0].mxu0
        %v1065 = vpop.f32.mrb[0].mxu0
        %v1066 = vpop.f32.mrb[0].mxu0
        %1067 = vdwg.mxu0
        %v1068 = vsel %vm883, %v925, -inf
        %1069 = vmax.xlane.f32.xlu0 %v1068
        %v1070 = vpop.xlane.xlu0 %1069
        %v1071 = vsel %vm883, %v971, -inf
        %1072 = vmax.xlane.f32.xlu0 %v1071
        %v1073 = vpop.xlane.xlu0 %1072
        %v1074 = vsel %vm883, %v1017, -inf
        %1075 = vmax.xlane.f32.xlu0 %v1074
        %v1076 = vpop.xlane.xlu0 %1075
        %v1077 = vsel %vm883, %v1063, -inf
        %1078 = vmax.xlane.f32.xlu0 %v1077
        %v1079 = vpop.xlane.xlu0 %1078
        %v1080 = vsub.f32 %v925, %v1070
        %v1081 = vsub.f32 %v971, %v1073
        %v1082 = vsub.f32 %v1017, %v1076
        %v1083 = vsub.f32 %v1063, %v1079
        %v1084 = vmul.f32 %v1080, 1.442695
        %v1085 = vpow.pop %v1084
        %v1086 = vmul.f32 %v1081, 1.442695
        %v1087 = vpow.pop %v1086
        %v1088 = vmul.f32 %v1082, 1.442695
        %v1089 = vpow.pop %v1088
        %v1090 = vmul.f32 %v1083, 1.442695
        %v1091 = vpow.pop %v1090
        %v1092 = vsel %vm883, %v1085, 0.0
        %1093 = vadd.xlane.f32.xlu0 %v1092
        %v1094 = vpop.xlane.xlu0 %1093
        %v1095 = vsel %vm883, %v1087, 0.0
        %1096 = vadd.xlane.f32.xlu0 %v1095
        %v1097 = vpop.xlane.xlu0 %1096
        %v1098 = vsel %vm883, %v1089, 0.0
        %1099 = vadd.xlane.f32.xlu0 %v1098
        %v1100 = vpop.xlane.xlu0 %1099
        %v1101 = vsel %vm883, %v1091, 0.0
        %1102 = vadd.xlane.f32.xlu0 %v1101
        %v1103 = vpop.xlane.xlu0 %1102
        %v1104 = vrcp.pop %v1094
        %v1105 = vrcp.pop %v1097
        %v1106 = vrcp.pop %v1100
        %v1107 = vrcp.pop %v1103
        %v1108 = vmul.f32 %v1085, %v1104
        %v1109 = vmul.f32 %v1087, %v1105
        %v1110 = vmul.f32 %v1089, %v1106
        %v1111 = vmul.f32 %v1091, %v1107
        %v1112 = vpack.c.bf16 %v1108, %v1108
        %v1113 = vpack.c.bf16 %v1109, %v1109
        %v1114 = vpack.c.bf16 %v1110, %v1110
        %v1115 = vpack.c.bf16 %v1111, %v1111
        %v1117 = vsel %vm883, %v1112, 0
        %vm1119 = vcmask 1043456
        %v1121 = vsel %vm1119, %v879, 0
        %1123 = vmatprep.subr.bf16.mxu0 0
        %1124 = vmatpush1.bf16.msra.mxu0 %v1121
        %1125 = vmatprep.subr.bf16.mxu0 0
        %1126 = vmatpush1.bf16.msra.mxu0 0
        %1127 = vmatprep.subr.bf16.mxu0 0
        %1128 = vmatpush1.bf16.msra.mxu0 0
        %1129 = vmatprep.subr.bf16.mxu0 0
        %1130 = vmatpush1.bf16.msra.mxu0 0
        %1131 = vmatprep.subr.bf16.mxu0 0
        %1132 = vmatpush1.bf16.msra.mxu0 0
        %1133 = vmatprep.subr.bf16.mxu0 0
        %1134 = vmatpush1.bf16.msra.mxu0 0
        %1135 = vmatprep.subr.bf16.mxu0 0
        %1136 = vmatpush1.bf16.msra.mxu0 0
        %1137 = vmatprep.subr.bf16.mxu0 0
        %1138 = vmatpush1.bf16.msra.mxu0 0
        %1139 = vmatprep.subr.bf16.mxu0 0
        %1140 = vmatpush1.bf16.msra.mxu0 0
        %1141 = vmatprep.subr.bf16.mxu0 0
        %1142 = vmatpush1.bf16.msra.mxu0 0
        %1143 = vmatprep.subr.bf16.mxu0 0
        %1144 = vmatpush1.bf16.msra.mxu0 0
        %1145 = vmatprep.subr.bf16.mxu0 0
        %1146 = vmatpush1.bf16.msra.mxu0 0
        %1147 = vmatprep.subr.bf16.mxu0 0
        %1148 = vmatpush1.bf16.msra.mxu0 0
        %1149 = vmatprep.subr.bf16.mxu0 0
        %1150 = vmatpush1.bf16.msra.mxu0 0
        %1151 = vmatprep.subr.bf16.mxu0 0
        %1152 = vmatpush1.bf16.msra.mxu0 0
        %1153 = vmatprep.subr.bf16.mxu0 0
        %1154 = vmatpush1.bf16.msra.mxu0 0
        %1155 = vmatprep.mubr.bf16.mxu0 0
        %1156 = vmatmul.mubr.bf16.gmra.mrb[0].mxu0 %v1117
        %v1157 = vpop.f32.mrb[0].mxu0
        %v1158 = vadd.f32 0.0, %v1157
        %v1159 = vpop.f32.mrb[0].mxu0
        %v1160 = vpop.f32.mrb[0].mxu0
        %v1161 = vpop.f32.mrb[0].mxu0
        %1162 = vdwg.mxu0
        %v1164 = vsel %vm883, %v1113, 0
        %v1167 = vsel %vm1119, %v880, 0
        %1169 = vmatprep.subr.bf16.mxu0 0
        %1170 = vmatpush1.bf16.msra.mxu0 %v1167
        %1171 = vmatprep.subr.bf16.mxu0 0
        %1172 = vmatpush1.bf16.msra.mxu0 0
        %1173 = vmatprep.subr.bf16.mxu0 0
        %1174 = vmatpush1.bf16.msra.mxu0 0
        %1175 = vmatprep.subr.bf16.mxu0 0
        %1176 = vmatpush1.bf16.msra.mxu0 0
        %1177 = vmatprep.subr.bf16.mxu0 0
        %1178 = vmatpush1.bf16.msra.mxu0 0
        %1179 = vmatprep.subr.bf16.mxu0 0
        %1180 = vmatpush1.bf16.msra.mxu0 0
        %1181 = vmatprep.subr.bf16.mxu0 0
        %1182 = vmatpush1.bf16.msra.mxu0 0
        %1183 = vmatprep.subr.bf16.mxu0 0
        %1184 = vmatpush1.bf16.msra.mxu0 0
        %1185 = vmatprep.subr.bf16.mxu0 0
        %1186 = vmatpush1.bf16.msra.mxu0 0
        %1187 = vmatprep.subr.bf16.mxu0 0
        %1188 = vmatpush1.bf16.msra.mxu0 0
        %1189 = vmatprep.subr.bf16.mxu0 0
        %1190 = vmatpush1.bf16.msra.mxu0 0
        %1191 = vmatprep.subr.bf16.mxu0 0
        %1192 = vmatpush1.bf16.msra.mxu0 0
        %1193 = vmatprep.subr.bf16.mxu0 0
        %1194 = vmatpush1.bf16.msra.mxu0 0
        %1195 = vmatprep.subr.bf16.mxu0 0
        %1196 = vmatpush1.bf16.msra.mxu0 0
        %1197 = vmatprep.subr.bf16.mxu0 0
        %1198 = vmatpush1.bf16.msra.mxu0 0
        %1199 = vmatprep.subr.bf16.mxu0 0
        %1200 = vmatpush1.bf16.msra.mxu0 0
        %1201 = vmatprep.mubr.bf16.mxu0 0
        %1202 = vmatmul.mubr.bf16.gmra.mrb[0].mxu0 %v1164
        %v1203 = vpop.f32.mrb[0].mxu0
        %v1204 = vadd.f32 0.0, %v1203
        %v1205 = vpop.f32.mrb[0].mxu0
        %v1206 = vpop.f32.mrb[0].mxu0
        %v1207 = vpop.f32.mrb[0].mxu0
        %1208 = vdwg.mxu0
        %v1210 = vsel %vm883, %v1114, 0
        %v1213 = vsel %vm1119, %v881, 0
        %1215 = vmatprep.subr.bf16.mxu0 0
        %1216 = vmatpush1.bf16.msra.mxu0 %v1213
        %1217 = vmatprep.subr.bf16.mxu0 0
        %1218 = vmatpush1.bf16.msra.mxu0 0
        %1219 = vmatprep.subr.bf16.mxu0 0
        %1220 = vmatpush1.bf16.msra.mxu0 0
        %1221 = vmatprep.subr.bf16.mxu0 0
        %1222 = vmatpush1.bf16.msra.mxu0 0
        %1223 = vmatprep.subr.bf16.mxu0 0
        %1224 = vmatpush1.bf16.msra.mxu0 0
        %1225 = vmatprep.subr.bf16.mxu0 0
        %1226 = vmatpush1.bf16.msra.mxu0 0
        %1227 = vmatprep.subr.bf16.mxu0 0
        %1228 = vmatpush1.bf16.msra.mxu0 0
        %1229 = vmatprep.subr.bf16.mxu0 0
        %1230 = vmatpush1.bf16.msra.mxu0 0
        %1231 = vmatprep.subr.bf16.mxu0 0
        %1232 = vmatpush1.bf16.msra.mxu0 0
        %1233 = vmatprep.subr.bf16.mxu0 0
        %1234 = vmatpush1.bf16.msra.mxu0 0
        %1235 = vmatprep.subr.bf16.mxu0 0
        %1236 = vmatpush1.bf16.msra.mxu0 0
        %1237 = vmatprep.subr.bf16.mxu0 0
        %1238 = vmatpush1.bf16.msra.mxu0 0
        %1239 = vmatprep.subr.bf16.mxu0 0
        %1240 = vmatpush1.bf16.msra.mxu0 0
        %1241 = vmatprep.subr.bf16.mxu0 0
        %1242 = vmatpush1.bf16.msra.mxu0 0
        %1243 = vmatprep.subr.bf16.mxu0 0
        %1244 = vmatpush1.bf16.msra.mxu0 0
        %1245 = vmatprep.subr.bf16.mxu0 0
        %1246 = vmatpush1.bf16.msra.mxu0 0
        %1247 = vmatprep.mubr.bf16.mxu0 0
        %1248 = vmatmul.mubr.bf16.gmra.mrb[0].mxu0 %v1210
        %v1249 = vpop.f32.mrb[0].mxu0
        %v1250 = vadd.f32 0.0, %v1249
        %v1251 = vpop.f32.mrb[0].mxu0
        %v1252 = vpop.f32.mrb[0].mxu0
        %v1253 = vpop.f32.mrb[0].mxu0
        %1254 = vdwg.mxu0
        %v1256 = vsel %vm883, %v1115, 0
        %v1259 = vsel %vm1119, %v882, 0
        %1261 = vmatprep.subr.bf16.mxu0 0
        %1262 = vmatpush1.bf16.msra.mxu0 %v1259
        %1263 = vmatprep.subr.bf16.mxu0 0
        %1264 = vmatpush1.bf16.msra.mxu0 0
        %1265 = vmatprep.subr.bf16.mxu0 0
        %1266 = vmatpush1.bf16.msra.mxu0 0
        %1267 = vmatprep.subr.bf16.mxu0 0
        %1268 = vmatpush1.bf16.msra.mxu0 0
        %1269 = vmatprep.subr.bf16.mxu0 0
        %1270 = vmatpush1.bf16.msra.mxu0 0
        %1271 = vmatprep.subr.bf16.mxu0 0
        %1272 = vmatpush1.bf16.msra.mxu0 0
        %1273 = vmatprep.subr.bf16.mxu0 0
        %1274 = vmatpush1.bf16.msra.mxu0 0
        %1275 = vmatprep.subr.bf16.mxu0 0
        %1276 = vmatpush1.bf16.msra.mxu0 0
        %1277 = vmatprep.subr.bf16.mxu0 0
        %1278 = vmatpush1.bf16.msra.mxu0 0
        %1279 = vmatprep.subr.bf16.mxu0 0
        %1280 = vmatpush1.bf16.msra.mxu0 0
        %1281 = vmatprep.subr.bf16.mxu0 0
        %1282 = vmatpush1.bf16.msra.mxu0 0
        %1283 = vmatprep.subr.bf16.mxu0 0
        %1284 = vmatpush1.bf16.msra.mxu0 0
        %1285 = vmatprep.subr.bf16.mxu0 0
        %1286 = vmatpush1.bf16.msra.mxu0 0
        %1287 = vmatprep.subr.bf16.mxu0 0
        %1288 = vmatpush1.bf16.msra.mxu0 0
        %1289 = vmatprep.subr.bf16.mxu0 0
        %1290 = vmatpush1.bf16.msra.mxu0 0
        %1291 = vmatprep.subr.bf16.mxu0 0
        %1292 = vmatpush1.bf16.msra.mxu0 0
        %1293 = vmatprep.mubr.bf16.mxu0 0
        %1294 = vmatmul.mubr.bf16.gmra.mrb[0].mxu0 %v1256
        %v1295 = vpop.f32.mrb[0].mxu0
        %v1296 = vadd.f32 0.0, %v1295
        %v1297 = vpop.f32.mrb[0].mxu0
        %v1298 = vpop.f32.mrb[0].mxu0
        %v1299 = vpop.f32.mrb[0].mxu0
        %1300 = vdwg.mxu0
        %v1301 = vcombine.low %v1158, %v1250
        %v1302 = vcombine.high %v1158, %v1250
        %v1304 = vunpack.c.l.s4 1983009808
        %v1305 = vunpack.c.0.s8 %v1304
        %v1306 = vlaneseq
        %v1307 = vshrl.u32 %v1306, 7
        %v1308 = vsub.s32 %v1305, %v1307
        %v1309 = vrot.slane %v1301, %v1308
        %v1311 = vunpack.c.l.s4 1983009808
        %v1312 = vunpack.c.0.s8 %v1311
        %v1313 = vlaneseq
        %v1314 = vshrl.u32 %v1313, 7
        %v1315 = vsub.s32 %v1312, %v1314
        %v1316 = vrot.slane %v1302, %v1315
        %v1317 = vcombine.low %v1204, %v1296
        %v1318 = vcombine.high %v1204, %v1296
        %v1320 = vunpack.c.l.s4 1983009808
        %v1321 = vunpack.c.0.s8 %v1320
        %v1322 = vlaneseq
        %v1323 = vshrl.u32 %v1322, 7
        %v1324 = vsub.s32 %v1321, %v1323
        %v1325 = vrot.slane %v1317, %v1324
        %v1327 = vunpack.c.l.s4 1983009808
        %v1328 = vunpack.c.0.s8 %v1327
        %v1329 = vlaneseq
        %v1330 = vshrl.u32 %v1329, 7
        %v1331 = vsub.s32 %v1328, %v1330
        %v1332 = vrot.slane %v1318, %v1331
        %v1333 = vcombine.low %v1309, %v1325
        %v1334 = vcombine.high %v1309, %v1325
        %v1336 = vunpack.c.l.s4 1934713408
        %v1337 = vunpack.c.0.s8 %v1336
        %v1338 = vlaneseq
        %v1339 = vshrl.u32 %v1338, 7
        %v1340 = vsub.s32 %v1337, %v1339
        %v1341 = vrot.slane %v1333, %v1340
        %v1343 = vunpack.c.l.s4 1934713408
        %v1344 = vunpack.c.0.s8 %v1343
        %v1345 = vlaneseq
        %v1346 = vshrl.u32 %v1345, 7
        %v1347 = vsub.s32 %v1344, %v1346
        %v1348 = vrot.slane %v1334, %v1347
        %v1349 = vcombine.low %v1316, %v1332
        %v1350 = vcombine.high %v1316, %v1332
        %v1352 = vunpack.c.l.s4 1934713408
        %v1353 = vunpack.c.0.s8 %v1352
        %v1354 = vlaneseq
        %v1355 = vshrl.u32 %v1354, 7
        %v1356 = vsub.s32 %v1353, %v1355
        %v1357 = vrot.slane %v1349, %v1356
        %v1359 = vunpack.c.l.s4 1934713408
        %v1360 = vunpack.c.0.s8 %v1359
        %v1361 = vlaneseq
        %v1362 = vshrl.u32 %v1361, 7
        %v1363 = vsub.s32 %v1360, %v1362
        %v1364 = vrot.slane %v1350, %v1363
        %v1365 = vcombine.high %v1341, 0.0
        %v1366 = vcombine.high %v1348, 0.0
        %v1367 = vcombine.high %v1357, 0.0
        %v1368 = vcombine.high %v1364, 0.0
        %v1369 = vcombine.low %v1341, %v1348
        %v1371 = vunpack.c.l.s4 1983009808
        %v1372 = vunpack.c.0.s8 %v1371
        %v1373 = vlaneseq
        %v1374 = vshrl.u32 %v1373, 7
        %v1375 = vsub.s32 %v1372, %v1374
        %v1376 = vrot.slane %v1369, %v1375
        %v1377 = vcombine.low %v1365, %v1366
        %v1379 = vunpack.c.l.s4 1983009808
        %v1380 = vunpack.c.0.s8 %v1379
        %v1381 = vlaneseq
        %v1382 = vshrl.u32 %v1381, 7
        %v1383 = vsub.s32 %v1380, %v1382
        %v1384 = vrot.slane %v1377, %v1383
        %v1385 = vcombine.low %v1357, %v1364
        %v1387 = vunpack.c.l.s4 1983009808
        %v1388 = vunpack.c.0.s8 %v1387
        %v1389 = vlaneseq
        %v1390 = vshrl.u32 %v1389, 7
        %v1391 = vsub.s32 %v1388, %v1390
        %v1392 = vrot.slane %v1385, %v1391
        %v1393 = vcombine.low %v1367, %v1368
        %v1395 = vunpack.c.l.s4 1983009808
        %v1396 = vunpack.c.0.s8 %v1395
        %v1397 = vlaneseq
        %v1398 = vshrl.u32 %v1397, 7
        %v1399 = vsub.s32 %v1396, %v1398
        %v1400 = vrot.slane %v1393, %v1399
        %v1401 = vcombine.low %v1376, %v1384
        %v1402 = vcombine.high %v1376, %v1384
        %v1404 = vunpack.c.l.s4 1934713408
        %v1405 = vunpack.c.0.s8 %v1404
        %v1406 = vlaneseq
        %v1407 = vshrl.u32 %v1406, 7
        %v1408 = vsub.s32 %v1405, %v1407
        %v1409 = vrot.slane %v1401, %v1408
        %v1411 = vunpack.c.l.s4 1934713408
        %v1412 = vunpack.c.0.s8 %v1411
        %v1413 = vlaneseq
        %v1414 = vshrl.u32 %v1413, 7
        %v1415 = vsub.s32 %v1412, %v1414
        %v1416 = vrot.slane %v1402, %v1415
        %v1417 = vcombine.low %v1392, %v1400
        %v1418 = vcombine.high %v1392, %v1400
        %v1420 = vunpack.c.l.s4 1934713408
        %v1421 = vunpack.c.0.s8 %v1420
        %v1422 = vlaneseq
        %v1423 = vshrl.u32 %v1422, 7
        %v1424 = vsub.s32 %v1421, %v1423
        %v1425 = vrot.slane %v1417, %v1424
        %v1427 = vunpack.c.l.s4 1934713408
        %v1428 = vunpack.c.0.s8 %v1427
        %v1429 = vlaneseq
        %v1430 = vshrl.u32 %v1429, 7
        %v1431 = vsub.s32 %v1428, %v1430
        %v1432 = vrot.slane %v1418, %v1431
        %v1433 = vcombine.low %v1409, %v1425
        %v1434 = vcombine.high %v1409, %v1425
        %v1435 = vcombine.low %v1416, %v1432
        %v1436 = vcombine.high %v1416, %v1432
        %1438 = vrot.lane.b32.xlu0 %v1434, 8
        %v1439 = vpop.permute.xlu0 %1438
        %1442 = vrot.lane.b32.xlu0 %v1435, 16
        %v1443 = vpop.permute.xlu0 %1442
        %1446 = vrot.lane.b32.xlu0 %v1436, 24
        %v1447 = vpop.permute.xlu0 %1446
        %v1449 = vsel %vm883, %v1433, %v1439
        %vm1450 = vcmask 130048
        %v1451 = vsel %vm1450, %v1449, %v1443
        %vm1452 = vcmask 195584
        %v1453 = vsel %vm1452, %v1451, %v1447
        %v1454 = vpack.c.bf16 %v1453, %v1453
        %v1455 = vld [vmem:[%s4] sm:$0xf]
        %v1456 = vld [vmem:[%s4 + $0x4] sm:$0xf]
        %v1457 = vld [vmem:[%s4 + $0x8] sm:$0xf]
        %v1458 = vld [vmem:[%s4 + $0xc] sm:$0xf]
        %v1459 = vlaneseq
        %v1460 = vshrl.u32 %v1459, 7
        %v1461 = vsub.s32 0, %v1460
        %v1462 = vrot.slane %v335, %v1461
        %v1467 = vunpack.c.l.b16 %v1455
        %v1468 = vunpack.c.l.b16 %v1456
        %v1469 = vunpack.c.l.b16 %v1457
        %v1470 = vunpack.c.l.b16 %v1458
        %v1471 = vpack.c.b16 %v1468, %v1467
        %v1472 = vpack.c.b16 %v1470, %v1469
        %v1476 = vsel %vm337, %v1454, 0
        %1478 = vmatprep.subr.bf16.mxu0 0
        %1479 = vmatpush1.bf16.msra.mxu0 %v1471
        %1480 = vmatprep.subr.bf16.mxu0 0
        %1481 = vmatpush1.bf16.msra.mxu0 %v1472
        %1482 = vmatprep.subr.bf16.mxu0 0
        %1483 = vmatpush1.bf16.msra.mxu0 0
        %1484 = vmatprep.subr.bf16.mxu0 0
        %1485 = vmatpush1.bf16.msra.mxu0 0
        %1486 = vmatprep.subr.bf16.mxu0 0
        %1487 = vmatpush1.bf16.msra.mxu0 0
        %1488 = vmatprep.subr.bf16.mxu0 0
        %1489 = vmatpush1.bf16.msra.mxu0 0
        %1490 = vmatprep.subr.bf16.mxu0 0
        %1491 = vmatpush1.bf16.msra.mxu0 0
        %1492 = vmatprep.subr.bf16.mxu0 0
        %1493 = vmatpush1.bf16.msra.mxu0 0
        %1494 = vmatprep.subr.bf16.mxu0 0
        %1495 = vmatpush1.bf16.msra.mxu0 0
        %1496 = vmatprep.subr.bf16.mxu0 0
        %1497 = vmatpush1.bf16.msra.mxu0 0
        %1498 = vmatprep.subr.bf16.mxu0 0
        %1499 = vmatpush1.bf16.msra.mxu0 0
        %1500 = vmatprep.subr.bf16.mxu0 0
        %1501 = vmatpush1.bf16.msra.mxu0 0
        %1502 = vmatprep.subr.bf16.mxu0 0
        %1503 = vmatpush1.bf16.msra.mxu0 0
        %1504 = vmatprep.subr.bf16.mxu0 0
        %1505 = vmatpush1.bf16.msra.mxu0 0
        %1506 = vmatprep.subr.bf16.mxu0 0
        %1507 = vmatpush1.bf16.msra.mxu0 0
        %1508 = vmatprep.subr.bf16.mxu0 0
        %1509 = vmatpush1.bf16.msra.mxu0 0
        %1510 = vmatprep.mubr.bf16.mxu0 0
        %1511 = vmatmul.mubr.bf16.gmra.mrb[0].mxu0 %v1476
        %v1512 = vpop.f32.mrb[0].mxu0
        %v1513 = vadd.f32 %v1462, %v1512
        %v1514 = vpop.f32.mrb[0].mxu0
        %v1515 = vpop.f32.mrb[0].mxu0
        %v1516 = vpop.f32.mrb[0].mxu0
        %1517 = vdwg.mxu0
        %v1518 = vadd.f32 %v1513, %v330
        %v1519 = vsel %vm337, %v1518, 0.0
        %1520 = vadd.xlane.f32.xlu0 %v1519
        %v1521 = vpop.xlane.xlu0 %1520
        %v1522 = vmul.f32 %v1521, %v341
        %v1523 = vsub.f32 %v1518, %v1522
        %v1524 = vmul.f32 %v1523, %v1523
        %v1525 = vsel %vm337, %v1524, 0.0
        %1526 = vadd.xlane.f32.xlu0 %v1525
        %v1527 = vpop.xlane.xlu0 %1526
        %v1528 = vmul.f32 %v1527, %v341
        %v1529 = vadd.f32 %v1528, 1e-05
        %v1530 = vrsqrt.pop %v1529
        %v1531 = vmul.f32 %v1523, %v1530
        %v1532 = vlaneseq
        %v1533 = vshrl.u32 %v1532, 7
        %v1534 = vsub.s32 0, %v1533
        %v1535 = vrot.slane %v333, %v1534
        %v1536 = vmul.f32 %v1531, %v1535
        %v1537 = vlaneseq
        %v1538 = vshrl.u32 %v1537, 7
        %v1539 = vsub.s32 0, %v1538
        %v1540 = vrot.slane %v334, %v1539
        %v1541 = vadd.f32 %v1536, %v1540
        %v1542 = vpack.c.bf16 %v1541, %v1541
        %v1543 = vld [vmem:[#allocation5] sm:$0xf]
        %v1544 = vld [vmem:[#allocation5 + $0x4] sm:$0xf]
        %v1545 = vld [vmem:[#allocation5 + $0x8] sm:$0xf]
        %v1546 = vld [vmem:[#allocation5 + $0xc] sm:$0xf]
        %v1547 = vld [vmem:[%s6] sm:$0x1]
        %v1549 = vlaneseq
        %v1550 = vshrl.u32 %v1549, 7
        %v1551 = vsub.s32 0, %v1550
        %v1552 = vrot.slane %v1547, %v1551
        %v1558 = vunpack.c.l.b16 %v1543
        %v1559 = vunpack.c.l.b16 %v1544
        %v1560 = vunpack.c.l.b16 %v1545
        %v1561 = vunpack.c.l.b16 %v1546
        %v1562 = vpack.c.b16 %v1559, %v1558
        %v1563 = vpack.c.b16 %v1561, %v1560
        %v1567 = vsel %vm337, %v1542, 0
        %1569 = vmatprep.subr.bf16.mxu0 0
        %1570 = vmatpush1.bf16.msra.mxu0 %v1562
        %1571 = vmatprep.subr.bf16.mxu0 0
        %1572 = vmatpush1.bf16.msra.mxu0 %v1563
        %1573 = vmatprep.subr.bf16.mxu0 0
        %1574 = vmatpush1.bf16.msra.mxu0 0
        %1575 = vmatprep.subr.bf16.mxu0 0
        %1576 = vmatpush1.bf16.msra.mxu0 0
        %1577 = vmatprep.subr.bf16.mxu0 0
        %1578 = vmatpush1.bf16.msra.mxu0 0
        %1579 = vmatprep.subr.bf16.mxu0 0
        %1580 = vmatpush1.bf16.msra.mxu0 0
        %1581 = vmatprep.subr.bf16.mxu0 0
        %1582 = vmatpush1.bf16.msra.mxu0 0
        %1583 = vmatprep.subr.bf16.mxu0 0
        %1584 = vmatpush1.bf16.msra.mxu0 0
        %1585 = vmatprep.subr.bf16.mxu0 0
        %1586 = vmatpush1.bf16.msra.mxu0 0
        %1587 = vmatprep.subr.bf16.mxu0 0
        %1588 = vmatpush1.bf16.msra.mxu0 0
        %1589 = vmatprep.subr.bf16.mxu0 0
        %1590 = vmatpush1.bf16.msra.mxu0 0
        %1591 = vmatprep.subr.bf16.mxu0 0
        %1592 = vmatpush1.bf16.msra.mxu0 0
        %1593 = vmatprep.subr.bf16.mxu0 0
        %1594 = vmatpush1.bf16.msra.mxu0 0
        %1595 = vmatprep.subr.bf16.mxu0 0
        %1596 = vmatpush1.bf16.msra.mxu0 0
        %1597 = vmatprep.subr.bf16.mxu0 0
        %1598 = vmatpush1.bf16.msra.mxu0 0
        %1599 = vmatprep.subr.bf16.mxu0 0
        %1600 = vmatpush1.bf16.msra.mxu0 0
        %1601 = vmatprep.mubr.bf16.mxu0 0
        %1602 = vmatmul.mubr.bf16.gmra.mrb[0].mxu0 %v1567
        %v1603 = vpop.f32.mrb[0].mxu0
        %v1604 = vadd.f32 %v1552, %v1603
        %v1605 = vpop.f32.mrb[0].mxu0
        %v1606 = vpop.f32.mrb[0].mxu0
        %v1607 = vpop.f32.mrb[0].mxu0
        %1608 = vdwg.mxu0
        %v1609 = vmul.f32 %v1604, 0.5
        %v1610 = vmul.f32 %v1604, 0.044715
        %v1611 = vmul.f32 %v1610, %v1604
        %v1612 = vmul.f32 %v1611, %v1604
        %v1613 = vadd.f32 %v1604, %v1612
        %v1614 = vmul.f32 %v1613, 0.7978846
        %v1615 = vtanh.pop %v1614
        %v1616 = vadd.f32 %v1615, 1.0
        %v1617 = vmul.f32 %v1609, %v1616
        %v1618 = vpack.c.bf16 %v1617, %v1617
        %v1619 = vld [vmem:[%s7] sm:$0xf]
        %v1620 = vld [vmem:[%s7 + $0x4] sm:$0xf]
        %v1621 = vld [vmem:[%s7 + $0x8] sm:$0xf]
        %v1622 = vld [vmem:[%s7 + $0xc] sm:$0xf]
        %v1623 = vld [vmem:[%s7 + $0x10] sm:$0xf]
        %v1624 = vld [vmem:[%s7 + $0x14] sm:$0xf]
        %v1625 = vld [vmem:[%s7 + $0x18] sm:$0xf]
        %v1626 = vld [vmem:[%s7 + $0x1c] sm:$0xf]
        %v1627 = vlaneseq
        %v1628 = vshrl.u32 %v1627, 7
        %v1629 = vsub.s32 0, %v1628
        %v1630 = vrot.slane %v336, %v1629
        %v1639 = vunpack.c.l.b16 %v1619
        %v1640 = vunpack.c.l.b16 %v1620
        %v1641 = vunpack.c.l.b16 %v1621
        %v1642 = vunpack.c.l.b16 %v1622
        %v1643 = vunpack.c.l.b16 %v1623
        %v1644 = vunpack.c.l.b16 %v1624
        %v1645 = vunpack.c.l.b16 %v1625
        %v1646 = vunpack.c.l.b16 %v1626
        %v1647 = vpack.c.b16 %v1640, %v1639
        %v1648 = vpack.c.b16 %v1642, %v1641
        %v1649 = vpack.c.b16 %v1644, %v1643
        %v1650 = vpack.c.b16 %v1646, %v1645
        %vm1655 = vcmask 523264
        %v1657 = vsel %vm1655, %v1618, 0
        %1659 = vmatprep.subr.bf16.mxu0 0
        %1660 = vmatpush1.bf16.msra.mxu0 %v1647
        %1661 = vmatprep.subr.bf16.mxu0 0
        %1662 = vmatpush1.bf16.msra.mxu0 %v1648
        %1663 = vmatprep.subr.bf16.mxu0 0
        %1664 = vmatpush1.bf16.msra.mxu0 %v1649
        %1665 = vmatprep.subr.bf16.mxu0 0
        %1666 = vmatpush1.bf16.msra.mxu0 %v1650
        %1667 = vmatprep.subr.bf16.mxu0 0
        %1668 = vmatpush1.bf16.msra.mxu0 0
        %1669 = vmatprep.subr.bf16.mxu0 0
        %1670 = vmatpush1.bf16.msra.mxu0 0
        %1671 = vmatprep.subr.bf16.mxu0 0
        %1672 = vmatpush1.bf16.msra.mxu0 0
        %1673 = vmatprep.subr.bf16.mxu0 0
        %1674 = vmatpush1.bf16.msra.mxu0 0
        %1675 = vmatprep.subr.bf16.mxu0 0
        %1676 = vmatpush1.bf16.msra.mxu0 0
        %1677 = vmatprep.subr.bf16.mxu0 0
        %1678 = vmatpush1.bf16.msra.mxu0 0
        %1679 = vmatprep.subr.bf16.mxu0 0
        %1680 = vmatpush1.bf16.msra.mxu0 0
        %1681 = vmatprep.subr.bf16.mxu0 0
        %1682 = vmatpush1.bf16.msra.mxu0 0
        %1683 = vmatprep.subr.bf16.mxu0 0
        %1684 = vmatpush1.bf16.msra.mxu0 0
        %1685 = vmatprep.subr.bf16.mxu0 0
        %1686 = vmatpush1.bf16.msra.mxu0 0
        %1687 = vmatprep.subr.bf16.mxu0 0
        %1688 = vmatpush1.bf16.msra.mxu0 0
        %1689 = vmatprep.subr.bf16.mxu0 0
        %1690 = vmatpush1.bf16.msra.mxu0 0
        %1691 = vmatprep.mubr.bf16.mxu0 0
        %1692 = vmatmul.mubr.bf16.gmra.mrb[0].mxu0 %v1657
        %v1693 = vpop.f32.mrb[0].mxu0
        %v1694 = vadd.f32 %v1630, %v1693
        %v1695 = vpop.f32.mrb[0].mxu0
        %v1696 = vpop.f32.mrb[0].mxu0
        %v1697 = vpop.f32.mrb[0].mxu0
        %1698 = vdwg.mxu0
        %v1699 = vadd.f32 %v1518, %v1694
        %1700 = vst.msk [vmem:[%s324] sm:$0xff] %vm337, %v1699
        %s1701 = sand.u32 %s205, 1
        %s1702 = scalar_lea.sflag [#allocation4], %s1701
        %s1703 = sand.u32 %s205, 1
        %s1704 = smul.addr %s1703, 8
        %s1705 = scalar_lea.vmem [#allocation7], %s1704
        // Predicated region
        $region61: #{tpu_custom_call.1} parent=51 // pred_check
          %p1706 = pneg %p215
        $region62: #{tpu_custom_call.1} parent=51 // pred_check_branch
          %1708 = sbr.rel (%p1706) target = $region64
        $region63: #{tpu_custom_call.1} parent=51 // pred_region
          %s1710 = ssub.s32 128, 128
          %1711 = vsyncadd %s1702, %s1710
          %s1712 = smul.addr %s24, 128
          %s1713 = scalar_lea.hbm %s8, %s1712
          %s1715 = sshll.u32 %s1705, 4
          %s1716 = int_to_ptr.vmem [resolvable:$true] %s1715
          %1718 = dma.vmem_to_hbm [thread:$0]  %s1716, 128, %s1713, %s1702
        $region64: #{tpu_custom_call.1} parent=51 // pred_fallthru
          _
      $region52: #{tpu_custom_call.1} parent=5 // pred_fallthru
        _
      %p1719 = scmp.le.s32.totalorder 2, %s19
      // Predicated region
      $region65: #{tpu_custom_call.1} parent=5 // pred_check
        %p1720 = pneg %p1719
      $region66: #{tpu_custom_call.1} parent=5 // pred_check_branch
        %1722 = sbr.rel (%p1720) target = $region68
      $region67: #{tpu_custom_call.1} parent=5 // pred_region
        %s1723 = ssub.s32 %s19, 2
        // Predicated region
        $region69: #{tpu_custom_call.1} parent=67 // pred_check
          %p1724 = pneg %p221
        $region70: #{tpu_custom_call.1} parent=67 // pred_check_branch
          %1726 = sbr.rel (%p1724) target = $region72
        $region71: #{tpu_custom_call.1} parent=67 // pred_region
          %s1727 = sand.u32 %s206, 1
          %s1728 = scalar_lea.sflag [#allocation4], %s1727
          %s1729 = sand.u32 %s206, 1
          %s1730 = smul.addr %s1729, 8
          %s1731 = scalar_lea.vmem [#allocation7], %s1730
          %1732 = dma.done %s1728, 128
        $region72: #{tpu_custom_call.1} parent=67 // pred_fallthru
          _
      $region68: #{tpu_custom_call.1} parent=5 // pred_fallthru
        _
    $region6: #{tpu_custom_call.1} parent=1 // loop_footer
      %s23 = sadd.s32 1, %s19
    $region7: #{tpu_custom_call.1} parent=1 // loop_footer_branch
      %18 = sbr.rel target = $region3
    $region8: #{tpu_custom_call.1} parent=1 // loop_exit
      _
    %1733 = vsyncpa [#allocation3], 1
    %s1734 = scalar_lea.sflag [#allocation3], 1
    %1735 = vsyncpa %s1734, 1
    %1736 = vsyncpa [#allocation6], 1
    %1737 = vsyncpa [#allocation4], 1
    %s1738 = scalar_lea.sflag [#allocation4], 1
    %1739 = vsyncpa %s1738, 1

// kernel: tpu_custom_call.1
$region0: #{tpu_custom_call.1}
  #allocation0 [shape = 'u32[]', space=smem, size = 0x4, offset = 0x4, fixed_abs, tag = 'smem constant byte address 0x4 - core index']
  #allocation1 [shape = 'u32[144,128]{1,0:T(1,128)}', space=vmem, size = 0x12000, scoped, tag = 'internal scratch']
  %s0 = inlined_call_operand.vmem [shape: f32[2,8,32], index: 0, kind: input, shape index: {}]
  %s1 = inlined_call_operand.hbm [shape: f32[6,32], index: 1, kind: input, shape index: {}]
  %s2 = inlined_call_operand.vmem [shape: bf16[32,96], index: 2, kind: input, shape index: {}]
  %s3 = inlined_call_operand.vmem [shape: f32[1,96], index: 3, kind: input, shape index: {}]
  %s4 = inlined_call_operand.vmem [shape: bf16[32,32], index: 4, kind: input, shape index: {}]
  %s5 = inlined_call_operand.hbm [shape: bf16[32,64], index: 5, kind: input, shape index: {}]
  %s6 = inlined_call_operand.vmem [shape: f32[1,64], index: 6, kind: input, shape index: {}]
  %s7 = inlined_call_operand.vmem [shape: bf16[64,32], index: 7, kind: input, shape index: {}]
  %s8 = inlined_call_operand.hbm [shape: f32[2,8,32], index: 8, kind: output, shape index: {}]
  %s9 = sld [smem:[#allocation0]]
  $region73: #{tpu_custom_call.1} parent=0
    _
  %s11 = ssub.s32 1, %s9
  %s12 = scalar_select 0, %s11, %s9
  $region1: #{tpu_custom_call.1} parent=0
    #allocation2 [shape = 'u8[4096]{0}', space=vmem, size = 0x1000, scoped, tag = 'input window, operand 1, single buffered']
    #allocation3 [shape = 's32[2]{0}', space=sflag, size = 0x8, scoped, tag = 'scoped memory for tpu_custom_call.1']
    #allocation4 [shape = 's32[2]{0}', space=sflag, size = 0x8, scoped, tag = 'scoped memory for tpu_custom_call.1']
    #allocation5 [shape = 'u8[8192]{0}', space=vmem, size = 0x2000, scoped, tag = 'input window, operand 5, single buffered']
    #allocation6 [shape = 's32[1]{0}', space=sflag, size = 0x4, scoped, tag = 'scoped memory for tpu_custom_call.1']
    #allocation7 [shape = 'u8[8192]{0}', space=vmem, size = 0x2000, scoped, tag = 'output window, operand 0']
    %13 = vsyncpa [#allocation3], 0
    %14 = vsyncpa [#allocation6], 0
    %15 = vsyncpa [#allocation4], 0
    %s16 = scalar_lea.sflag [#allocation4], 1
    %17 = vsyncpa %s16, 0
    loop: start=0, step=1, limit=4
    $region2: #{tpu_custom_call.1} parent=1 // loop_pre_header
      _
    $region3: #{tpu_custom_call.1} parent=1 // loop_header
      %s19 = sphi 0, %s23
      %p20 = scmp.ge.s32.totalorder %s19, 4
      %s29 = sphi 0, %s31
      %s32 = sphi 0, %s29
      %s33 = sphi 0, %s32
      %s49 = sphi 0, %s33
      %s53 = sphi 0, %s53
      %s55 = sphi 0, %s53
      %s56 = sphi 0, %s55
      %s70 = sphi 0, %s56
      %s74 = sphi 0, %s74
      %s76 = sphi 0, %s74
      %s77 = sphi 0, %s76
      %s91 = sphi 0, %s77
      %s95 = sphi 0, %s95
      %s97 = sphi 0, %s95
      %s98 = sphi 0, %s97
      %s112 = sphi 0, %s98
      %s116 = sphi 0, %s116
      %s118 = sphi 0, %s116
      %s119 = sphi 0, %s118
      %s133 = sphi 0, %s119
      %s137 = sphi 0, %s137
      %s139 = sphi 0, %s137
      %s140 = sphi 0, %s139
      %s154 = sphi 0, %s140
      %s158 = sphi 0, %s158
      %s160 = sphi 0, %s158
      %s161 = sphi 0, %s160
      %s175 = sphi 0, %s161
      %s179 = sphi 0, %s179
      %s181 = sphi 0, %s179
      %s182 = sphi 0, %s181
      %s196 = sphi 0, %s182
      %s202 = sphi 0, %s204
      %s205 = sphi 0, %s202
      %s206 = sphi 0, %s205
      %s222 = sphi 0, %s206
    $region4: #{tpu_custom_call.1} parent=1 // loop_header_branch
      %22 = sbr.rel (%p20) target = $region8
    $region5: #{tpu_custom_call.1} parent=1 // loop_body
      %s24 = ssub.s32 %s19, 1
      %s25 = ssub.s32 %s19, 2
      %s26 = sadd.s32 %s19, 1
      %s27 = ssub.s32 %s19, %s26
      %p28 = scmp.eq.s32.totalorder %s27, 0
      %s30 = sadd.s32 %s29, 1
      %s31 = scalar_select %p28, %s29, %s30
      %p34 = pneg %p28
      %p35 = scmp.eq.s32.totalorder %s19, 1
      %p36 = por %p34, %p35
      %p37 = scmp.ne.s32.totalorder %s29, %s32
      %p38 = scmp.eq.s32.totalorder %s19, 0
      %p39 = por %p37, %p38
      %p40 = scmp.ne.s32.totalorder %s29, %s32
      %p41 = scmp.eq.s32.totalorder %s24, 1
      %p42 = por %p40, %p41
      %p43 = scmp.ne.s32.totalorder %s32, %s33
      %p44 = scmp.eq.s32.totalorder %s24, 0
      %p45 = por %p43, %p44
      %p46 = scmp.ne.s32.totalorder %s32, %s33
      %p47 = scmp.eq.s32.totalorder %s25, 1
      %p48 = por %p46, %p47
      %p50 = scmp.ne.s32.totalorder %s33, %s49
      %p51 = scmp.eq.s32.totalorder %s25, 0
      %p52 = por %p50, %p51
      %s54 = sadd.s32 %s53, 1
      %p57 = scmp.eq.s32.totalorder %s19, 1
      %p58 = scmp.ne.s32.totalorder %s53, %s55
      %p59 = scmp.eq.s32.totalorder %s19, 0
      %p60 = por %p58, %p59
      %p61 = scmp.ne.s32.totalorder %s53, %s55
      %p62 = scmp.eq.s32.totalorder %s24, 1
      %p63 = por %p61, %p62
      %p64 = scmp.ne.s32.totalorder %s55, %s56
      %p65 = scmp.eq.s32.totalorder %s24, 0
      %p66 = por %p64, %p65
      %p67 = scmp.ne.s32.totalorder %s55, %s56
      %p68 = scmp.eq.s32.totalorder %s25, 1
      %p69 = por %p67, %p68
      %p71 = scmp.ne.s32.totalorder %s56, %s70
      %p72 = scmp.eq.s32.totalorder %s25, 0
      %p73 = por %p71, %p72
      %s75 = sadd.s32 %s74, 1
      %p78 = scmp.eq.s32.totalorder %s19, 1
      %p79 = scmp.ne.s32.totalorder %s74, %s76
      %p80 = scmp.eq.s32.totalorder %s19, 0
      %p81 = por %p79, %p80
      %p82 = scmp.ne.s32.totalorder %s74, %s76
      %p83 = scmp.eq.s32.totalorder %s24, 1
      %p84 = por %p82, %p83
      %p85 = scmp.ne.s32.totalorder %s76, %s77
      %p86 = scmp.eq.s32.totalorder %s24, 0
      %p87 = por %p85, %p86
      %p88 = scmp.ne.s32.totalorder %s76, %s77
      %p89 = scmp.eq.s32.totalorder %s25, 1
      %p90 = por %p88, %p89
      %p92 = scmp.ne.s32.totalorder %s77, %s91
      %p93 = scmp.eq.s32.totalorder %s25, 0
      %p94 = por %p92, %p93
      %s96 = sadd.s32 %s95, 1
      %p99 = scmp.eq.s32.totalorder %s19, 1
      %p100 = scmp.ne.s32.totalorder %s95, %s97
      %p101 = scmp.eq.s32.totalorder %s19, 0
      %p102 = por %p100, %p101
      %p103 = scmp.ne.s32.totalorder %s95, %s97
      %p104 = scmp.eq.s32.totalorder %s24, 1
      %p105 = por %p103, %p104
      %p106 = scmp.ne.s32.totalorder %s97, %s98
      %p107 = scmp.eq.s32.totalorder %s24, 0
      %p108 = por %p106, %p107
      %p109 = scmp.ne.s32.totalorder %s97, %s98
      %p110 = scmp.eq.s32.totalorder %s25, 1
      %p111 = por %p109, %p110
      %p113 = scmp.ne.s32.totalorder %s98, %s112
      %p114 = scmp.eq.s32.totalorder %s25, 0
      %p115 = por %p113, %p114
      %s117 = sadd.s32 %s116, 1
      %p120 = scmp.eq.s32.totalorder %s19, 1
      %p121 = scmp.ne.s32.totalorder %s116, %s118
      %p122 = scmp.eq.s32.totalorder %s19, 0
      %p123 = por %p121, %p122
      %p124 = scmp.ne.s32.totalorder %s116, %s118
      %p125 = scmp.eq.s32.totalorder %s24, 1
      %p126 = por %p124, %p125
      %p127 = scmp.ne.s32.totalorder %s118, %s119
      %p128 = scmp.eq.s32.totalorder %s24, 0
      %p129 = por %p127, %p128
      %p130 = scmp.ne.s32.totalorder %s118, %s119
      %p131 = scmp.eq.s32.totalorder %s25, 1
      %p132 = por %p130, %p131
      %p134 = scmp.ne.s32.totalorder %s119, %s133
      %p135 = scmp.eq.s32.totalorder %s25, 0
      %p136 = por %p134, %p135
      %s138 = sadd.s32 %s137, 1
      %p141 = scmp.eq.s32.totalorder %s19, 1
      %p142 = scmp.ne.s32.totalorder %s137, %s139
      %p143 = scmp.eq.s32.totalorder %s19, 0
      %p144 = por %p142, %p143
      %p145 = scmp.ne.s32.totalorder %s137, %s139
      %p146 = scmp.eq.s32.totalorder %s24, 1
      %p147 = por %p145, %p146
      %p148 = scmp.ne.s32.totalorder %s139, %s140
      %p149 = scmp.eq.s32.totalorder %s24, 0
      %p150 = por %p148, %p149
      %p151 = scmp.ne.s32.totalorder %s139, %s140
      %p152 = scmp.eq.s32.totalorder %s25, 1
      %p153 = por %p151, %p152
      %p155 = scmp.ne.s32.totalorder %s140, %s154
      %p156 = scmp.eq.s32.totalorder %s25, 0
      %p157 = por %p155, %p156
      %s159 = sadd.s32 %s158, 1
      %p162 = scmp.eq.s32.totalorder %s19, 1
      %p163 = scmp.ne.s32.totalorder %s158, %s160
      %p164 = scmp.eq.s32.totalorder %s19, 0
      %p165 = por %p163, %p164
      %p166 = scmp.ne.s32.totalorder %s158, %s160
      %p167 = scmp.eq.s32.totalorder %s24, 1
      %p168 = por %p166, %p167
      %p169 = scmp.ne.s32.totalorder %s160, %s161
      %p170 = scmp.eq.s32.totalorder %s24, 0
      %p171 = por %p169, %p170
      %p172 = scmp.ne.s32.totalorder %s160, %s161
      %p173 = scmp.eq.s32.totalorder %s25, 1
      %p174 = por %p172, %p173
      %p176 = scmp.ne.s32.totalorder %s161, %s175
      %p177 = scmp.eq.s32.totalorder %s25, 0
      %p178 = por %p176, %p177
      %s180 = sadd.s32 %s179, 1
      %p183 = scmp.eq.s32.totalorder %s19, 1
      %p184 = scmp.ne.s32.totalorder %s179, %s181
      %p185 = scmp.eq.s32.totalorder %s19, 0
      %p186 = por %p184, %p185
      %p187 = scmp.ne.s32.totalorder %s179, %s181
      %p188 = scmp.eq.s32.totalorder %s24, 1
      %p189 = por %p187, %p188
      %p190 = scmp.ne.s32.totalorder %s181, %s182
      %p191 = scmp.eq.s32.totalorder %s24, 0
      %p192 = por %p190, %p191
      %p193 = scmp.ne.s32.totalorder %s181, %s182
      %p194 = scmp.eq.s32.totalorder %s25, 1
      %p195 = por %p193, %p194
      %p197 = scmp.ne.s32.totalorder %s182, %s196
      %p198 = scmp.eq.s32.totalorder %s25, 0
      %p199 = por %p197, %p198
      %s200 = ssub.s32 %s19, %s26
      %p201 = scmp.eq.s32.totalorder %s200, 0
      %s203 = sadd.s32 %s202, 1
      %s204 = scalar_select %p201, %s202, %s203
      %p207 = pneg %p201
      %p208 = scmp.eq.s32.totalorder %s19, 1
      %p209 = por %p207, %p208
      %p210 = scmp.ne.s32.totalorder %s202, %s205
      %p211 = scmp.eq.s32.totalorder %s19, 0
      %p212 = por %p210, %p211
      %p213 = scmp.ne.s32.totalorder %s202, %s205
      %p214 = scmp.eq.s32.totalorder %s24, 1
      %p215 = por %p213, %p214
      %p216 = scmp.ne.s32.totalorder %s205, %s206
      %p217 = scmp.eq.s32.totalorder %s24, 0
      %p218 = por %p216, %p217
      %p219 = scmp.ne.s32.totalorder %s205, %s206
      %p220 = scmp.eq.s32.totalorder %s25, 1
      %p221 = por %p219, %p220
      %p223 = scmp.ne.s32.totalorder %s206, %s222
      %p224 = scmp.eq.s32.totalorder %s25, 0
      %p225 = por %p223, %p224
      %p226 = scmp.le.s32.totalorder 1, %s19
      %p227 = scmp.lt.s32.totalorder %s19, 3
      %p228 = pnand %p226, %p227
      %p229 = pneg %p228
      // Predicated region
      $region9: #{tpu_custom_call.1} parent=5 // pred_check
        _
      $region10: #{tpu_custom_call.1} parent=5 // pred_check_branch
        %231 = sbr.rel (%p228) target = $region12
      $region11: #{tpu_custom_call.1} parent=5 // pred_region
        %s232 = ssub.s32 %s19, 1
        // Predicated region
        $region13: #{tpu_custom_call.1} parent=11 // pred_check
          %p233 = pneg %p66
        $region14: #{tpu_custom_call.1} parent=11 // pred_check_branch
          %235 = sbr.rel (%p233) target = $region16
        $region15: #{tpu_custom_call.1} parent=11 // pred_region
          %s237 = ssub.s32 128, 128
          %238 = vsyncadd [#allocation3], %s237
          %s240 = sshll.u32 [#allocation2], 4
          %s241 = int_to_ptr.vmem [resolvable:$true] %s240
          %243 = dma.hbm_to_vmem [thread:$0]  %s1, 128, %s241, [#allocation3]
        $region16: #{tpu_custom_call.1} parent=11 // pred_fallthru
          _
        // Predicated region
        $region17: #{tpu_custom_call.1} parent=11 // pred_check
          %p244 = pneg %p87
        $region18: #{tpu_custom_call.1} parent=11 // pred_check_branch
          %246 = sbr.rel (%p244) target = $region20
        $region19: #{tpu_custom_call.1} parent=11 // pred_region
          _
        $region20: #{tpu_custom_call.1} parent=11 // pred_fallthru
          _
        // Predicated region
        $region21: #{tpu_custom_call.1} parent=11 // pred_check
          %p247 = pneg %p108
        $region22: #{tpu_custom_call.1} parent=11 // pred_check_branch
          %249 = sbr.rel (%p247) target = $region24
        $region23: #{tpu_custom_call.1} parent=11 // pred_region
          _
        $region24: #{tpu_custom_call.1} parent=11 // pred_fallthru
          _
        // Predicated region
        $region25: #{tpu_custom_call.1} parent=11 // pred_check
          %p250 = pneg %p129
        $region26: #{tpu_custom_call.1} parent=11 // pred_check_branch
          %252 = sbr.rel (%p250) target = $region28
        $region27: #{tpu_custom_call.1} parent=11 // pred_region
          _
        $region28: #{tpu_custom_call.1} parent=11 // pred_fallthru
          _
        // Predicated region
        $region29: #{tpu_custom_call.1} parent=11 // pred_check
          %p253 = pneg %p150
        $region30: #{tpu_custom_call.1} parent=11 // pred_check_branch
          %255 = sbr.rel (%p253) target = $region32
        $region31: #{tpu_custom_call.1} parent=11 // pred_region
          %s257 = ssub.s32 256, 256
          %258 = vsyncadd [#allocation6], %s257
          %s259 = sshll.u32 [#allocation5], 4
          %s260 = int_to_ptr.vmem [resolvable:$true] %s259
          %265 = dma.hbm_to_vmem [thread:$0]  %s5, 256, %s260, [#allocation6], 64, 64, 4
        $region32: #{tpu_custom_call.1} parent=11 // pred_fallthru
          _
        // Predicated region
        $region33: #{tpu_custom_call.1} parent=11 // pred_check
          %p266 = pneg %p171
        $region34: #{tpu_custom_call.1} parent=11 // pred_check_branch
          %268 = sbr.rel (%p266) target = $region36
        $region35: #{tpu_custom_call.1} parent=11 // pred_region
          _
        $region36: #{tpu_custom_call.1} parent=11 // pred_fallthru
          _
        // Predicated region
        $region37: #{tpu_custom_call.1} parent=11 // pred_check
          %p269 = pneg %p192
        $region38: #{tpu_custom_call.1} parent=11 // pred_check_branch
          %271 = sbr.rel (%p269) target = $region40
        $region39: #{tpu_custom_call.1} parent=11 // pred_region
          _
        $region40: #{tpu_custom_call.1} parent=11 // pred_fallthru
          _
      $region12: #{tpu_custom_call.1} parent=5 // pred_fallthru
        _
      %p272 = scmp.lt.s32.totalorder %s19, 2
      // Predicated region
      $region41: #{tpu_custom_call.1} parent=5 // pred_check
        %p273 = pneg %p272
      $region42: #{tpu_custom_call.1} parent=5 // pred_check_branch
        %275 = sbr.rel (%p273) target = $region44
      $region43: #{tpu_custom_call.1} parent=5 // pred_region
        // Predicated region
        $region45: #{tpu_custom_call.1} parent=43 // pred_check
          %p276 = pneg %p39
        $region46: #{tpu_custom_call.1} parent=43 // pred_check_branch
          %278 = sbr.rel (%p276) target = $region48
        $region47: #{tpu_custom_call.1} parent=43 // pred_region
          %p279 = scmp.lt.s32.totalorder %s19, 1
          %s280 = scalar_select %p279, %s19, 1
          %s281 = smul.addr %s280, 8
          %s282 = scalar_lea.vmem %s0, %s281
        $region48: #{tpu_custom_call.1} parent=43 // pred_fallthru
          _
      $region44: #{tpu_custom_call.1} parent=5 // pred_fallthru
        _
      %p283 = scmp.le.s32.totalorder 1, %s19
      %p284 = scmp.lt.s32.totalorder %s19, 3
      %p285 = pnand %p283, %p284
      %p286 = pneg %p285
      // Predicated region
      $region49: #{tpu_custom_call.1} parent=5 // pred_check
        _
      $region50: #{tpu_custom_call.1} parent=5 // pred_check_branch
        %288 = sbr.rel (%p285) target = $region52
      $region51: #{tpu_custom_call.1} parent=5 // pred_region
        %s289 = ssub.s32 %s19, 1
        // Predicated region
        $region53: #{tpu_custom_call.1} parent=51 // pred_check
          %p290 = pneg %p66
        $region54: #{tpu_custom_call.1} parent=51 // pred_check_branch
          %292 = sbr.rel (%p290) target = $region56
        $region55: #{tpu_custom_call.1} parent=51 // pred_region
          %293 = dma.done [#allocation3], 128
        $region56: #{tpu_custom_call.1} parent=51 // pred_fallthru
          _
        // Predicated region
        $region57: #{tpu_custom_call.1} parent=51 // pred_check
          %p294 = pneg %p150
        $region58: #{tpu_custom_call.1} parent=51 // pred_check_branch
          %296 = sbr.rel (%p294) target = $region60
        $region59: #{tpu_custom_call.1} parent=51 // pred_region
          %297 = dma.done [#allocation6], 256
        $region60: #{tpu_custom_call.1} parent=51 // pred_fallthru
          _
        %p298 = scmp.lt.s32.totalorder %s24, 1
        %s299 = scalar_select %p298, %s24, 1
        %s300 = smul.addr %s299, 8
        %s301 = scalar_lea.vmem %s0, %s300
        %p302 = pneg %p45
        %p303 = pneg %p42
        %p304 = pneg %p66
        %p305 = pneg %p63
        %p306 = pneg %p87
        %p307 = pneg %p84
        %p308 = pneg %p108
        %p309 = pneg %p105
        %p310 = pneg %p129
        %p311 = pneg %p126
        %p312 = pneg %p150
        %p313 = pneg %p147
        %p314 = pneg %p171
        %p315 = pneg %p168
        %p316 = pneg %p192
        %p317 = pneg %p189
        %p318 = pneg %p218
        %p319 = pneg %p215
        %s320 = sand.u32 %s205, 1
        %s321 = scalar_lea.sflag [#allocation4], %s320
        %s322 = sand.u32 %s205, 1
        %s323 = smul.addr %s322, 8
        %s324 = scalar_lea.vmem [#allocation7], %s323
        %p325 = scmp.lt.s32.totalorder %s24, 1
        %s326 = scalar_select %p325, %s24, 1
        %s327 = smul.addr %s326, 8
        %s328 = scalar_lea.vmem %s0, %s327
        %v330 = vld [vmem:[%s328] sm:$0xff]
        %v331 = vld [vmem:[#allocation2] sm:$0x1]
        %v332 = vld [vmem:[#allocation2 + $0x1] sm:$0x1]
        %v333 = vld [vmem:[#allocation2 + $0x2] sm:$0x1]
        %v334 = vld [vmem:[#allocation2 + $0x3] sm:$0x1]
        %v335 = vld [vmem:[#allocation2 + $0x4] sm:$0x1]
        %v336 = vld [vmem:[#allocation2 + $0x5] sm:$0x1]
        %vm337 = vcmask 261120
        %v338 = vsel %vm337, %v330, 0.0
        %339 = vadd.xlane.f32.xlu0 %v338
        %v340 = vpop.xlane.xlu0 %339
        %v341 = vrcp.pop 32.0
        %v342 = vmul.f32 %v340, %v341
        %v343 = vsub.f32 %v330, %v342
        %v344 = vmul.f32 %v343, %v343
        %v345 = vsel %vm337, %v344, 0.0
        %346 = vadd.xlane.f32.xlu0 %v345
        %v347 = vpop.xlane.xlu0 %346
        %v348 = vmul.f32 %v347, %v341
        %v349 = vadd.f32 %v348, 1e-05
        %v350 = vrsqrt.pop %v349
        %v351 = vmul.f32 %v343, %v350
        %v352 = vlaneseq
        %v353 = vshrl.u32 %v352, 7
        %v354 = vsub.s32 0, %v353
        %v355 = vrot.slane %v331, %v354
        %v356 = vmul.f32 %v351, %v355
        %v357 = vlaneseq
        %v358 = vshrl.u32 %v357, 7
        %v359 = vsub.s32 0, %v358
        %v360 = vrot.slane %v332, %v359
        %v361 = vadd.f32 %v356, %v360
        %v362 = vpack.c.bf16 %v361, %v361
        %v363 = vld [vmem:[%s2] sm:$0xf]
        %v364 = vld [vmem:[%s2 + $0x4] sm:$0xf]
        %v365 = vld [vmem:[%s2 + $0x8] sm:$0xf]
        %v366 = vld [vmem:[%s2 + $0xc] sm:$0xf]
        %v367 = vld [vmem:[%s3] sm:$0x1]
        %v369 = vlaneseq
        %v370 = vshrl.u32 %v369, 7
        %v371 = vsub.s32 0, %v370
        %v372 = vrot.slane %v367, %v371
        %v378 = vunpack.c.l.b16 %v363
        %v379 = vunpack.c.l.b16 %v364
        %v380 = vunpack.c.l.b16 %v365
        %v381 = vunpack.c.l.b16 %v366
        %v382 = vpack.c.b16 %v379, %v378
        %v383 = vpack.c.b16 %v381, %v380
        %v387 = vsel %vm337, %v362, 0
        %389 = vmatprep.subr.bf16.mxu0 0
        %390 = vmatpush1.bf16.msra.mxu0 %v382
        %391 = vmatprep.subr.bf16.mxu0 0
        %392 = vmatpush1.bf16.msra.mxu0 %v383
        %393 = vmatprep.subr.bf16.mxu0 0
        %394 = vmatpush1.bf16.msra.mxu0 0
        %395 = vmatprep.subr.bf16.mxu0 0
        %396 = vmatpush1.bf16.msra.mxu0 0
        %397 = vmatprep.subr.bf16.mxu0 0
        %398 = vmatpush1.bf16.msra.mxu0 0
        %399 = vmatprep.subr.bf16.mxu0 0
        %400 = vmatpush1.bf16.msra.mxu0 0
        %401 = vmatprep.subr.bf16.mxu0 0
        %402 = vmatpush1.bf16.msra.mxu0 0
        %403 = vmatprep.subr.bf16.mxu0 0
        %404 = vmatpush1.bf16.msra.mxu0 0
        %405 = vmatprep.subr.bf16.mxu0 0
        %406 = vmatpush1.bf16.msra.mxu0 0
        %407 = vmatprep.subr.bf16.mxu0 0
        %408 = vmatpush1.bf16.msra.mxu0 0
        %409 = vmatprep.subr.bf16.mxu0 0
        %410 = vmatpush1.bf16.msra.mxu0 0
        %411 = vmatprep.subr.bf16.mxu0 0
        %412 = vmatpush1.bf16.msra.mxu0 0
        %413 = vmatprep.subr.bf16.mxu0 0
        %414 = vmatpush1.bf16.msra.mxu0 0
        %415 = vmatprep.subr.bf16.mxu0 0
        %416 = vmatpush1.bf16.msra.mxu0 0
        %417 = vmatprep.subr.bf16.mxu0 0
        %418 = vmatpush1.bf16.msra.mxu0 0
        %419 = vmatprep.subr.bf16.mxu0 0
        %420 = vmatpush1.bf16.msra.mxu0 0
        %421 = vmatprep.mubr.bf16.mxu0 0
        %422 = vmatmul.mubr.bf16.gmra.mrb[0].mxu0 %v387
        %v423 = vpop.f32.mrb[0].mxu0
        %v424 = vadd.f32 %v372, %v423
        %v425 = vpop.f32.mrb[0].mxu0
        %v426 = vpop.f32.mrb[0].mxu0
        %v427 = vpop.f32.mrb[0].mxu0
        %428 = vdwg.mxu0
        %430 = vrot.lane.b32.xlu0 %v424, 120
        %v431 = vpop.permute.xlu0 %430
        %433 = vrot.lane.b32.xlu0 %v424, 112
        %v434 = vpop.permute.xlu0 %433
        %436 = vrot.lane.b32.xlu0 %v424, 104
        %v437 = vpop.permute.xlu0 %436
        %439 = vrot.lane.b32.xlu0 %v424, 96
        %v440 = vpop.permute.xlu0 %439
        %442 = vrot.lane.b32.xlu0 %v424, 88
        %v443 = vpop.permute.xlu0 %442
        %445 = vrot.lane.b32.xlu0 %v424, 80
        %v446 = vpop.permute.xlu0 %445
        %448 = vrot.lane.b32.xlu0 %v424, 72
        %v449 = vpop.permute.xlu0 %448
        %451 = vrot.lane.b32.xlu0 %v424, 64
        %v452 = vpop.permute.xlu0 %451
        %454 = vrot.lane.b32.xlu0 %v424, 56
        %v455 = vpop.permute.xlu0 %454
        %457 = vrot.lane.b32.xlu0 %v424, 48
        %v458 = vpop.permute.xlu0 %457
        %460 = vrot.lane.b32.xlu0 %v424, 40
        %v461 = vpop.permute.xlu0 %460
        %v463 = vcombine.low %v424, %v434
        %v464 = vcombine.high %v424, %v434
        %v466 = vunpack.c.l.s4 1983009808
        %v467 = vunpack.c.0.s8 %v466
        %v468 = vlaneseq
        %v469 = vshrl.u32 %v468, 7
        %v470 = vsub.s32 %v467, %v469
        %v471 = vrot.slane %v463, %v470
        %v473 = vunpack.c.l.s4 1983009808
        %v474 = vunpack.c.0.s8 %v473
        %v475 = vlaneseq
        %v476 = vshrl.u32 %v475, 7
        %v477 = vsub.s32 %v474, %v476
        %v478 = vrot.slane %v464, %v477
        %v479 = vcombine.low %v431, %v437
        %v480 = vcombine.high %v431, %v437
        %v482 = vunpack.c.l.s4 1983009808
        %v483 = vunpack.c.0.s8 %v482
        %v484 = vlaneseq
        %v485 = vshrl.u32 %v484, 7
        %v486 = vsub.s32 %v483, %v485
        %v487 = vrot.slane %v479, %v486
        %v489 = vunpack.c.l.s4 1983009808
        %v490 = vunpack.c.0.s8 %v489
        %v491 = vlaneseq
        %v492 = vshrl.u32 %v491, 7
        %v493 = vsub.s32 %v490, %v492
        %v494 = vrot.slane %v480, %v493
        %v495 = vcombine.low %v440, %v446
        %v496 = vcombine.high %v440, %v446
        %v498 = vunpack.c.l.s4 1983009808
        %v499 = vunpack.c.0.s8 %v498
        %v500 = vlaneseq
        %v501 = vshrl.u32 %v500, 7
        %v502 = vsub.s32 %v499, %v501
        %v503 = vrot.slane %v495, %v502
        %v505 = vunpack.c.l.s4 1983009808
        %v506 = vunpack.c.0.s8 %v505
        %v507 = vlaneseq
        %v508 = vshrl.u32 %v507, 7
        %v509 = vsub.s32 %v506, %v508
        %v510 = vrot.slane %v496, %v509
        %v511 = vcombine.low %v443, %v449
        %v512 = vcombine.high %v443, %v449
        %v514 = vunpack.c.l.s4 1983009808
        %v515 = vunpack.c.0.s8 %v514
        %v516 = vlaneseq
        %v517 = vshrl.u32 %v516, 7
        %v518 = vsub.s32 %v515, %v517
        %v519 = vrot.slane %v511, %v518
        %v521 = vunpack.c.l.s4 1983009808
        %v522 = vunpack.c.0.s8 %v521
        %v523 = vlaneseq
        %v524 = vshrl.u32 %v523, 7
        %v525 = vsub.s32 %v522, %v524
        %v526 = vrot.slane %v512, %v525
        %v527 = vcombine.low %v471, %v487
        %v528 = vcombine.high %v471, %v487
        %v530 = vunpack.c.l.s4 1934713408
        %v531 = vunpack.c.0.s8 %v530
        %v532 = vlaneseq
        %v533 = vshrl.u32 %v532, 7
        %v534 = vsub.s32 %v531, %v533
        %v535 = vrot.slane %v527, %v534
        %v537 = vunpack.c.l.s4 1934713408
        %v538 = vunpack.c.0.s8 %v537
        %v539 = vlaneseq
        %v540 = vshrl.u32 %v539, 7
        %v541 = vsub.s32 %v538, %v540
        %v542 = vrot.slane %v528, %v541
        %v543 = vcombine.low %v478, %v494
        %v544 = vcombine.high %v478, %v494
        %v546 = vunpack.c.l.s4 1934713408
        %v547 = vunpack.c.0.s8 %v546
        %v548 = vlaneseq
        %v549 = vshrl.u32 %v548, 7
        %v550 = vsub.s32 %v547, %v549
        %v551 = vrot.slane %v543, %v550
        %v553 = vunpack.c.l.s4 1934713408
        %v554 = vunpack.c.0.s8 %v553
        %v555 = vlaneseq
        %v556 = vshrl.u32 %v555, 7
        %v557 = vsub.s32 %v554, %v556
        %v558 = vrot.slane %v544, %v557
        %v559 = vcombine.low %v503, %v519
        %v560 = vcombine.high %v503, %v519
        %v562 = vunpack.c.l.s4 1934713408
        %v563 = vunpack.c.0.s8 %v562
        %v564 = vlaneseq
        %v565 = vshrl.u32 %v564, 7
        %v566 = vsub.s32 %v563, %v565
        %v567 = vrot.slane %v559, %v566
        %v569 = vunpack.c.l.s4 1934713408
        %v570 = vunpack.c.0.s8 %v569
        %v571 = vlaneseq
        %v572 = vshrl.u32 %v571, 7
        %v573 = vsub.s32 %v570, %v572
        %v574 = vrot.slane %v560, %v573
        %v575 = vcombine.low %v510, %v526
        %v576 = vcombine.high %v510, %v526
        %v578 = vunpack.c.l.s4 1934713408
        %v579 = vunpack.c.0.s8 %v578
        %v580 = vlaneseq
        %v581 = vshrl.u32 %v580, 7
        %v582 = vsub.s32 %v579, %v581
        %v583 = vrot.slane %v575, %v582
        %v585 = vunpack.c.l.s4 1934713408
        %v586 = vunpack.c.0.s8 %v585
        %v587 = vlaneseq
        %v588 = vshrl.u32 %v587, 7
        %v589 = vsub.s32 %v586, %v588
        %v590 = vrot.slane %v576, %v589
        %v591 = vcombine.low %v535, %v567
        %v592 = vcombine.high %v535, %v567
        %v593 = vcombine.low %v542, %v574
        %v594 = vcombine.high %v542, %v574
        %v595 = vcombine.low %v551, %v583
        %v596 = vcombine.high %v551, %v583
        %v597 = vcombine.low %v558, %v590
        %v598 = vcombine.high %v558, %v590
        %v599 = vcombine.low %v452, %v458
        %v600 = vcombine.high %v452, %v458
        %v602 = vunpack.c.l.s4 1983009808
        %v603 = vunpack.c.0.s8 %v602
        %v604 = vlaneseq
        %v605 = vshrl.u32 %v604, 7
        %v606 = vsub.s32 %v603, %v605
        %v607 = vrot.slane %v599, %v606
        %v609 = vunpack.c.l.s4 1983009808
        %v610 = vunpack.c.0.s8 %v609
        %v611 = vlaneseq
        %v612 = vshrl.u32 %v611, 7
        %v613 = vsub.s32 %v610, %v612
        %v614 = vrot.slane %v600, %v613
        %v615 = vcombine.low %v455, %v461
        %v616 = vcombine.high %v455, %v461
        %v618 = vunpack.c.l.s4 1983009808
        %v619 = vunpack.c.0.s8 %v618
        %v620 = vlaneseq
        %v621 = vshrl.u32 %v620, 7
        %v622 = vsub.s32 %v619, %v621
        %v623 = vrot.slane %v615, %v622
        %v625 = vunpack.c.l.s4 1983009808
        %v626 = vunpack.c.0.s8 %v625
        %v627 = vlaneseq
        %v628 = vshrl.u32 %v627, 7
        %v629 = vsub.s32 %v626, %v628
        %v630 = vrot.slane %v616, %v629
        %v631 = vcombine.low %v607, %v623
        %v632 = vcombine.high %v607, %v623
        %v634 = vunpack.c.l.s4 1934713408
        %v635 = vunpack.c.0.s8 %v634
        %v636 = vlaneseq
        %v637 = vshrl.u32 %v636, 7
        %v638 = vsub.s32 %v635, %v637
        %v639 = vrot.slane %v631, %v638
        %v641 = vunpack.c.l.s4 1934713408
        %v642 = vunpack.c.0.s8 %v641
        %v643 = vlaneseq
        %v644 = vshrl.u32 %v643, 7
        %v645 = vsub.s32 %v642, %v644
        %v646 = vrot.slane %v632, %v645
        %v647 = vcombine.low %v614, %v630
        %v648 = vcombine.high %v614, %v630
        %v650 = vunpack.c.l.s4 1934713408
        %v651 = vunpack.c.0.s8 %v650
        %v652 = vlaneseq
        %v653 = vshrl.u32 %v652, 7
        %v654 = vsub.s32 %v651, %v653
        %v655 = vrot.slane %v647, %v654
        %v657 = vunpack.c.l.s4 1934713408
        %v658 = vunpack.c.0.s8 %v657
        %v659 = vlaneseq
        %v660 = vshrl.u32 %v659, 7
        %v661 = vsub.s32 %v658, %v660
        %v662 = vrot.slane %v648, %v661
        %v663 = vcombine.high %v639, 0.0
        %v664 = vcombine.high %v646, 0.0
        %v665 = vcombine.high %v655, 0.0
        %v666 = vcombine.high %v662, 0.0
        %v667 = vcombine.low %v591, %v593
        %v668 = vcombine.high %v591, %v593
        %v670 = vunpack.c.l.s4 1983009808
        %v671 = vunpack.c.0.s8 %v670
        %v672 = vlaneseq
        %v673 = vshrl.u32 %v672, 7
        %v674 = vsub.s32 %v671, %v673
        %v675 = vrot.slane %v667, %v674
        %v677 = vunpack.c.l.s4 1983009808
        %v678 = vunpack.c.0.s8 %v677
        %v679 = vlaneseq
        %v680 = vshrl.u32 %v679, 7
        %v681 = vsub.s32 %v678, %v680
        %v682 = vrot.slane %v668, %v681
        %v683 = vcombine.low %v592, %v594
        %v684 = vcombine.high %v592, %v594
        %v686 = vunpack.c.l.s4 1983009808
        %v687 = vunpack.c.0.s8 %v686
        %v688 = vlaneseq
        %v689 = vshrl.u32 %v688, 7
        %v690 = vsub.s32 %v687, %v689
        %v691 = vrot.slane %v683, %v690
        %v693 = vunpack.c.l.s4 1983009808
        %v694 = vunpack.c.0.s8 %v693
        %v695 = vlaneseq
        %v696 = vshrl.u32 %v695, 7
        %v697 = vsub.s32 %v694, %v696
        %v698 = vrot.slane %v684, %v697
        %v699 = vcombine.low %v595, %v597
        %v700 = vcombine.high %v595, %v597
        %v702 = vunpack.c.l.s4 1983009808
        %v703 = vunpack.c.0.s8 %v702
        %v704 = vlaneseq
        %v705 = vshrl.u32 %v704, 7
        %v706 = vsub.s32 %v703, %v705
        %v707 = vrot.slane %v699, %v706
        %v709 = vunpack.c.l.s4 1983009808
        %v710 = vunpack.c.0.s8 %v709
        %v711 = vlaneseq
        %v712 = vshrl.u32 %v711, 7
        %v713 = vsub.s32 %v710, %v712
        %v714 = vrot.slane %v700, %v713
        %v715 = vcombine.low %v596, %v598
        %v716 = vcombine.high %v596, %v598
        %v718 = vunpack.c.l.s4 1983009808
        %v719 = vunpack.c.0.s8 %v718
        %v720 = vlaneseq
        %v721 = vshrl.u32 %v720, 7
        %v722 = vsub.s32 %v719, %v721
        %v723 = vrot.slane %v715, %v722
        %v725 = vunpack.c.l.s4 1983009808
        %v726 = vunpack.c.0.s8 %v725
        %v727 = vlaneseq
        %v728 = vshrl.u32 %v727, 7
        %v729 = vsub.s32 %v726, %v728
        %v730 = vrot.slane %v716, %v729
        %v731 = vcombine.low %v675, %v691
        %v732 = vcombine.high %v675, %v691
        %v734 = vunpack.c.l.s4 1934713408
        %v735 = vunpack.c.0.s8 %v734
        %v736 = vlaneseq
        %v737 = vshrl.u32 %v736, 7
        %v738 = vsub.s32 %v735, %v737
        %v739 = vrot.slane %v731, %v738
        %v741 = vunpack.c.l.s4 1934713408
        %v742 = vunpack.c.0.s8 %v741
        %v743 = vlaneseq
        %v744 = vshrl.u32 %v743, 7
        %v745 = vsub.s32 %v742, %v744
        %v746 = vrot.slane %v732, %v745
        %v747 = vcombine.low %v682, %v698
        %v748 = vcombine.high %v682, %v698
        %v750 = vunpack.c.l.s4 1934713408
        %v751 = vunpack.c.0.s8 %v750
        %v752 = vlaneseq
        %v753 = vshrl.u32 %v752, 7
        %v754 = vsub.s32 %v751, %v753
        %v755 = vrot.slane %v747, %v754
        %v757 = vunpack.c.l.s4 1934713408
        %v758 = vunpack.c.0.s8 %v757
        %v759 = vlaneseq
        %v760 = vshrl.u32 %v759, 7
        %v761 = vsub.s32 %v758, %v760
        %v762 = vrot.slane %v748, %v761
        %v763 = vcombine.low %v707, %v723
        %v764 = vcombine.high %v707, %v723
        %v766 = vunpack.c.l.s4 1934713408
        %v767 = vunpack.c.0.s8 %v766
        %v768 = vlaneseq
        %v769 = vshrl.u32 %v768, 7
        %v770 = vsub.s32 %v767, %v769
        %v771 = vrot.slane %v763, %v770
        %v773 = vunpack.c.l.s4 1934713408
        %v774 = vunpack.c.0.s8 %v773
        %v775 = vlaneseq
        %v776 = vshrl.u32 %v775, 7
        %v777 = vsub.s32 %v774, %v776
        %v778 = vrot.slane %v764, %v777
        %v779 = vcombine.low %v714, %v730
        %v780 = vcombine.high %v714, %v730
        %v782 = vunpack.c.l.s4 1934713408
        %v783 = vunpack.c.0.s8 %v782
        %v784 = vlaneseq
        %v785 = vshrl.u32 %v784, 7
        %v786 = vsub.s32 %v783, %v785
        %v787 = vrot.slane %v779, %v786
        %v789 = vunpack.c.l.s4 1934713408
        %v790 = vunpack.c.0.s8 %v789
        %v791 = vlaneseq
        %v792 = vshrl.u32 %v791, 7
        %v793 = vsub.s32 %v790, %v792
        %v794 = vrot.slane %v780, %v793
        %v795 = vcombine.low %v739, %v771
        %v796 = vcombine.high %v739, %v771
        %v797 = vcombine.low %v746, %v778
        %v798 = vcombine.high %v746, %v778
        %v799 = vcombine.low %v755, %v787
        %v800 = vcombine.high %v755, %v787
        %v801 = vcombine.low %v762, %v794
        %v802 = vcombine.high %v762, %v794
        %v803 = vcombine.low %v639, %v646
        %v805 = vunpack.c.l.s4 1983009808
        %v806 = vunpack.c.0.s8 %v805
        %v807 = vlaneseq
        %v808 = vshrl.u32 %v807, 7
        %v809 = vsub.s32 %v806, %v808
        %v810 = vrot.slane %v803, %v809
        %v811 = vcombine.low %v663, %v664
        %v813 = vunpack.c.l.s4 1983009808
        %v814 = vunpack.c.0.s8 %v813
        %v815 = vlaneseq
        %v816 = vshrl.u32 %v815, 7
        %v817 = vsub.s32 %v814, %v816
        %v818 = vrot.slane %v811, %v817
        %v819 = vcombine.low %v655, %v662
        %v821 = vunpack.c.l.s4 1983009808
        %v822 = vunpack.c.0.s8 %v821
        %v823 = vlaneseq
        %v824 = vshrl.u32 %v823, 7
        %v825 = vsub.s32 %v822, %v824
        %v826 = vrot.slane %v819, %v825
        %v827 = vcombine.low %v665, %v666
        %v829 = vunpack.c.l.s4 1983009808
        %v830 = vunpack.c.0.s8 %v829
        %v831 = vlaneseq
        %v832 = vshrl.u32 %v831, 7
        %v833 = vsub.s32 %v830, %v832
        %v834 = vrot.slane %v827, %v833
        %v835 = vcombine.low %v810, %v818
        %v836 = vcombine.high %v810, %v818
        %v838 = vunpack.c.l.s4 1934713408
        %v839 = vunpack.c.0.s8 %v838
        %v840 = vlaneseq
        %v841 = vshrl.u32 %v840, 7
        %v842 = vsub.s32 %v839, %v841
        %v843 = vrot.slane %v835, %v842
        %v845 = vunpack.c.l.s4 1934713408
        %v846 = vunpack.c.0.s8 %v845
        %v847 = vlaneseq
        %v848 = vshrl.u32 %v847, 7
        %v849 = vsub.s32 %v846, %v848
        %v850 = vrot.slane %v836, %v849
        %v851 = vcombine.low %v826, %v834
        %v852 = vcombine.high %v826, %v834
        %v854 = vunpack.c.l.s4 1934713408
        %v855 = vunpack.c.0.s8 %v854
        %v856 = vlaneseq
        %v857 = vshrl.u32 %v856, 7
        %v858 = vsub.s32 %v855, %v857
        %v859 = vrot.slane %v851, %v858
        %v861 = vunpack.c.l.s4 1934713408
        %v862 = vunpack.c.0.s8 %v861
        %v863 = vlaneseq
        %v864 = vshrl.u32 %v863, 7
        %v865 = vsub.s32 %v862, %v864
        %v866 = vrot.slane %v852, %v865
        %v867 = vcombine.low %v843, %v859
        %v868 = vcombine.high %v843, %v859
        %v869 = vcombine.low %v850, %v866
        %v870 = vcombine.high %v850, %v866
        %v871 = vpack.c.bf16 %v795, %v795
        %v872 = vpack.c.bf16 %v796, %v796
        %v873 = vpack.c.bf16 %v797, %v797
        %v874 = vpack.c.bf16 %v798, %v798
        %v875 = vpack.c.bf16 %v799, %v799
        %v876 = vpack.c.bf16 %v800, %v800
        %v877 = vpack.c.bf16 %v801, %v801
        %v878 = vpack.c.bf16 %v802, %v802
        %v879 = vpack.c.bf16 %v867, %v867
        %v880 = vpack.c.bf16 %v868, %v868
        %v881 = vpack.c.bf16 %v869, %v869
        %v882 = vpack.c.bf16 %v870, %v870
        %vm883 = vcmask 64512
        %v885 = vsel %vm883, %v871, 0
        %v888 = vsel %vm883, %v875, 0
        %890 = vmatprep.subr.bf16.mxu0 0
        %891 = vmatpush1.bf16.xpose.msra.mxu0 %v888
        %892 = vmatprep.subr.bf16.mxu0 0
        %893 = vmatpush1.bf16.xpose.msra.mxu0 0
        %894 = vmatprep.subr.bf16.mxu0 0
        %895 = vmatpush1.bf16.xpose.msra.mxu0 0
        %896 = vmatprep.subr.bf16.mxu0 0
        %897 = vmatpush1.bf16.xpose.msra.mxu0 0
        %898 = vmatprep.subr.bf16.mxu0 0
        %899 = vmatpush1.bf16.xpose.msra.mxu0 0
        %900 = vmatprep.subr.bf16.mxu0 0
        %901 = vmatpush1.bf16.xpose.msra.mxu0 0
        %902 = vmatprep.subr.bf16.mxu0 0
        %903 = vmatpush1.bf16.xpose.msra.mxu0 0
        %904 = vmatprep.subr.bf16.mxu0 0
        %905 = vmatpush1.bf16.xpose.msra.mxu0 0
        %906 = vmatprep.subr.bf16.mxu0 0
        %907 = vmatpush1.bf16.xpose.msra.mxu0 0
        %908 = vmatprep.subr.bf16.mxu0 0
        %909 = vmatpush1.bf16.xpose.msra.mxu0 0
        %910 = vmatprep.subr.bf16.mxu0 0
        %911 = vmatpush1.bf16.xpose.msra.mxu0 0
        %912 = vmatprep.subr.bf16.mxu0 0
        %913 = vmatpush1.bf16.xpose.msra.mxu0 0
        %914 = vmatprep.subr.bf16.mxu0 0
        %915 = vmatpush1.bf16.xpose.msra.mxu0 0
        %916 = vmatprep.subr.bf16.mxu0 0
        %917 = vmatpush1.bf16.xpose.msra.mxu0 0
        %918 = vmatprep.subr.bf16.mxu0 0
        %919 = vmatpush1.bf16.xpose.msra.mxu0 0
        %920 = vmatprep.subr.bf16.mxu0 0
        %921 = vmatpush1.bf16.xpose.msra.mxu0 0
        %922 = vmatprep.mubr.bf16.mxu0 0
        %923 = vmatmul.mubr.bf16.gmra.mrb[0].mxu0 %v885
        %v924 = vpop.f32.mrb[0].mxu0
        %v925 = vadd.f32 0.0, %v924
        %v926 = vpop.f32.mrb[0].mxu0
        %v927 = vpop.f32.mrb[0].mxu0
        %v928 = vpop.f32.mrb[0].mxu0
        %929 = vdwg.mxu0
        %v931 = vsel %vm883, %v872, 0
        %v934 = vsel %vm883, %v876, 0
        %936 = vmatprep.subr.bf16.mxu0 0
        %937 = vmatpush1.bf16.xpose.msra.mxu0 %v934
        %938 = vmatprep.subr.bf16.mxu0 0
        %939 = vmatpush1.bf16.xpose.msra.mxu0 0
        %940 = vmatprep.subr.bf16.mxu0 0
        %941 = vmatpush1.bf16.xpose.msra.mxu0 0
        %942 = vmatprep.subr.bf16.mxu0 0
        %943 = vmatpush1.bf16.xpose.msra.mxu0 0
        %944 = vmatprep.subr.bf16.mxu0 0
        %945 = vmatpush1.bf16.xpose.msra.mxu0 0
        %946 = vmatprep.subr.bf16.mxu0 0
        %947 = vmatpush1.bf16.xpose.msra.mxu0 0
        %948 = vmatprep.subr.bf16.mxu0 0
        %949 = vmatpush1.bf16.xpose.msra.mxu0 0
        %950 = vmatprep.subr.bf16.mxu0 0
        %951 = vmatpush1.bf16.xpose.msra.mxu0 0
        %952 = vmatprep.subr.bf16.mxu0 0
        %953 = vmatpush1.bf16.xpose.msra.mxu0 0
        %954 = vmatprep.subr.bf16.mxu0 0
        %955 = vmatpush1.bf16.xpose.msra.mxu0 0
        %956 = vmatprep.subr.bf16.mxu0 0
        %957 = vmatpush1.bf16.xpose.msra.mxu0 0
        %958 = vmatprep.subr.bf16.mxu0 0
        %959 = vmatpush1.bf16.xpose.msra.mxu0 0
        %960 = vmatprep.subr.bf16.mxu0 0
        %961 = vmatpush1.bf16.xpose.msra.mxu0 0
        %962 = vmatprep.subr.bf16.mxu0 0
        %963 = vmatpush1.bf16.xpose.msra.mxu0 0
        %964 = vmatprep.subr.bf16.mxu0 0
        %965 = vmatpush1.bf16.xpose.msra.mxu0 0
        %966 = vmatprep.subr.bf16.mxu0 0
        %967 = vmatpush1.bf16.xpose.msra.mxu0 0
        %968 = vmatprep.mubr.bf16.mxu0 0
        %969 = vmatmul.mubr.bf16.gmra.mrb[0].mxu0 %v931
        %v970 = vpop.f32.mrb[0].mxu0
        %v971 = vadd.f32 0.0, %v970
        %v972 = vpop.f32.mrb[0].mxu0
        %v973 = vpop.f32.mrb[0].mxu0
        %v974 = vpop.f32.mrb[0].mxu0
        %975 = vdwg.mxu0
        %v977 = vsel %vm883, %v873, 0
        %v980 = vsel %vm883, %v877, 0
        %982 = vmatprep.subr.bf16.mxu0 0
        %983 = vmatpush1.bf16.xpose.msra.mxu0 %v980
        %984 = vmatprep.subr.bf16.mxu0 0
        %985 = vmatpush1.bf16.xpose.msra.mxu0 0
        %986 = vmatprep.subr.bf16.mxu0 0
        %987 = vmatpush1.bf16.xpose.msra.mxu0 0
        %988 = vmatprep.subr.bf16.mxu0 0
        %989 = vmatpush1.bf16.xpose.msra.mxu0 0
        %990 = vmatprep.subr.bf16.mxu0 0
        %991 = vmatpush1.bf16.xpose.msra.mxu0 0
        %992 = vmatprep.subr.bf16.mxu0 0
        %993 = vmatpush1.bf16.xpose.msra.mxu0 0
        %994 = vmatprep.subr.bf16.mxu0 0
        %995 = vmatpush1.bf16.xpose.msra.mxu0 0
        %996 = vmatprep.subr.bf16.mxu0 0
        %997 = vmatpush1.bf16.xpose.msra.mxu0 0
        %998 = vmatprep.subr.bf16.mxu0 0
        %999 = vmatpush1.bf16.xpose.msra.mxu0 0
        %1000 = vmatprep.subr.bf16.mxu0 0
        %1001 = vmatpush1.bf16.xpose.msra.mxu0 0
        %1002 = vmatprep.subr.bf16.mxu0 0
        %1003 = vmatpush1.bf16.xpose.msra.mxu0 0
        %1004 = vmatprep.subr.bf16.mxu0 0
        %1005 = vmatpush1.bf16.xpose.msra.mxu0 0
        %1006 = vmatprep.subr.bf16.mxu0 0
        %1007 = vmatpush1.bf16.xpose.msra.mxu0 0
        %1008 = vmatprep.subr.bf16.mxu0 0
        %1009 = vmatpush1.bf16.xpose.msra.mxu0 0
        %1010 = vmatprep.subr.bf16.mxu0 0
        %1011 = vmatpush1.bf16.xpose.msra.mxu0 0
        %1012 = vmatprep.subr.bf16.mxu0 0
        %1013 = vmatpush1.bf16.xpose.msra.mxu0 0
        %1014 = vmatprep.mubr.bf16.mxu0 0
        %1015 = vmatmul.mubr.bf16.gmra.mrb[0].mxu0 %v977
        %v1016 = vpop.f32.mrb[0].mxu0
        %v1017 = vadd.f32 0.0, %v1016
        %v1018 = vpop.f32.mrb[0].mxu0
        %v1019 = vpop.f32.mrb[0].mxu0
        %v1020 = vpop.f32.mrb[0].mxu0
        %1021 = vdwg.mxu0
        %v1023 = vsel %vm883, %v874, 0
        %v1026 = vsel %vm883, %v878, 0
        %1028 = vmatprep.subr.bf16.mxu0 0
        %1029 = vmatpush1.bf16.xpose.msra.mxu0 %v1026
        %1030 = vmatprep.subr.bf16.mxu0 0
        %1031 = vmatpush1.bf16.xpose.msra.mxu0 0
        %1032 = vmatprep.subr.bf16.mxu0 0
        %1033 = vmatpush1.bf16.xpose.msra.mxu0 0
        %1034 = vmatprep.subr.bf16.mxu0 0
        %1035 = vmatpush1.bf16.xpose.msra.mxu0 0
        %1036 = vmatprep.subr.bf16.mxu0 0
        %1037 = vmatpush1.bf16.xpose.msra.mxu0 0
        %1038 = vmatprep.subr.bf16.mxu0 0
        %1039 = vmatpush1.bf16.xpose.msra.mxu0 0
        %1040 = vmatprep.subr.bf16.mxu0 0
        %1041 = vmatpush1.bf16.xpose.msra.mxu0 0
        %1042 = vmatprep.subr.bf16.mxu0 0
        %1043 = vmatpush1.bf16.xpose.msra.mxu0 0
        %1044 = vmatprep.subr.bf16.mxu0 0
        %1045 = vmatpush1.bf16.xpose.msra.mxu0 0
        %1046 = vmatprep.subr.bf16.mxu0 0
        %1047 = vmatpush1.bf16.xpose.msra.mxu0 0
        %1048 = vmatprep.subr.bf16.mxu0 0
        %1049 = vmatpush1.bf16.xpose.msra.mxu0 0
        %1050 = vmatprep.subr.bf16.mxu0 0
        %1051 = vmatpush1.bf16.xpose.msra.mxu0 0
        %1052 = vmatprep.subr.bf16.mxu0 0
        %1053 = vmatpush1.bf16.xpose.msra.mxu0 0
        %1054 = vmatprep.subr.bf16.mxu0 0
        %1055 = vmatpush1.bf16.xpose.msra.mxu0 0
        %1056 = vmatprep.subr.bf16.mxu0 0
        %1057 = vmatpush1.bf16.xpose.msra.mxu0 0
        %1058 = vmatprep.subr.bf16.mxu0 0
        %1059 = vmatpush1.bf16.xpose.msra.mxu0 0
        %1060 = vmatprep.mubr.bf16.mxu0 0
        %1061 = vmatmul.mubr.bf16.gmra.mrb[0].mxu0 %v1023
        %v1062 = vpop.f32.mrb[0].mxu0
        %v1063 = vadd.f32 0.0, %v1062
        %v1064 = vpop.f32.mrb[0].mxu0
        %v1065 = vpop.f32.mrb[0].mxu0
        %v1066 = vpop.f32.mrb[0].mxu0
        %1067 = vdwg.mxu0
        %v1068 = vsel %vm883, %v925, -inf
        %1069 = vmax.xlane.f32.xlu0 %v1068
        %v1070 = vpop.xlane.xlu0 %1069
        %v1071 = vsel %vm883, %v971, -inf
        %1072 = vmax.xlane.f32.xlu0 %v1071
        %v1073 = vpop.xlane.xlu0 %1072
        %v1074 = vsel %vm883, %v1017, -inf
        %1075 = vmax.xlane.f32.xlu0 %v1074
        %v1076 = vpop.xlane.xlu0 %1075
        %v1077 = vsel %vm883, %v1063, -inf
        %1078 = vmax.xlane.f32.xlu0 %v1077
        %v1079 = vpop.xlane.xlu0 %1078
        %v1080 = vsub.f32 %v925, %v1070
        %v1081 = vsub.f32 %v971, %v1073
        %v1082 = vsub.f32 %v1017, %v1076
        %v1083 = vsub.f32 %v1063, %v1079
        %v1084 = vmul.f32 %v1080, 1.442695
        %v1085 = vpow.pop %v1084
        %v1086 = vmul.f32 %v1081, 1.442695
        %v1087 = vpow.pop %v1086
        %v1088 = vmul.f32 %v1082, 1.442695
        %v1089 = vpow.pop %v1088
        %v1090 = vmul.f32 %v1083, 1.442695
        %v1091 = vpow.pop %v1090
        %v1092 = vsel %vm883, %v1085, 0.0
        %1093 = vadd.xlane.f32.xlu0 %v1092
        %v1094 = vpop.xlane.xlu0 %1093
        %v1095 = vsel %vm883, %v1087, 0.0
        %1096 = vadd.xlane.f32.xlu0 %v1095
        %v1097 = vpop.xlane.xlu0 %1096
        %v1098 = vsel %vm883, %v1089, 0.0
        %1099 = vadd.xlane.f32.xlu0 %v1098
        %v1100 = vpop.xlane.xlu0 %1099
        %v1101 = vsel %vm883, %v1091, 0.0
        %1102 = vadd.xlane.f32.xlu0 %v1101
        %v1103 = vpop.xlane.xlu0 %1102
        %v1104 = vrcp.pop %v1094
        %v1105 = vrcp.pop %v1097
        %v1106 = vrcp.pop %v1100
        %v1107 = vrcp.pop %v1103
        %v1108 = vmul.f32 %v1085, %v1104
        %v1109 = vmul.f32 %v1087, %v1105
        %v1110 = vmul.f32 %v1089, %v1106
        %v1111 = vmul.f32 %v1091, %v1107
        %v1112 = vpack.c.bf16 %v1108, %v1108
        %v1113 = vpack.c.bf16 %v1109, %v1109
        %v1114 = vpack.c.bf16 %v1110, %v1110
        %v1115 = vpack.c.bf16 %v1111, %v1111
        %v1117 = vsel %vm883, %v1112, 0
        %vm1119 = vcmask 1043456
        %v1121 = vsel %vm1119, %v879, 0
        %1123 = vmatprep.subr.bf16.mxu0 0
        %1124 = vmatpush1.bf16.msra.mxu0 %v1121
        %1125 = vmatprep.subr.bf16.mxu0 0
        %1126 = vmatpush1.bf16.msra.mxu0 0
        %1127 = vmatprep.subr.bf16.mxu0 0
        %1128 = vmatpush1.bf16.msra.mxu0 0
        %1129 = vmatprep.subr.bf16.mxu0 0
        %1130 = vmatpush1.bf16.msra.mxu0 0
        %1131 = vmatprep.subr.bf16.mxu0 0
        %1132 = vmatpush1.bf16.msra.mxu0 0
        %1133 = vmatprep.subr.bf16.mxu0 0
        %1134 = vmatpush1.bf16.msra.mxu0 0
        %1135 = vmatprep.subr.bf16.mxu0 0
        %1136 = vmatpush1.bf16.msra.mxu0 0
        %1137 = vmatprep.subr.bf16.mxu0 0
        %1138 = vmatpush1.bf16.msra.mxu0 0
        %1139 = vmatprep.subr.bf16.mxu0 0
        %1140 = vmatpush1.bf16.msra.mxu0 0
        %1141 = vmatprep.subr.bf16.mxu0 0
        %1142 = vmatpush1.bf16.msra.mxu0 0
        %1143 = vmatprep.subr.bf16.mxu0 0
        %1144 = vmatpush1.bf16.msra.mxu0 0
        %1145 = vmatprep.subr.bf16.mxu0 0
        %1146 = vmatpush1.bf16.msra.mxu0 0
        %1147 = vmatprep.subr.bf16.mxu0 0
        %1148 = vmatpush1.bf16.msra.mxu0 0
        %1149 = vmatprep.subr.bf16.mxu0 0
        %1150 = vmatpush1.bf16.msra.mxu0 0
        %1151 = vmatprep.subr.bf16.mxu0 0
        %1152 = vmatpush1.bf16.msra.mxu0 0
        %1153 = vmatprep.subr.bf16.mxu0 0
        %1154 = vmatpush1.bf16.msra.mxu0 0
        %1155 = vmatprep.mubr.bf16.mxu0 0
        %1156 = vmatmul.mubr.bf16.gmra.mrb[0].mxu0 %v1117
        %v1157 = vpop.f32.mrb[0].mxu0
        %v1158 = vadd.f32 0.0, %v1157
        %v1159 = vpop.f32.mrb[0].mxu0
        %v1160 = vpop.f32.mrb[0].mxu0
        %v1161 = vpop.f32.mrb[0].mxu0
        %1162 = vdwg.mxu0
        %v1164 = vsel %vm883, %v1113, 0
        %v1167 = vsel %vm1119, %v880, 0
        %1169 = vmatprep.subr.bf16.mxu0 0
        %1170 = vmatpush1.bf16.msra.mxu0 %v1167
        %1171 = vmatprep.subr.bf16.mxu0 0
        %1172 = vmatpush1.bf16.msra.mxu0 0
        %1173 = vmatprep.subr.bf16.mxu0 0
        %1174 = vmatpush1.bf16.msra.mxu0 0
        %1175 = vmatprep.subr.bf16.mxu0 0
        %1176 = vmatpush1.bf16.msra.mxu0 0
        %1177 = vmatprep.subr.bf16.mxu0 0
        %1178 = vmatpush1.bf16.msra.mxu0 0
        %1179 = vmatprep.subr.bf16.mxu0 0
        %1180 = vmatpush1.bf16.msra.mxu0 0
        %1181 = vmatprep.subr.bf16.mxu0 0
        %1182 = vmatpush1.bf16.msra.mxu0 0
        %1183 = vmatprep.subr.bf16.mxu0 0
        %1184 = vmatpush1.bf16.msra.mxu0 0
        %1185 = vmatprep.subr.bf16.mxu0 0
        %1186 = vmatpush1.bf16.msra.mxu0 0
        %1187 = vmatprep.subr.bf16.mxu0 0
        %1188 = vmatpush1.bf16.msra.mxu0 0
        %1189 = vmatprep.subr.bf16.mxu0 0
        %1190 = vmatpush1.bf16.msra.mxu0 0
        %1191 = vmatprep.subr.bf16.mxu0 0
        %1192 = vmatpush1.bf16.msra.mxu0 0
        %1193 = vmatprep.subr.bf16.mxu0 0
        %1194 = vmatpush1.bf16.msra.mxu0 0
        %1195 = vmatprep.subr.bf16.mxu0 0
        %1196 = vmatpush1.bf16.msra.mxu0 0
        %1197 = vmatprep.subr.bf16.mxu0 0
        %1198 = vmatpush1.bf16.msra.mxu0 0
        %1199 = vmatprep.subr.bf16.mxu0 0
        %1200 = vmatpush1.bf16.msra.mxu0 0
        %1201 = vmatprep.mubr.bf16.mxu0 0
        %1202 = vmatmul.mubr.bf16.gmra.mrb[0].mxu0 %v1164
        %v1203 = vpop.f32.mrb[0].mxu0
        %v1204 = vadd.f32 0.0, %v1203
        %v1205 = vpop.f32.mrb[0].mxu0
        %v1206 = vpop.f32.mrb[0].mxu0
        %v1207 = vpop.f32.mrb[0].mxu0
        %1208 = vdwg.mxu0
        %v1210 = vsel %vm883, %v1114, 0
        %v1213 = vsel %vm1119, %v881, 0
        %1215 = vmatprep.subr.bf16.mxu0 0
        %1216 = vmatpush1.bf16.msra.mxu0 %v1213
        %1217 = vmatprep.subr.bf16.mxu0 0
        %1218 = vmatpush1.bf16.msra.mxu0 0
        %1219 = vmatprep.subr.bf16.mxu0 0
        %1220 = vmatpush1.bf16.msra.mxu0 0
        %1221 = vmatprep.subr.bf16.mxu0 0
        %1222 = vmatpush1.bf16.msra.mxu0 0
        %1223 = vmatprep.subr.bf16.mxu0 0
        %1224 = vmatpush1.bf16.msra.mxu0 0
        %1225 = vmatprep.subr.bf16.mxu0 0
        %1226 = vmatpush1.bf16.msra.mxu0 0
        %1227 = vmatprep.subr.bf16.mxu0 0
        %1228 = vmatpush1.bf16.msra.mxu0 0
        %1229 = vmatprep.subr.bf16.mxu0 0
        %1230 = vmatpush1.bf16.msra.mxu0 0
        %1231 = vmatprep.subr.bf16.mxu0 0
        %1232 = vmatpush1.bf16.msra.mxu0 0
        %1233 = vmatprep.subr.bf16.mxu0 0
        %1234 = vmatpush1.bf16.msra.mxu0 0
        %1235 = vmatprep.subr.bf16.mxu0 0
        %1236 = vmatpush1.bf16.msra.mxu0 0
        %1237 = vmatprep.subr.bf16.mxu0 0
        %1238 = vmatpush1.bf16.msra.mxu0 0
        %1239 = vmatprep.subr.bf16.mxu0 0
        %1240 = vmatpush1.bf16.msra.mxu0 0
        %1241 = vmatprep.subr.bf16.mxu0 0
        %1242 = vmatpush1.bf16.msra.mxu0 0
        %1243 = vmatprep.subr.bf16.mxu0 0
        %1244 = vmatpush1.bf16.msra.mxu0 0
        %1245 = vmatprep.subr.bf16.mxu0 0
        %1246 = vmatpush1.bf16.msra.mxu0 0
        %1247 = vmatprep.mubr.bf16.mxu0 0
        %1248 = vmatmul.mubr.bf16.gmra.mrb[0].mxu0 %v1210
        %v1249 = vpop.f32.mrb[0].mxu0
        %v1250 = vadd.f32 0.0, %v1249
        %v1251 = vpop.f32.mrb[0].mxu0
        %v1252 = vpop.f32.mrb[0].mxu0
        %v1253 = vpop.f32.mrb[0].mxu0
        %1254 = vdwg.mxu0
        %v1256 = vsel %vm883, %v1115, 0
        %v1259 = vsel %vm1119, %v882, 0
        %1261 = vmatprep.subr.bf16.mxu0 0
        %1262 = vmatpush1.bf16.msra.mxu0 %v1259
        %1263 = vmatprep.subr.bf16.mxu0 0
        %1264 = vmatpush1.bf16.msra.mxu0 0
        %1265 = vmatprep.subr.bf16.mxu0 0
        %1266 = vmatpush1.bf16.msra.mxu0 0
        %1267 = vmatprep.subr.bf16.mxu0 0
        %1268 = vmatpush1.bf16.msra.mxu0 0
        %1269 = vmatprep.subr.bf16.mxu0 0
        %1270 = vmatpush1.bf16.msra.mxu0 0
        %1271 = vmatprep.subr.bf16.mxu0 0
        %1272 = vmatpush1.bf16.msra.mxu0 0
        %1273 = vmatprep.subr.bf16.mxu0 0
        %1274 = vmatpush1.bf16.msra.mxu0 0
        %1275 = vmatprep.subr.bf16.mxu0 0
        %1276 = vmatpush1.bf16.msra.mxu0 0
        %1277 = vmatprep.subr.bf16.mxu0 0
        %1278 = vmatpush1.bf16.msra.mxu0 0
        %1279 = vmatprep.subr.bf16.mxu0 0
        %1280 = vmatpush1.bf16.msra.mxu0 0
        %1281 = vmatprep.subr.bf16.mxu0 0
        %1282 = vmatpush1.bf16.msra.mxu0 0
        %1283 = vmatprep.subr.bf16.mxu0 0
        %1284 = vmatpush1.bf16.msra.mxu0 0
        %1285 = vmatprep.subr.bf16.mxu0 0
        %1286 = vmatpush1.bf16.msra.mxu0 0
        %1287 = vmatprep.subr.bf16.mxu0 0
        %1288 = vmatpush1.bf16.msra.mxu0 0
        %1289 = vmatprep.subr.bf16.mxu0 0
        %1290 = vmatpush1.bf16.msra.mxu0 0
        %1291 = vmatprep.subr.bf16.mxu0 0
        %1292 = vmatpush1.bf16.msra.mxu0 0
        %1293 = vmatprep.mubr.bf16.mxu0 0
        %1294 = vmatmul.mubr.bf16.gmra.mrb[0].mxu0 %v1256
        %v1295 = vpop.f32.mrb[0].mxu0
        %v1296 = vadd.f32 0.0, %v1295
        %v1297 = vpop.f32.mrb[0].mxu0
        %v1298 = vpop.f32.mrb[0].mxu0
        %v1299 = vpop.f32.mrb[0].mxu0
        %1300 = vdwg.mxu0
        %v1301 = vcombine.low %v1158, %v1250
        %v1302 = vcombine.high %v1158, %v1250
        %v1304 = vunpack.c.l.s4 1983009808
        %v1305 = vunpack.c.0.s8 %v1304
        %v1306 = vlaneseq
        %v1307 = vshrl.u32 %v1306, 7
        %v1308 = vsub.s32 %v1305, %v1307
        %v1309 = vrot.slane %v1301, %v1308
        %v1311 = vunpack.c.l.s4 1983009808
        %v1312 = vunpack.c.0.s8 %v1311
        %v1313 = vlaneseq
        %v1314 = vshrl.u32 %v1313, 7
        %v1315 = vsub.s32 %v1312, %v1314
        %v1316 = vrot.slane %v1302, %v1315
        %v1317 = vcombine.low %v1204, %v1296
        %v1318 = vcombine.high %v1204, %v1296
        %v1320 = vunpack.c.l.s4 1983009808
        %v1321 = vunpack.c.0.s8 %v1320
        %v1322 = vlaneseq
        %v1323 = vshrl.u32 %v1322, 7
        %v1324 = vsub.s32 %v1321, %v1323
        %v1325 = vrot.slane %v1317, %v1324
        %v1327 = vunpack.c.l.s4 1983009808
        %v1328 = vunpack.c.0.s8 %v1327
        %v1329 = vlaneseq
        %v1330 = vshrl.u32 %v1329, 7
        %v1331 = vsub.s32 %v1328, %v1330
        %v1332 = vrot.slane %v1318, %v1331
        %v1333 = vcombine.low %v1309, %v1325
        %v1334 = vcombine.high %v1309, %v1325
        %v1336 = vunpack.c.l.s4 1934713408
        %v1337 = vunpack.c.0.s8 %v1336
        %v1338 = vlaneseq
        %v1339 = vshrl.u32 %v1338, 7
        %v1340 = vsub.s32 %v1337, %v1339
        %v1341 = vrot.slane %v1333, %v1340
        %v1343 = vunpack.c.l.s4 1934713408
        %v1344 = vunpack.c.0.s8 %v1343
        %v1345 = vlaneseq
        %v1346 = vshrl.u32 %v1345, 7
        %v1347 = vsub.s32 %v1344, %v1346
        %v1348 = vrot.slane %v1334, %v1347
        %v1349 = vcombine.low %v1316, %v1332
        %v1350 = vcombine.high %v1316, %v1332
        %v1352 = vunpack.c.l.s4 1934713408
        %v1353 = vunpack.c.0.s8 %v1352
        %v1354 = vlaneseq
        %v1355 = vshrl.u32 %v1354, 7
        %v1356 = vsub.s32 %v1353, %v1355
        %v1357 = vrot.slane %v1349, %v1356
        %v1359 = vunpack.c.l.s4 1934713408
        %v1360 = vunpack.c.0.s8 %v1359
        %v1361 = vlaneseq
        %v1362 = vshrl.u32 %v1361, 7
        %v1363 = vsub.s32 %v1360, %v1362
        %v1364 = vrot.slane %v1350, %v1363
        %v1365 = vcombine.high %v1341, 0.0
        %v1366 = vcombine.high %v1348, 0.0
        %v1367 = vcombine.high %v1357, 0.0
        %v1368 = vcombine.high %v1364, 0.0
        %v1369 = vcombine.low %v1341, %v1348
        %v1371 = vunpack.c.l.s4 1983009808
        %v1372 = vunpack.c.0.s8 %v1371
        %v1373 = vlaneseq
        %v1374 = vshrl.u32 %v1373, 7
        %v1375 = vsub.s32 %v1372, %v1374
        %v1376 = vrot.slane %v1369, %v1375
        %v1377 = vcombine.low %v1365, %v1366
        %v1379 = vunpack.c.l.s4 1983009808
        %v1380 = vunpack.c.0.s8 %v1379
        %v1381 = vlaneseq
        %v1382 = vshrl.u32 %v1381, 7
        %v1383 = vsub.s32 %v1380, %v1382
        %v1384 = vrot.slane %v1377, %v1383
        %v1385 = vcombine.low %v1357, %v1364
        %v1387 = vunpack.c.l.s4 1983009808
        %v1388 = vunpack.c.0.s8 %v1387
        %v1389 = vlaneseq
        %v1390 = vshrl.u32 %v1389, 7
        %v1391 = vsub.s32 %v1388, %v1390
        %v1392 = vrot.slane %v1385, %v1391
        %v1393 = vcombine.low %v1367, %v1368
        %v1395 = vunpack.c.l.s4 1983009808
        %v1396 = vunpack.c.0.s8 %v1395
        %v1397 = vlaneseq
        %v1398 = vshrl.u32 %v1397, 7
        %v1399 = vsub.s32 %v1396, %v1398
        %v1400 = vrot.slane %v1393, %v1399
        %v1401 = vcombine.low %v1376, %v1384
        %v1402 = vcombine.high %v1376, %v1384
        %v1404 = vunpack.c.l.s4 1934713408
        %v1405 = vunpack.c.0.s8 %v1404
        %v1406 = vlaneseq
        %v1407 = vshrl.u32 %v1406, 7
        %v1408 = vsub.s32 %v1405, %v1407
        %v1409 = vrot.slane %v1401, %v1408
        %v1411 = vunpack.c.l.s4 1934713408
        %v1412 = vunpack.c.0.s8 %v1411
        %v1413 = vlaneseq
        %v1414 = vshrl.u32 %v1413, 7
        %v1415 = vsub.s32 %v1412, %v1414
        %v1416 = vrot.slane %v1402, %v1415
        %v1417 = vcombine.low %v1392, %v1400
        %v1418 = vcombine.high %v1392, %v1400
        %v1420 = vunpack.c.l.s4 1934713408
        %v1421 = vunpack.c.0.s8 %v1420
        %v1422 = vlaneseq
        %v1423 = vshrl.u32 %v1422, 7
        %v1424 = vsub.s32 %v1421, %v1423
        %v1425 = vrot.slane %v1417, %v1424
        %v1427 = vunpack.c.l.s4 1934713408
        %v1428 = vunpack.c.0.s8 %v1427
        %v1429 = vlaneseq
        %v1430 = vshrl.u32 %v1429, 7
        %v1431 = vsub.s32 %v1428, %v1430
        %v1432 = vrot.slane %v1418, %v1431
        %v1433 = vcombine.low %v1409, %v1425
        %v1434 = vcombine.high %v1409, %v1425
        %v1435 = vcombine.low %v1416, %v1432
        %v1436 = vcombine.high %v1416, %v1432
        %1438 = vrot.lane.b32.xlu0 %v1434, 8
        %v1439 = vpop.permute.xlu0 %1438
        %1442 = vrot.lane.b32.xlu0 %v1435, 16
        %v1443 = vpop.permute.xlu0 %1442
        %1446 = vrot.lane.b32.xlu0 %v1436, 24
        %v1447 = vpop.permute.xlu0 %1446
        %v1449 = vsel %vm883, %v1433, %v1439
        %vm1450 = vcmask 130048
        %v1451 = vsel %vm1450, %v1449, %v1443
        %vm1452 = vcmask 195584
        %v1453 = vsel %vm1452, %v1451, %v1447
        %v1454 = vpack.c.bf16 %v1453, %v1453
        %v1455 = vld [vmem:[%s4] sm:$0xf]
        %v1456 = vld [vmem:[%s4 + $0x4] sm:$0xf]
        %v1457 = vld [vmem:[%s4 + $0x8] sm:$0xf]
        %v1458 = vld [vmem:[%s4 + $0xc] sm:$0xf]
        %v1459 = vlaneseq
        %v1460 = vshrl.u32 %v1459, 7
        %v1461 = vsub.s32 0, %v1460
        %v1462 = vrot.slane %v335, %v1461
        %v1467 = vunpack.c.l.b16 %v1455
        %v1468 = vunpack.c.l.b16 %v1456
        %v1469 = vunpack.c.l.b16 %v1457
        %v1470 = vunpack.c.l.b16 %v1458
        %v1471 = vpack.c.b16 %v1468, %v1467
        %v1472 = vpack.c.b16 %v1470, %v1469
        %v1476 = vsel %vm337, %v1454, 0
        %1478 = vmatprep.subr.bf16.mxu0 0
        %1479 = vmatpush1.bf16.msra.mxu0 %v1471
        %1480 = vmatprep.subr.bf16.mxu0 0
        %1481 = vmatpush1.bf16.msra.mxu0 %v1472
        %1482 = vmatprep.subr.bf16.mxu0 0
        %1483 = vmatpush1.bf16.msra.mxu0 0
        %1484 = vmatprep.subr.bf16.mxu0 0
        %1485 = vmatpush1.bf16.msra.mxu0 0
        %1486 = vmatprep.subr.bf16.mxu0 0
        %1487 = vmatpush1.bf16.msra.mxu0 0
        %1488 = vmatprep.subr.bf16.mxu0 0
        %1489 = vmatpush1.bf16.msra.mxu0 0
        %1490 = vmatprep.subr.bf16.mxu0 0
        %1491 = vmatpush1.bf16.msra.mxu0 0
        %1492 = vmatprep.subr.bf16.mxu0 0
        %1493 = vmatpush1.bf16.msra.mxu0 0
        %1494 = vmatprep.subr.bf16.mxu0 0
        %1495 = vmatpush1.bf16.msra.mxu0 0
        %1496 = vmatprep.subr.bf16.mxu0 0
        %1497 = vmatpush1.bf16.msra.mxu0 0
        %1498 = vmatprep.subr.bf16.mxu0 0
        %1499 = vmatpush1.bf16.msra.mxu0 0
        %1500 = vmatprep.subr.bf16.mxu0 0
        %1501 = vmatpush1.bf16.msra.mxu0 0
        %1502 = vmatprep.subr.bf16.mxu0 0
        %1503 = vmatpush1.bf16.msra.mxu0 0
        %1504 = vmatprep.subr.bf16.mxu0 0
        %1505 = vmatpush1.bf16.msra.mxu0 0
        %1506 = vmatprep.subr.bf16.mxu0 0
        %1507 = vmatpush1.bf16.msra.mxu0 0
        %1508 = vmatprep.subr.bf16.mxu0 0
        %1509 = vmatpush1.bf16.msra.mxu0 0
        %1510 = vmatprep.mubr.bf16.mxu0 0
        %1511 = vmatmul.mubr.bf16.gmra.mrb[0].mxu0 %v1476
        %v1512 = vpop.f32.mrb[0].mxu0
        %v1513 = vadd.f32 %v1462, %v1512
        %v1514 = vpop.f32.mrb[0].mxu0
        %v1515 = vpop.f32.mrb[0].mxu0
        %v1516 = vpop.f32.mrb[0].mxu0
        %1517 = vdwg.mxu0
        %v1518 = vadd.f32 %v1513, %v330
        %v1519 = vsel %vm337, %v1518, 0.0
        %1520 = vadd.xlane.f32.xlu0 %v1519
        %v1521 = vpop.xlane.xlu0 %1520
        %v1522 = vmul.f32 %v1521, %v341
        %v1523 = vsub.f32 %v1518, %v1522
        %v1524 = vmul.f32 %v1523, %v1523
        %v1525 = vsel %vm337, %v1524, 0.0
        %1526 = vadd.xlane.f32.xlu0 %v1525
        %v1527 = vpop.xlane.xlu0 %1526
        %v1528 = vmul.f32 %v1527, %v341
        %v1529 = vadd.f32 %v1528, 1e-05
        %v1530 = vrsqrt.pop %v1529
        %v1531 = vmul.f32 %v1523, %v1530
        %v1532 = vlaneseq
        %v1533 = vshrl.u32 %v1532, 7
        %v1534 = vsub.s32 0, %v1533
        %v1535 = vrot.slane %v333, %v1534
        %v1536 = vmul.f32 %v1531, %v1535
        %v1537 = vlaneseq
        %v1538 = vshrl.u32 %v1537, 7
        %v1539 = vsub.s32 0, %v1538
        %v1540 = vrot.slane %v334, %v1539
        %v1541 = vadd.f32 %v1536, %v1540
        %v1542 = vpack.c.bf16 %v1541, %v1541
        %v1543 = vld [vmem:[#allocation5] sm:$0xf]
        %v1544 = vld [vmem:[#allocation5 + $0x4] sm:$0xf]
        %v1545 = vld [vmem:[#allocation5 + $0x8] sm:$0xf]
        %v1546 = vld [vmem:[#allocation5 + $0xc] sm:$0xf]
        %v1547 = vld [vmem:[%s6] sm:$0x1]
        %v1549 = vlaneseq
        %v1550 = vshrl.u32 %v1549, 7
        %v1551 = vsub.s32 0, %v1550
        %v1552 = vrot.slane %v1547, %v1551
        %v1558 = vunpack.c.l.b16 %v1543
        %v1559 = vunpack.c.l.b16 %v1544
        %v1560 = vunpack.c.l.b16 %v1545
        %v1561 = vunpack.c.l.b16 %v1546
        %v1562 = vpack.c.b16 %v1559, %v1558
        %v1563 = vpack.c.b16 %v1561, %v1560
        %v1567 = vsel %vm337, %v1542, 0
        %1569 = vmatprep.subr.bf16.mxu0 0
        %1570 = vmatpush1.bf16.msra.mxu0 %v1562
        %1571 = vmatprep.subr.bf16.mxu0 0
        %1572 = vmatpush1.bf16.msra.mxu0 %v1563
        %1573 = vmatprep.subr.bf16.mxu0 0
        %1574 = vmatpush1.bf16.msra.mxu0 0
        %1575 = vmatprep.subr.bf16.mxu0 0
        %1576 = vmatpush1.bf16.msra.mxu0 0
        %1577 = vmatprep.subr.bf16.mxu0 0
        %1578 = vmatpush1.bf16.msra.mxu0 0
        %1579 = vmatprep.subr.bf16.mxu0 0
        %1580 = vmatpush1.bf16.msra.mxu0 0
        %1581 = vmatprep.subr.bf16.mxu0 0
        %1582 = vmatpush1.bf16.msra.mxu0 0
        %1583 = vmatprep.subr.bf16.mxu0 0
        %1584 = vmatpush1.bf16.msra.mxu0 0
        %1585 = vmatprep.subr.bf16.mxu0 0
        %1586 = vmatpush1.bf16.msra.mxu0 0
        %1587 = vmatprep.subr.bf16.mxu0 0
        %1588 = vmatpush1.bf16.msra.mxu0 0
        %1589 = vmatprep.subr.bf16.mxu0 0
        %1590 = vmatpush1.bf16.msra.mxu0 0
        %1591 = vmatprep.subr.bf16.mxu0 0
        %1592 = vmatpush1.bf16.msra.mxu0 0
        %1593 = vmatprep.subr.bf16.mxu0 0
        %1594 = vmatpush1.bf16.msra.mxu0 0
        %1595 = vmatprep.subr.bf16.mxu0 0
        %1596 = vmatpush1.bf16.msra.mxu0 0
        %1597 = vmatprep.subr.bf16.mxu0 0
        %1598 = vmatpush1.bf16.msra.mxu0 0
        %1599 = vmatprep.subr.bf16.mxu0 0
        %1600 = vmatpush1.bf16.msra.mxu0 0
        %1601 = vmatprep.mubr.bf16.mxu0 0
        %1602 = vmatmul.mubr.bf16.gmra.mrb[0].mxu0 %v1567
        %v1603 = vpop.f32.mrb[0].mxu0
        %v1604 = vadd.f32 %v1552, %v1603
        %v1605 = vpop.f32.mrb[0].mxu0
        %v1606 = vpop.f32.mrb[0].mxu0
        %v1607 = vpop.f32.mrb[0].mxu0
        %1608 = vdwg.mxu0
        %v1609 = vmul.f32 %v1604, 0.5
        %v1610 = vmul.f32 %v1604, 0.044715
        %v1611 = vmul.f32 %v1610, %v1604
        %v1612 = vmul.f32 %v1611, %v1604
        %v1613 = vadd.f32 %v1604, %v1612
        %v1614 = vmul.f32 %v1613, 0.7978846
        %v1615 = vtanh.pop %v1614
        %v1616 = vadd.f32 %v1615, 1.0
        %v1617 = vmul.f32 %v1609, %v1616
        %v1618 = vpack.c.bf16 %v1617, %v1617
        %v1619 = vld [vmem:[%s7] sm:$0xf]
        %v1620 = vld [vmem:[%s7 + $0x4] sm:$0xf]
        %v1621 = vld [vmem:[%s7 + $0x8] sm:$0xf]
        %v1622 = vld [vmem:[%s7 + $0xc] sm:$0xf]
        %v1623 = vld [vmem:[%s7 + $0x10] sm:$0xf]
        %v1624 = vld [vmem:[%s7 + $0x14] sm:$0xf]
        %v1625 = vld [vmem:[%s7 + $0x18] sm:$0xf]
        %v1626 = vld [vmem:[%s7 + $0x1c] sm:$0xf]
        %v1627 = vlaneseq
        %v1628 = vshrl.u32 %v1627, 7
        %v1629 = vsub.s32 0, %v1628
        %v1630 = vrot.slane %v336, %v1629
        %v1639 = vunpack.c.l.b16 %v1619
        %v1640 = vunpack.c.l.b16 %v1620
        %v1641 = vunpack.c.l.b16 %v1621
        %v1642 = vunpack.c.l.b16 %v1622
        %v1643 = vunpack.c.l.b16 %v1623
        %v1644 = vunpack.c.l.b16 %v1624
        %v1645 = vunpack.c.l.b16 %v1625
        %v1646 = vunpack.c.l.b16 %v1626
        %v1647 = vpack.c.b16 %v1640, %v1639
        %v1648 = vpack.c.b16 %v1642, %v1641
        %v1649 = vpack.c.b16 %v1644, %v1643
        %v1650 = vpack.c.b16 %v1646, %v1645
        %vm1655 = vcmask 523264
        %v1657 = vsel %vm1655, %v1618, 0
        %1659 = vmatprep.subr.bf16.mxu0 0
        %1660 = vmatpush1.bf16.msra.mxu0 %v1647
        %1661 = vmatprep.subr.bf16.mxu0 0
        %1662 = vmatpush1.bf16.msra.mxu0 %v1648
        %1663 = vmatprep.subr.bf16.mxu0 0
        %1664 = vmatpush1.bf16.msra.mxu0 %v1649
        %1665 = vmatprep.subr.bf16.mxu0 0
        %1666 = vmatpush1.bf16.msra.mxu0 %v1650
        %1667 = vmatprep.subr.bf16.mxu0 0
        %1668 = vmatpush1.bf16.msra.mxu0 0
        %1669 = vmatprep.subr.bf16.mxu0 0
        %1670 = vmatpush1.bf16.msra.mxu0 0
        %1671 = vmatprep.subr.bf16.mxu0 0
        %1672 = vmatpush1.bf16.msra.mxu0 0
        %1673 = vmatprep.subr.bf16.mxu0 0
        %1674 = vmatpush1.bf16.msra.mxu0 0
        %1675 = vmatprep.subr.bf16.mxu0 0
        %1676 = vmatpush1.bf16.msra.mxu0 0
        %1677 = vmatprep.subr.bf16.mxu0 0
        %1678 = vmatpush1.bf16.msra.mxu0 0
        %1679 = vmatprep.subr.bf16.mxu0 0
        %1680 = vmatpush1.bf16.msra.mxu0 0
        %1681 = vmatprep.subr.bf16.mxu0 0
        %1682 = vmatpush1.bf16.msra.mxu0 0
        %1683 = vmatprep.subr.bf16.mxu0 0
        %1684 = vmatpush1.bf16.msra.mxu0 0
        %1685 = vmatprep.subr.bf16.mxu0 0
        %1686 = vmatpush1.bf16.msra.mxu0 0
        %1687 = vmatprep.subr.bf16.mxu0 0
        %1688 = vmatpush1.bf16.msra.mxu0 0
        %1689 = vmatprep.subr.bf16.mxu0 0
        %1690 = vmatpush1.bf16.msra.mxu0 0
        %1691 = vmatprep.mubr.bf16.mxu0 0
        %1692 = vmatmul.mubr.bf16.gmra.mrb[0].mxu0 %v1657
        %v1693 = vpop.f32.mrb[0].mxu0
        %v1694 = vadd.f32 %v1630, %v1693
        %v1695 = vpop.f32.mrb[0].mxu0
        %v1696 = vpop.f32.mrb[0].mxu0
        %v1697 = vpop.f32.mrb[0].mxu0
        %1698 = vdwg.mxu0
        %v1699 = vadd.f32 %v1518, %v1694
        %1700 = vst.msk [vmem:[%s324] sm:$0xff] %vm337, %v1699
        %s1701 = sand.u32 %s205, 1
        %s1702 = scalar_lea.sflag [#allocation4], %s1701
        %s1703 = sand.u32 %s205, 1
        %s1704 = smul.addr %s1703, 8
        %s1705 = scalar_lea.vmem [#allocation7], %s1704
        // Predicated region
        $region61: #{tpu_custom_call.1} parent=51 // pred_check
          %p1706 = pneg %p215
        $region62: #{tpu_custom_call.1} parent=51 // pred_check_branch
          %1708 = sbr.rel (%p1706) target = $region64
        $region63: #{tpu_custom_call.1} parent=51 // pred_region
          %s1710 = ssub.s32 128, 128
          %1711 = vsyncadd %s1702, %s1710
          %s1712 = smul.addr %s24, 128
          %s1713 = scalar_lea.hbm %s8, %s1712
          %s1715 = sshll.u32 %s1705, 4
          %s1716 = int_to_ptr.vmem [resolvable:$true] %s1715
          %1718 = dma.vmem_to_hbm [thread:$0]  %s1716, 128, %s1713, %s1702
        $region64: #{tpu_custom_call.1} parent=51 // pred_fallthru
          _
      $region52: #{tpu_custom_call.1} parent=5 // pred_fallthru
        _
      %p1719 = scmp.le.s32.totalorder 2, %s19
      // Predicated region
      $region65: #{tpu_custom_call.1} parent=5 // pred_check
        %p1720 = pneg %p1719
      $region66: #{tpu_custom_call.1} parent=5 // pred_check_branch
        %1722 = sbr.rel (%p1720) target = $region68
      $region67: #{tpu_custom_call.1} parent=5 // pred_region
        %s1723 = ssub.s32 %s19, 2
        // Predicated region
        $region69: #{tpu_custom_call.1} parent=67 // pred_check
          %p1724 = pneg %p221
        $region70: #{tpu_custom_call.1} parent=67 // pred_check_branch
          %1726 = sbr.rel (%p1724) target = $region72
        $region71: #{tpu_custom_call.1} parent=67 // pred_region
          %s1727 = sand.u32 %s206, 1
          %s1728 = scalar_lea.sflag [#allocation4], %s1727
          %s1729 = sand.u32 %s206, 1
          %s1730 = smul.addr %s1729, 8
          %s1731 = scalar_lea.vmem [#allocation7], %s1730
          %1732 = dma.done %s1728, 128
        $region72: #{tpu_custom_call.1} parent=67 // pred_fallthru
          _
      $region68: #{tpu_custom_call.1} parent=5 // pred_fallthru
        _
    $region6: #{tpu_custom_call.1} parent=1 // loop_footer
      %s23 = sadd.s32 1, %s19
    $region7: #{tpu_custom_call.1} parent=1 // loop_footer_branch
      %18 = sbr.rel target = $region3
    $region8: #{tpu_custom_call.1} parent=1 // loop_exit
      _
    %1733 = vsyncpa [#allocation3], 1
    %s1734 = scalar_lea.sflag [#allocation3], 1
    %1735 = vsyncpa %s1734, 1
    %1736 = vsyncpa [#allocation6], 1
    %1737 = vsyncpa [#allocation4], 1
    %s1738 = scalar_lea.sflag [#allocation4], 1
    %1739 = vsyncpa %s1738, 1

</llo_original>
